<compile_context>
chip_gen: v7x
topology: tpu7x:2x2x1
jax: 0.10.0
libtpu: 0.0.40
codegen_flags: <defaults>
</compile_context>

<pallas_src>
import jax
import jax.numpy as jnp
from jax.experimental import pallas as pl
from jax.experimental.pallas import tpu as pltpu


_LANE = 128
_SUBLANE = 8
# Conservative single-block budget: leaves plenty of headroom even on v7x
# (64 MiB physical VMEM per TensorCore) and under v5e's default scoped limit.
_SINGLE_BLOCK_BUDGET_BYTES = 12 * 1024 * 1024
_VMEM_LIMIT_BYTES = 32 * 1024 * 1024


def _add_relu_kernel(a_ref, b_ref, o_ref):
    # Elementwise hot path: add + relu on the whole VMEM tile.
    o_ref[...] = jnp.maximum(a_ref[...] + b_ref[...], 0.0)


def _ceil_to(x, m):
    return -(-x // m) * m


def _padded_vmem_bytes(shape, dtype):
    """Approximate VMEM bytes for one array under (8,128) minor-dim tiling."""
    itemsize = jnp.dtype(dtype).itemsize
    s = (1,) * max(0, 2 - len(shape)) + tuple(shape)
    lead = 1
    for d in s[:-2]:
        lead *= d
    return lead * _ceil_to(s[-2], _SUBLANE) * _ceil_to(s[-1], _LANE) * itemsize


def _add_relu_single_block(a, b):
    # Whole problem in one VMEM block, no grid, arrays passed straight through
    # in their native 4-D layout (block == full array, so the (8,128) block
    # divisibility rule does not apply).
    return pl.pallas_call(
        _add_relu_kernel,
        out_shape=jax.ShapeDtypeStruct(a.shape, a.dtype),
        in_specs=[
            pl.BlockSpec(memory_space=pltpu.MemorySpace.VMEM),
            pl.BlockSpec(memory_space=pltpu.MemorySpace.VMEM),
        ],
        out_specs=pl.BlockSpec(memory_space=pltpu.MemorySpace.VMEM),
        compiler_params=pltpu.CompilerParams(
            vmem_limit_bytes=_VMEM_LIMIT_BYTES,
        ),
    )(a, b)


def _add_relu_tiled_nchw(a, b):
    # Large-activation path: tile over (batch, channel-blocks), keep the full
    # HxW plane per block (block trailing dims == array trailing dims).
    n, c, h, w = a.shape
    plane_bytes = _padded_vmem_bytes((1, 1, h, w), a.dtype)
    # 3 arrays x 2-deep double buffering = 6 live blocks per grid step.
    max_cblk = max(1, _SINGLE_BLOCK_BUDGET_BYTES // (6 * plane_bytes))
    cblk = min(c, max_cblk)
    grid = (n, pl.cdiv(c, cblk))
    spec = pl.BlockSpec((1, cblk, h, w), lambda i, j: (i, j, 0, 0))
    return pl.pallas_call(
        _add_relu_kernel,
        out_shape=jax.ShapeDtypeStruct(a.shape, a.dtype),
        grid=grid,
        in_specs=[spec, spec],
        out_specs=spec,
        compiler_params=pltpu.CompilerParams(
            dimension_semantics=("parallel", "parallel"),
            vmem_limit_bytes=_VMEM_LIMIT_BYTES,
        ),
    )(a, b)


def _add_relu_impl(x113, x108):
    assert x113.shape == x108.shape and x113.dtype == x108.dtype
    per_array = _padded_vmem_bytes(x113.shape, x113.dtype)
    if 3 * per_array <= _SINGLE_BLOCK_BUDGET_BYTES:
        return _add_relu_single_block(x113, x108)
    if x113.ndim == 4:
        return _add_relu_tiled_nchw(x113, x108)
    # TODO(synk): add a lane-dense tiled path for large non-NCHW shapes; plain
    # jnp (fused by XLA) is the right fallback until then.
    return jnp.maximum(x113 + x108, 0.0)


add_relu = jax.jit(_add_relu_impl)


if __name__ == "__main__":
    key = jax.random.PRNGKey(0)
    k1, k2 = jax.random.split(key)
    # Shapes implied by the module's forward: (1, 512, 7, 7)
    x113 = jax.random.normal(k1, (1, 512, 7, 7), dtype=jnp.float32)
    x108 = jax.random.normal(k2, (1, 512, 7, 7), dtype=jnp.float32)

    out = add_relu(x113, x108)
    out = jax.block_until_ready(out)

    # correctness check against plain JAX reference
    ref = jnp.maximum(x113 + x108, 0.0)
    assert out.shape == (1, 512, 7, 7)
    assert out.dtype == x113.dtype
    assert jnp.allclose(out, ref, atol=1e-6, rtol=1e-6)

    print("KERNEL_OK")
</pallas_src>

<mosaic_0001>
module attributes {stable_mosaic.version = 11 : i64} {
  func.func @_add_relu_kernel(%arg0: memref<1x512x7x7xf32, #tpu.memory_space<vmem>>, %arg1: memref<1x512x7x7xf32, #tpu.memory_space<vmem>>, %arg2: memref<1x512x7x7xf32, #tpu.memory_space<vmem>>) attributes {dimension_semantics = [], scalar_prefetch = 0 : i64, scratch_operands = 0 : i64, tpu.core_type = #tpu.core_type<tc>} {
    %c0 = arith.constant 0 : index
    %c0_0 = arith.constant 0 : index
    %c0_1 = arith.constant 0 : index
    %c0_2 = arith.constant 0 : index
    %0 = vector.load %arg0[%c0, %c0_0, %c0_1, %c0_2] : memref<1x512x7x7xf32, #tpu.memory_space<vmem>>, vector<1x512x7x7xf32>
    %c0_3 = arith.constant 0 : index
    %c0_4 = arith.constant 0 : index
    %c0_5 = arith.constant 0 : index
    %c0_6 = arith.constant 0 : index
    %1 = vector.load %arg1[%c0_3, %c0_4, %c0_5, %c0_6] : memref<1x512x7x7xf32, #tpu.memory_space<vmem>>, vector<1x512x7x7xf32>
    %2 = arith.addf %0, %1 : vector<1x512x7x7xf32>
    %cst = arith.constant 0.000000e+00 : f32
    %3 = vector.broadcast %cst : f32 to vector<1x512x7x7xf32>
    %4 = arith.maximumf %2, %3 : vector<1x512x7x7xf32>
    %c0_7 = arith.constant 0 : index
    %c0_8 = arith.constant 0 : index
    %c0_9 = arith.constant 0 : index
    %c0_10 = arith.constant 0 : index
    %5 = vector.load %arg2[%c0_7, %c0_8, %c0_9, %c0_10] : memref<1x512x7x7xf32, #tpu.memory_space<vmem>>, vector<1x512x7x7xf32>
    tpu.vector_store %arg2[%c0_7, %c0_8, %c0_9, %c0_10], %4 {strides = array<i32>} : memref<1x512x7x7xf32, #tpu.memory_space<vmem>>, vector<1x512x7x7xf32>,
    return
  }
}

</mosaic_0001>

<llo_original>
// kernel: _add_relu_impl.1
$region0: #{_add_relu_impl.1}
  #allocation0 [shape = 'u32[]', space=smem, size = 0x4, offset = 0x4, fixed_abs, tag = 'smem constant byte address 0x4 - core index']
  #allocation1 [shape = 'u32[144,128]{1,0:T(1,128)}', space=vmem, size = 0x12000, scoped, tag = 'internal scratch']
  %s0 = inlined_call_operand.vmem [shape: f32[1,512,7,7], index: 0, kind: input, shape index: {}]
  %s1 = inlined_call_operand.vmem [shape: f32[1,512,7,7], index: 1, kind: input, shape index: {}]
  %s2 = inlined_call_operand.vmem [shape: f32[1,512,7,7], index: 2, kind: output, shape index: {}]
  %s3 = sld [smem:[#allocation0]]
  $region18: #{_add_relu_impl.1} parent=0
    _
  %s5 = ssub.s32 1, %s3
  %s6 = scalar_select 0, %s5, %s3
  // Predicated region
  $region2: #{_add_relu_impl.1} parent=0 // pred_check
    _
  $region3: #{_add_relu_impl.1} parent=0 // pred_check_branch
    %8 = sbr.rel (0) target = $region5
  $region4: #{_add_relu_impl.1} parent=0 // pred_region
    _
  $region5: #{_add_relu_impl.1} parent=0 // pred_fallthru
    _
  // Predicated region
  $region6: #{_add_relu_impl.1} parent=0 // pred_check
    _
  $region7: #{_add_relu_impl.1} parent=0 // pred_check_branch
    %10 = sbr.rel (0) target = $region9
  $region8: #{_add_relu_impl.1} parent=0 // pred_region
    _
  $region9: #{_add_relu_impl.1} parent=0 // pred_fallthru
    _
  %v11 = vld [vmem:[%s0] sm:$0x7f]
  %v12 = vld [vmem:[%s0 + $0x8] sm:$0x7f]
  %v13 = vld [vmem:[%s0 + $0x10] sm:$0x7f]
  %v14 = vld [vmem:[%s0 + $0x18] sm:$0x7f]
  %v15 = vld [vmem:[%s0 + $0x20] sm:$0x7f]
  %v16 = vld [vmem:[%s0 + $0x28] sm:$0x7f]
  %v17 = vld [vmem:[%s0 + $0x30] sm:$0x7f]
  %v18 = vld [vmem:[%s0 + $0x38] sm:$0x7f]
  %v19 = vld [vmem:[%s0 + $0x40] sm:$0x7f]
  %v20 = vld [vmem:[%s0 + $0x48] sm:$0x7f]
  %v21 = vld [vmem:[%s0 + $0x50] sm:$0x7f]
  %v22 = vld [vmem:[%s0 + $0x58] sm:$0x7f]
  %v23 = vld [vmem:[%s0 + $0x60] sm:$0x7f]
  %v24 = vld [vmem:[%s0 + $0x68] sm:$0x7f]
  %v25 = vld [vmem:[%s0 + $0x70] sm:$0x7f]
  %v26 = vld [vmem:[%s0 + $0x78] sm:$0x7f]
  %v27 = vld [vmem:[%s0 + $0x80] sm:$0x7f]
  %v28 = vld [vmem:[%s0 + $0x88] sm:$0x7f]
  %v29 = vld [vmem:[%s0 + $0x90] sm:$0x7f]
  %v30 = vld [vmem:[%s0 + $0x98] sm:$0x7f]
  %v31 = vld [vmem:[%s0 + $0xa0] sm:$0x7f]
  %v32 = vld [vmem:[%s0 + $0xa8] sm:$0x7f]
  %v33 = vld [vmem:[%s0 + $0xb0] sm:$0x7f]
  %v34 = vld [vmem:[%s0 + $0xb8] sm:$0x7f]
  %v35 = vld [vmem:[%s0 + $0xc0] sm:$0x7f]
  %v36 = vld [vmem:[%s0 + $0xc8] sm:$0x7f]
  %v37 = vld [vmem:[%s0 + $0xd0] sm:$0x7f]
  %v38 = vld [vmem:[%s0 + $0xd8] sm:$0x7f]
  %v39 = vld [vmem:[%s0 + $0xe0] sm:$0x7f]
  %v40 = vld [vmem:[%s0 + $0xe8] sm:$0x7f]
  %v41 = vld [vmem:[%s0 + $0xf0] sm:$0x7f]
  %v42 = vld [vmem:[%s0 + $0xf8] sm:$0x7f]
  %v43 = vld [vmem:[%s0 + $0x100] sm:$0x7f]
  %v44 = vld [vmem:[%s0 + $0x108] sm:$0x7f]
  %v45 = vld [vmem:[%s0 + $0x110] sm:$0x7f]
  %v46 = vld [vmem:[%s0 + $0x118] sm:$0x7f]
  %v47 = vld [vmem:[%s0 + $0x120] sm:$0x7f]
  %v48 = vld [vmem:[%s0 + $0x128] sm:$0x7f]
  %v49 = vld [vmem:[%s0 + $0x130] sm:$0x7f]
  %v50 = vld [vmem:[%s0 + $0x138] sm:$0x7f]
  %v51 = vld [vmem:[%s0 + $0x140] sm:$0x7f]
  %v52 = vld [vmem:[%s0 + $0x148] sm:$0x7f]
  %v53 = vld [vmem:[%s0 + $0x150] sm:$0x7f]
  %v54 = vld [vmem:[%s0 + $0x158] sm:$0x7f]
  %v55 = vld [vmem:[%s0 + $0x160] sm:$0x7f]
  %v56 = vld [vmem:[%s0 + $0x168] sm:$0x7f]
  %v57 = vld [vmem:[%s0 + $0x170] sm:$0x7f]
  %v58 = vld [vmem:[%s0 + $0x178] sm:$0x7f]
  %v59 = vld [vmem:[%s0 + $0x180] sm:$0x7f]
  %v60 = vld [vmem:[%s0 + $0x188] sm:$0x7f]
  %v61 = vld [vmem:[%s0 + $0x190] sm:$0x7f]
  %v62 = vld [vmem:[%s0 + $0x198] sm:$0x7f]
  %v63 = vld [vmem:[%s0 + $0x1a0] sm:$0x7f]
  %v64 = vld [vmem:[%s0 + $0x1a8] sm:$0x7f]
  %v65 = vld [vmem:[%s0 + $0x1b0] sm:$0x7f]
  %v66 = vld [vmem:[%s0 + $0x1b8] sm:$0x7f]
  %v67 = vld [vmem:[%s0 + $0x1c0] sm:$0x7f]
  %v68 = vld [vmem:[%s0 + $0x1c8] sm:$0x7f]
  %v69 = vld [vmem:[%s0 + $0x1d0] sm:$0x7f]
  %v70 = vld [vmem:[%s0 + $0x1d8] sm:$0x7f]
  %v71 = vld [vmem:[%s0 + $0x1e0] sm:$0x7f]
  %v72 = vld [vmem:[%s0 + $0x1e8] sm:$0x7f]
  %v73 = vld [vmem:[%s0 + $0x1f0] sm:$0x7f]
  %v74 = vld [vmem:[%s0 + $0x1f8] sm:$0x7f]
  %v75 = vld [vmem:[%s0 + $0x200] sm:$0x7f]
  %v76 = vld [vmem:[%s0 + $0x208] sm:$0x7f]
  %v77 = vld [vmem:[%s0 + $0x210] sm:$0x7f]
  %v78 = vld [vmem:[%s0 + $0x218] sm:$0x7f]
  %v79 = vld [vmem:[%s0 + $0x220] sm:$0x7f]
  %v80 = vld [vmem:[%s0 + $0x228] sm:$0x7f]
  %v81 = vld [vmem:[%s0 + $0x230] sm:$0x7f]
  %v82 = vld [vmem:[%s0 + $0x238] sm:$0x7f]
  %v83 = vld [vmem:[%s0 + $0x240] sm:$0x7f]
  %v84 = vld [vmem:[%s0 + $0x248] sm:$0x7f]
  %v85 = vld [vmem:[%s0 + $0x250] sm:$0x7f]
  %v86 = vld [vmem:[%s0 + $0x258] sm:$0x7f]
  %v87 = vld [vmem:[%s0 + $0x260] sm:$0x7f]
  %v88 = vld [vmem:[%s0 + $0x268] sm:$0x7f]
  %v89 = vld [vmem:[%s0 + $0x270] sm:$0x7f]
  %v90 = vld [vmem:[%s0 + $0x278] sm:$0x7f]
  %v91 = vld [vmem:[%s0 + $0x280] sm:$0x7f]
  %v92 = vld [vmem:[%s0 + $0x288] sm:$0x7f]
  %v93 = vld [vmem:[%s0 + $0x290] sm:$0x7f]
  %v94 = vld [vmem:[%s0 + $0x298] sm:$0x7f]
  %v95 = vld [vmem:[%s0 + $0x2a0] sm:$0x7f]
  %v96 = vld [vmem:[%s0 + $0x2a8] sm:$0x7f]
  %v97 = vld [vmem:[%s0 + $0x2b0] sm:$0x7f]
  %v98 = vld [vmem:[%s0 + $0x2b8] sm:$0x7f]
  %v99 = vld [vmem:[%s0 + $0x2c0] sm:$0x7f]
  %v100 = vld [vmem:[%s0 + $0x2c8] sm:$0x7f]
  %v101 = vld [vmem:[%s0 + $0x2d0] sm:$0x7f]
  %v102 = vld [vmem:[%s0 + $0x2d8] sm:$0x7f]
  %v103 = vld [vmem:[%s0 + $0x2e0] sm:$0x7f]
  %v104 = vld [vmem:[%s0 + $0x2e8] sm:$0x7f]
  %v105 = vld [vmem:[%s0 + $0x2f0] sm:$0x7f]
  %v106 = vld [vmem:[%s0 + $0x2f8] sm:$0x7f]
  %v107 = vld [vmem:[%s0 + $0x300] sm:$0x7f]
  %v108 = vld [vmem:[%s0 + $0x308] sm:$0x7f]
  %v109 = vld [vmem:[%s0 + $0x310] sm:$0x7f]
  %v110 = vld [vmem:[%s0 + $0x318] sm:$0x7f]
  %v111 = vld [vmem:[%s0 + $0x320] sm:$0x7f]
  %v112 = vld [vmem:[%s0 + $0x328] sm:$0x7f]
  %v113 = vld [vmem:[%s0 + $0x330] sm:$0x7f]
  %v114 = vld [vmem:[%s0 + $0x338] sm:$0x7f]
  %v115 = vld [vmem:[%s0 + $0x340] sm:$0x7f]
  %v116 = vld [vmem:[%s0 + $0x348] sm:$0x7f]
  %v117 = vld [vmem:[%s0 + $0x350] sm:$0x7f]
  %v118 = vld [vmem:[%s0 + $0x358] sm:$0x7f]
  %v119 = vld [vmem:[%s0 + $0x360] sm:$0x7f]
  %v120 = vld [vmem:[%s0 + $0x368] sm:$0x7f]
  %v121 = vld [vmem:[%s0 + $0x370] sm:$0x7f]
  %v122 = vld [vmem:[%s0 + $0x378] sm:$0x7f]
  %v123 = vld [vmem:[%s0 + $0x380] sm:$0x7f]
  %v124 = vld [vmem:[%s0 + $0x388] sm:$0x7f]
  %v125 = vld [vmem:[%s0 + $0x390] sm:$0x7f]
  %v126 = vld [vmem:[%s0 + $0x398] sm:$0x7f]
  %v127 = vld [vmem:[%s0 + $0x3a0] sm:$0x7f]
  %v128 = vld [vmem:[%s0 + $0x3a8] sm:$0x7f]
  %v129 = vld [vmem:[%s0 + $0x3b0] sm:$0x7f]
  %v130 = vld [vmem:[%s0 + $0x3b8] sm:$0x7f]
  %v131 = vld [vmem:[%s0 + $0x3c0] sm:$0x7f]
  %v132 = vld [vmem:[%s0 + $0x3c8] sm:$0x7f]
  %v133 = vld [vmem:[%s0 + $0x3d0] sm:$0x7f]
  %v134 = vld [vmem:[%s0 + $0x3d8] sm:$0x7f]
  %v135 = vld [vmem:[%s0 + $0x3e0] sm:$0x7f]
  %v136 = vld [vmem:[%s0 + $0x3e8] sm:$0x7f]
  %v137 = vld [vmem:[%s0 + $0x3f0] sm:$0x7f]
  %v138 = vld [vmem:[%s0 + $0x3f8] sm:$0x7f]
  %v139 = vld [vmem:[%s0 + $0x400] sm:$0x7f]
  %v140 = vld [vmem:[%s0 + $0x408] sm:$0x7f]
  %v141 = vld [vmem:[%s0 + $0x410] sm:$0x7f]
  %v142 = vld [vmem:[%s0 + $0x418] sm:$0x7f]
  %v143 = vld [vmem:[%s0 + $0x420] sm:$0x7f]
  %v144 = vld [vmem:[%s0 + $0x428] sm:$0x7f]
  %v145 = vld [vmem:[%s0 + $0x430] sm:$0x7f]
  %v146 = vld [vmem:[%s0 + $0x438] sm:$0x7f]
  %v147 = vld [vmem:[%s0 + $0x440] sm:$0x7f]
  %v148 = vld [vmem:[%s0 + $0x448] sm:$0x7f]
  %v149 = vld [vmem:[%s0 + $0x450] sm:$0x7f]
  %v150 = vld [vmem:[%s0 + $0x458] sm:$0x7f]
  %v151 = vld [vmem:[%s0 + $0x460] sm:$0x7f]
  %v152 = vld [vmem:[%s0 + $0x468] sm:$0x7f]
  %v153 = vld [vmem:[%s0 + $0x470] sm:$0x7f]
  %v154 = vld [vmem:[%s0 + $0x478] sm:$0x7f]
  %v155 = vld [vmem:[%s0 + $0x480] sm:$0x7f]
  %v156 = vld [vmem:[%s0 + $0x488] sm:$0x7f]
  %v157 = vld [vmem:[%s0 + $0x490] sm:$0x7f]
  %v158 = vld [vmem:[%s0 + $0x498] sm:$0x7f]
  %v159 = vld [vmem:[%s0 + $0x4a0] sm:$0x7f]
  %v160 = vld [vmem:[%s0 + $0x4a8] sm:$0x7f]
  %v161 = vld [vmem:[%s0 + $0x4b0] sm:$0x7f]
  %v162 = vld [vmem:[%s0 + $0x4b8] sm:$0x7f]
  %v163 = vld [vmem:[%s0 + $0x4c0] sm:$0x7f]
  %v164 = vld [vmem:[%s0 + $0x4c8] sm:$0x7f]
  %v165 = vld [vmem:[%s0 + $0x4d0] sm:$0x7f]
  %v166 = vld [vmem:[%s0 + $0x4d8] sm:$0x7f]
  %v167 = vld [vmem:[%s0 + $0x4e0] sm:$0x7f]
  %v168 = vld [vmem:[%s0 + $0x4e8] sm:$0x7f]
  %v169 = vld [vmem:[%s0 + $0x4f0] sm:$0x7f]
  %v170 = vld [vmem:[%s0 + $0x4f8] sm:$0x7f]
  %v171 = vld [vmem:[%s0 + $0x500] sm:$0x7f]
  %v172 = vld [vmem:[%s0 + $0x508] sm:$0x7f]
  %v173 = vld [vmem:[%s0 + $0x510] sm:$0x7f]
  %v174 = vld [vmem:[%s0 + $0x518] sm:$0x7f]
  %v175 = vld [vmem:[%s0 + $0x520] sm:$0x7f]
  %v176 = vld [vmem:[%s0 + $0x528] sm:$0x7f]
  %v177 = vld [vmem:[%s0 + $0x530] sm:$0x7f]
  %v178 = vld [vmem:[%s0 + $0x538] sm:$0x7f]
  %v179 = vld [vmem:[%s0 + $0x540] sm:$0x7f]
  %v180 = vld [vmem:[%s0 + $0x548] sm:$0x7f]
  %v181 = vld [vmem:[%s0 + $0x550] sm:$0x7f]
  %v182 = vld [vmem:[%s0 + $0x558] sm:$0x7f]
  %v183 = vld [vmem:[%s0 + $0x560] sm:$0x7f]
  %v184 = vld [vmem:[%s0 + $0x568] sm:$0x7f]
  %v185 = vld [vmem:[%s0 + $0x570] sm:$0x7f]
  %v186 = vld [vmem:[%s0 + $0x578] sm:$0x7f]
  %v187 = vld [vmem:[%s0 + $0x580] sm:$0x7f]
  %v188 = vld [vmem:[%s0 + $0x588] sm:$0x7f]
  %v189 = vld [vmem:[%s0 + $0x590] sm:$0x7f]
  %v190 = vld [vmem:[%s0 + $0x598] sm:$0x7f]
  %v191 = vld [vmem:[%s0 + $0x5a0] sm:$0x7f]
  %v192 = vld [vmem:[%s0 + $0x5a8] sm:$0x7f]
  %v193 = vld [vmem:[%s0 + $0x5b0] sm:$0x7f]
  %v194 = vld [vmem:[%s0 + $0x5b8] sm:$0x7f]
  %v195 = vld [vmem:[%s0 + $0x5c0] sm:$0x7f]
  %v196 = vld [vmem:[%s0 + $0x5c8] sm:$0x7f]
  %v197 = vld [vmem:[%s0 + $0x5d0] sm:$0x7f]
  %v198 = vld [vmem:[%s0 + $0x5d8] sm:$0x7f]
  %v199 = vld [vmem:[%s0 + $0x5e0] sm:$0x7f]
  %v200 = vld [vmem:[%s0 + $0x5e8] sm:$0x7f]
  %v201 = vld [vmem:[%s0 + $0x5f0] sm:$0x7f]
  %v202 = vld [vmem:[%s0 + $0x5f8] sm:$0x7f]
  %v203 = vld [vmem:[%s0 + $0x600] sm:$0x7f]
  %v204 = vld [vmem:[%s0 + $0x608] sm:$0x7f]
  %v205 = vld [vmem:[%s0 + $0x610] sm:$0x7f]
  %v206 = vld [vmem:[%s0 + $0x618] sm:$0x7f]
  %v207 = vld [vmem:[%s0 + $0x620] sm:$0x7f]
  %v208 = vld [vmem:[%s0 + $0x628] sm:$0x7f]
  %v209 = vld [vmem:[%s0 + $0x630] sm:$0x7f]
  %v210 = vld [vmem:[%s0 + $0x638] sm:$0x7f]
  %v211 = vld [vmem:[%s0 + $0x640] sm:$0x7f]
  %v212 = vld [vmem:[%s0 + $0x648] sm:$0x7f]
  %v213 = vld [vmem:[%s0 + $0x650] sm:$0x7f]
  %v214 = vld [vmem:[%s0 + $0x658] sm:$0x7f]
  %v215 = vld [vmem:[%s0 + $0x660] sm:$0x7f]
  %v216 = vld [vmem:[%s0 + $0x668] sm:$0x7f]
  %v217 = vld [vmem:[%s0 + $0x670] sm:$0x7f]
  %v218 = vld [vmem:[%s0 + $0x678] sm:$0x7f]
  %v219 = vld [vmem:[%s0 + $0x680] sm:$0x7f]
  %v220 = vld [vmem:[%s0 + $0x688] sm:$0x7f]
  %v221 = vld [vmem:[%s0 + $0x690] sm:$0x7f]
  %v222 = vld [vmem:[%s0 + $0x698] sm:$0x7f]
  %v223 = vld [vmem:[%s0 + $0x6a0] sm:$0x7f]
  %v224 = vld [vmem:[%s0 + $0x6a8] sm:$0x7f]
  %v225 = vld [vmem:[%s0 + $0x6b0] sm:$0x7f]
  %v226 = vld [vmem:[%s0 + $0x6b8] sm:$0x7f]
  %v227 = vld [vmem:[%s0 + $0x6c0] sm:$0x7f]
  %v228 = vld [vmem:[%s0 + $0x6c8] sm:$0x7f]
  %v229 = vld [vmem:[%s0 + $0x6d0] sm:$0x7f]
  %v230 = vld [vmem:[%s0 + $0x6d8] sm:$0x7f]
  %v231 = vld [vmem:[%s0 + $0x6e0] sm:$0x7f]
  %v232 = vld [vmem:[%s0 + $0x6e8] sm:$0x7f]
  %v233 = vld [vmem:[%s0 + $0x6f0] sm:$0x7f]
  %v234 = vld [vmem:[%s0 + $0x6f8] sm:$0x7f]
  %v235 = vld [vmem:[%s0 + $0x700] sm:$0x7f]
  %v236 = vld [vmem:[%s0 + $0x708] sm:$0x7f]
  %v237 = vld [vmem:[%s0 + $0x710] sm:$0x7f]
  %v238 = vld [vmem:[%s0 + $0x718] sm:$0x7f]
  %v239 = vld [vmem:[%s0 + $0x720] sm:$0x7f]
  %v240 = vld [vmem:[%s0 + $0x728] sm:$0x7f]
  %v241 = vld [vmem:[%s0 + $0x730] sm:$0x7f]
  %v242 = vld [vmem:[%s0 + $0x738] sm:$0x7f]
  %v243 = vld [vmem:[%s0 + $0x740] sm:$0x7f]
  %v244 = vld [vmem:[%s0 + $0x748] sm:$0x7f]
  %v245 = vld [vmem:[%s0 + $0x750] sm:$0x7f]
  %v246 = vld [vmem:[%s0 + $0x758] sm:$0x7f]
  %v247 = vld [vmem:[%s0 + $0x760] sm:$0x7f]
  %v248 = vld [vmem:[%s0 + $0x768] sm:$0x7f]
  %v249 = vld [vmem:[%s0 + $0x770] sm:$0x7f]
  %v250 = vld [vmem:[%s0 + $0x778] sm:$0x7f]
  %v251 = vld [vmem:[%s0 + $0x780] sm:$0x7f]
  %v252 = vld [vmem:[%s0 + $0x788] sm:$0x7f]
  %v253 = vld [vmem:[%s0 + $0x790] sm:$0x7f]
  %v254 = vld [vmem:[%s0 + $0x798] sm:$0x7f]
  %v255 = vld [vmem:[%s0 + $0x7a0] sm:$0x7f]
  %v256 = vld [vmem:[%s0 + $0x7a8] sm:$0x7f]
  %v257 = vld [vmem:[%s0 + $0x7b0] sm:$0x7f]
  %v258 = vld [vmem:[%s0 + $0x7b8] sm:$0x7f]
  %v259 = vld [vmem:[%s0 + $0x7c0] sm:$0x7f]
  %v260 = vld [vmem:[%s0 + $0x7c8] sm:$0x7f]
  %v261 = vld [vmem:[%s0 + $0x7d0] sm:$0x7f]
  %v262 = vld [vmem:[%s0 + $0x7d8] sm:$0x7f]
  %v263 = vld [vmem:[%s0 + $0x7e0] sm:$0x7f]
  %v264 = vld [vmem:[%s0 + $0x7e8] sm:$0x7f]
  %v265 = vld [vmem:[%s0 + $0x7f0] sm:$0x7f]
  %v266 = vld [vmem:[%s0 + $0x7f8] sm:$0x7f]
  %v267 = vld [vmem:[%s0 + $0x800] sm:$0x7f]
  %v268 = vld [vmem:[%s0 + $0x808] sm:$0x7f]
  %v269 = vld [vmem:[%s0 + $0x810] sm:$0x7f]
  %v270 = vld [vmem:[%s0 + $0x818] sm:$0x7f]
  %v271 = vld [vmem:[%s0 + $0x820] sm:$0x7f]
  %v272 = vld [vmem:[%s0 + $0x828] sm:$0x7f]
  %v273 = vld [vmem:[%s0 + $0x830] sm:$0x7f]
  %v274 = vld [vmem:[%s0 + $0x838] sm:$0x7f]
  %v275 = vld [vmem:[%s0 + $0x840] sm:$0x7f]
  %v276 = vld [vmem:[%s0 + $0x848] sm:$0x7f]
  %v277 = vld [vmem:[%s0 + $0x850] sm:$0x7f]
  %v278 = vld [vmem:[%s0 + $0x858] sm:$0x7f]
  %v279 = vld [vmem:[%s0 + $0x860] sm:$0x7f]
  %v280 = vld [vmem:[%s0 + $0x868] sm:$0x7f]
  %v281 = vld [vmem:[%s0 + $0x870] sm:$0x7f]
  %v282 = vld [vmem:[%s0 + $0x878] sm:$0x7f]
  %v283 = vld [vmem:[%s0 + $0x880] sm:$0x7f]
  %v284 = vld [vmem:[%s0 + $0x888] sm:$0x7f]
  %v285 = vld [vmem:[%s0 + $0x890] sm:$0x7f]
  %v286 = vld [vmem:[%s0 + $0x898] sm:$0x7f]
  %v287 = vld [vmem:[%s0 + $0x8a0] sm:$0x7f]
  %v288 = vld [vmem:[%s0 + $0x8a8] sm:$0x7f]
  %v289 = vld [vmem:[%s0 + $0x8b0] sm:$0x7f]
  %v290 = vld [vmem:[%s0 + $0x8b8] sm:$0x7f]
  %v291 = vld [vmem:[%s0 + $0x8c0] sm:$0x7f]
  %v292 = vld [vmem:[%s0 + $0x8c8] sm:$0x7f]
  %v293 = vld [vmem:[%s0 + $0x8d0] sm:$0x7f]
  %v294 = vld [vmem:[%s0 + $0x8d8] sm:$0x7f]
  %v295 = vld [vmem:[%s0 + $0x8e0] sm:$0x7f]
  %v296 = vld [vmem:[%s0 + $0x8e8] sm:$0x7f]
  %v297 = vld [vmem:[%s0 + $0x8f0] sm:$0x7f]
  %v298 = vld [vmem:[%s0 + $0x8f8] sm:$0x7f]
  %v299 = vld [vmem:[%s0 + $0x900] sm:$0x7f]
  %v300 = vld [vmem:[%s0 + $0x908] sm:$0x7f]
  %v301 = vld [vmem:[%s0 + $0x910] sm:$0x7f]
  %v302 = vld [vmem:[%s0 + $0x918] sm:$0x7f]
  %v303 = vld [vmem:[%s0 + $0x920] sm:$0x7f]
  %v304 = vld [vmem:[%s0 + $0x928] sm:$0x7f]
  %v305 = vld [vmem:[%s0 + $0x930] sm:$0x7f]
  %v306 = vld [vmem:[%s0 + $0x938] sm:$0x7f]
  %v307 = vld [vmem:[%s0 + $0x940] sm:$0x7f]
  %v308 = vld [vmem:[%s0 + $0x948] sm:$0x7f]
  %v309 = vld [vmem:[%s0 + $0x950] sm:$0x7f]
  %v310 = vld [vmem:[%s0 + $0x958] sm:$0x7f]
  %v311 = vld [vmem:[%s0 + $0x960] sm:$0x7f]
  %v312 = vld [vmem:[%s0 + $0x968] sm:$0x7f]
  %v313 = vld [vmem:[%s0 + $0x970] sm:$0x7f]
  %v314 = vld [vmem:[%s0 + $0x978] sm:$0x7f]
  %v315 = vld [vmem:[%s0 + $0x980] sm:$0x7f]
  %v316 = vld [vmem:[%s0 + $0x988] sm:$0x7f]
  %v317 = vld [vmem:[%s0 + $0x990] sm:$0x7f]
  %v318 = vld [vmem:[%s0 + $0x998] sm:$0x7f]
  %v319 = vld [vmem:[%s0 + $0x9a0] sm:$0x7f]
  %v320 = vld [vmem:[%s0 + $0x9a8] sm:$0x7f]
  %v321 = vld [vmem:[%s0 + $0x9b0] sm:$0x7f]
  %v322 = vld [vmem:[%s0 + $0x9b8] sm:$0x7f]
  %v323 = vld [vmem:[%s0 + $0x9c0] sm:$0x7f]
  %v324 = vld [vmem:[%s0 + $0x9c8] sm:$0x7f]
  %v325 = vld [vmem:[%s0 + $0x9d0] sm:$0x7f]
  %v326 = vld [vmem:[%s0 + $0x9d8] sm:$0x7f]
  %v327 = vld [vmem:[%s0 + $0x9e0] sm:$0x7f]
  %v328 = vld [vmem:[%s0 + $0x9e8] sm:$0x7f]
  %v329 = vld [vmem:[%s0 + $0x9f0] sm:$0x7f]
  %v330 = vld [vmem:[%s0 + $0x9f8] sm:$0x7f]
  %v331 = vld [vmem:[%s0 + $0xa00] sm:$0x7f]
  %v332 = vld [vmem:[%s0 + $0xa08] sm:$0x7f]
  %v333 = vld [vmem:[%s0 + $0xa10] sm:$0x7f]
  %v334 = vld [vmem:[%s0 + $0xa18] sm:$0x7f]
  %v335 = vld [vmem:[%s0 + $0xa20] sm:$0x7f]
  %v336 = vld [vmem:[%s0 + $0xa28] sm:$0x7f]
  %v337 = vld [vmem:[%s0 + $0xa30] sm:$0x7f]
  %v338 = vld [vmem:[%s0 + $0xa38] sm:$0x7f]
  %v339 = vld [vmem:[%s0 + $0xa40] sm:$0x7f]
  %v340 = vld [vmem:[%s0 + $0xa48] sm:$0x7f]
  %v341 = vld [vmem:[%s0 + $0xa50] sm:$0x7f]
  %v342 = vld [vmem:[%s0 + $0xa58] sm:$0x7f]
  %v343 = vld [vmem:[%s0 + $0xa60] sm:$0x7f]
  %v344 = vld [vmem:[%s0 + $0xa68] sm:$0x7f]
  %v345 = vld [vmem:[%s0 + $0xa70] sm:$0x7f]
  %v346 = vld [vmem:[%s0 + $0xa78] sm:$0x7f]
  %v347 = vld [vmem:[%s0 + $0xa80] sm:$0x7f]
  %v348 = vld [vmem:[%s0 + $0xa88] sm:$0x7f]
  %v349 = vld [vmem:[%s0 + $0xa90] sm:$0x7f]
  %v350 = vld [vmem:[%s0 + $0xa98] sm:$0x7f]
  %v351 = vld [vmem:[%s0 + $0xaa0] sm:$0x7f]
  %v352 = vld [vmem:[%s0 + $0xaa8] sm:$0x7f]
  %v353 = vld [vmem:[%s0 + $0xab0] sm:$0x7f]
  %v354 = vld [vmem:[%s0 + $0xab8] sm:$0x7f]
  %v355 = vld [vmem:[%s0 + $0xac0] sm:$0x7f]
  %v356 = vld [vmem:[%s0 + $0xac8] sm:$0x7f]
  %v357 = vld [vmem:[%s0 + $0xad0] sm:$0x7f]
  %v358 = vld [vmem:[%s0 + $0xad8] sm:$0x7f]
  %v359 = vld [vmem:[%s0 + $0xae0] sm:$0x7f]
  %v360 = vld [vmem:[%s0 + $0xae8] sm:$0x7f]
  %v361 = vld [vmem:[%s0 + $0xaf0] sm:$0x7f]
  %v362 = vld [vmem:[%s0 + $0xaf8] sm:$0x7f]
  %v363 = vld [vmem:[%s0 + $0xb00] sm:$0x7f]
  %v364 = vld [vmem:[%s0 + $0xb08] sm:$0x7f]
  %v365 = vld [vmem:[%s0 + $0xb10] sm:$0x7f]
  %v366 = vld [vmem:[%s0 + $0xb18] sm:$0x7f]
  %v367 = vld [vmem:[%s0 + $0xb20] sm:$0x7f]
  %v368 = vld [vmem:[%s0 + $0xb28] sm:$0x7f]
  %v369 = vld [vmem:[%s0 + $0xb30] sm:$0x7f]
  %v370 = vld [vmem:[%s0 + $0xb38] sm:$0x7f]
  %v371 = vld [vmem:[%s0 + $0xb40] sm:$0x7f]
  %v372 = vld [vmem:[%s0 + $0xb48] sm:$0x7f]
  %v373 = vld [vmem:[%s0 + $0xb50] sm:$0x7f]
  %v374 = vld [vmem:[%s0 + $0xb58] sm:$0x7f]
  %v375 = vld [vmem:[%s0 + $0xb60] sm:$0x7f]
  %v376 = vld [vmem:[%s0 + $0xb68] sm:$0x7f]
  %v377 = vld [vmem:[%s0 + $0xb70] sm:$0x7f]
  %v378 = vld [vmem:[%s0 + $0xb78] sm:$0x7f]
  %v379 = vld [vmem:[%s0 + $0xb80] sm:$0x7f]
  %v380 = vld [vmem:[%s0 + $0xb88] sm:$0x7f]
  %v381 = vld [vmem:[%s0 + $0xb90] sm:$0x7f]
  %v382 = vld [vmem:[%s0 + $0xb98] sm:$0x7f]
  %v383 = vld [vmem:[%s0 + $0xba0] sm:$0x7f]
  %v384 = vld [vmem:[%s0 + $0xba8] sm:$0x7f]
  %v385 = vld [vmem:[%s0 + $0xbb0] sm:$0x7f]
  %v386 = vld [vmem:[%s0 + $0xbb8] sm:$0x7f]
  %v387 = vld [vmem:[%s0 + $0xbc0] sm:$0x7f]
  %v388 = vld [vmem:[%s0 + $0xbc8] sm:$0x7f]
  %v389 = vld [vmem:[%s0 + $0xbd0] sm:$0x7f]
  %v390 = vld [vmem:[%s0 + $0xbd8] sm:$0x7f]
  %v391 = vld [vmem:[%s0 + $0xbe0] sm:$0x7f]
  %v392 = vld [vmem:[%s0 + $0xbe8] sm:$0x7f]
  %v393 = vld [vmem:[%s0 + $0xbf0] sm:$0x7f]
  %v394 = vld [vmem:[%s0 + $0xbf8] sm:$0x7f]
  %v395 = vld [vmem:[%s0 + $0xc00] sm:$0x7f]
  %v396 = vld [vmem:[%s0 + $0xc08] sm:$0x7f]
  %v397 = vld [vmem:[%s0 + $0xc10] sm:$0x7f]
  %v398 = vld [vmem:[%s0 + $0xc18] sm:$0x7f]
  %v399 = vld [vmem:[%s0 + $0xc20] sm:$0x7f]
  %v400 = vld [vmem:[%s0 + $0xc28] sm:$0x7f]
  %v401 = vld [vmem:[%s0 + $0xc30] sm:$0x7f]
  %v402 = vld [vmem:[%s0 + $0xc38] sm:$0x7f]
  %v403 = vld [vmem:[%s0 + $0xc40] sm:$0x7f]
  %v404 = vld [vmem:[%s0 + $0xc48] sm:$0x7f]
  %v405 = vld [vmem:[%s0 + $0xc50] sm:$0x7f]
  %v406 = vld [vmem:[%s0 + $0xc58] sm:$0x7f]
  %v407 = vld [vmem:[%s0 + $0xc60] sm:$0x7f]
  %v408 = vld [vmem:[%s0 + $0xc68] sm:$0x7f]
  %v409 = vld [vmem:[%s0 + $0xc70] sm:$0x7f]
  %v410 = vld [vmem:[%s0 + $0xc78] sm:$0x7f]
  %v411 = vld [vmem:[%s0 + $0xc80] sm:$0x7f]
  %v412 = vld [vmem:[%s0 + $0xc88] sm:$0x7f]
  %v413 = vld [vmem:[%s0 + $0xc90] sm:$0x7f]
  %v414 = vld [vmem:[%s0 + $0xc98] sm:$0x7f]
  %v415 = vld [vmem:[%s0 + $0xca0] sm:$0x7f]
  %v416 = vld [vmem:[%s0 + $0xca8] sm:$0x7f]
  %v417 = vld [vmem:[%s0 + $0xcb0] sm:$0x7f]
  %v418 = vld [vmem:[%s0 + $0xcb8] sm:$0x7f]
  %v419 = vld [vmem:[%s0 + $0xcc0] sm:$0x7f]
  %v420 = vld [vmem:[%s0 + $0xcc8] sm:$0x7f]
  %v421 = vld [vmem:[%s0 + $0xcd0] sm:$0x7f]
  %v422 = vld [vmem:[%s0 + $0xcd8] sm:$0x7f]
  %v423 = vld [vmem:[%s0 + $0xce0] sm:$0x7f]
  %v424 = vld [vmem:[%s0 + $0xce8] sm:$0x7f]
  %v425 = vld [vmem:[%s0 + $0xcf0] sm:$0x7f]
  %v426 = vld [vmem:[%s0 + $0xcf8] sm:$0x7f]
  %v427 = vld [vmem:[%s0 + $0xd00] sm:$0x7f]
  %v428 = vld [vmem:[%s0 + $0xd08] sm:$0x7f]
  %v429 = vld [vmem:[%s0 + $0xd10] sm:$0x7f]
  %v430 = vld [vmem:[%s0 + $0xd18] sm:$0x7f]
  %v431 = vld [vmem:[%s0 + $0xd20] sm:$0x7f]
  %v432 = vld [vmem:[%s0 + $0xd28] sm:$0x7f]
  %v433 = vld [vmem:[%s0 + $0xd30] sm:$0x7f]
  %v434 = vld [vmem:[%s0 + $0xd38] sm:$0x7f]
  %v435 = vld [vmem:[%s0 + $0xd40] sm:$0x7f]
  %v436 = vld [vmem:[%s0 + $0xd48] sm:$0x7f]
  %v437 = vld [vmem:[%s0 + $0xd50] sm:$0x7f]
  %v438 = vld [vmem:[%s0 + $0xd58] sm:$0x7f]
  %v439 = vld [vmem:[%s0 + $0xd60] sm:$0x7f]
  %v440 = vld [vmem:[%s0 + $0xd68] sm:$0x7f]
  %v441 = vld [vmem:[%s0 + $0xd70] sm:$0x7f]
  %v442 = vld [vmem:[%s0 + $0xd78] sm:$0x7f]
  %v443 = vld [vmem:[%s0 + $0xd80] sm:$0x7f]
  %v444 = vld [vmem:[%s0 + $0xd88] sm:$0x7f]
  %v445 = vld [vmem:[%s0 + $0xd90] sm:$0x7f]
  %v446 = vld [vmem:[%s0 + $0xd98] sm:$0x7f]
  %v447 = vld [vmem:[%s0 + $0xda0] sm:$0x7f]
  %v448 = vld [vmem:[%s0 + $0xda8] sm:$0x7f]
  %v449 = vld [vmem:[%s0 + $0xdb0] sm:$0x7f]
  %v450 = vld [vmem:[%s0 + $0xdb8] sm:$0x7f]
  %v451 = vld [vmem:[%s0 + $0xdc0] sm:$0x7f]
  %v452 = vld [vmem:[%s0 + $0xdc8] sm:$0x7f]
  %v453 = vld [vmem:[%s0 + $0xdd0] sm:$0x7f]
  %v454 = vld [vmem:[%s0 + $0xdd8] sm:$0x7f]
  %v455 = vld [vmem:[%s0 + $0xde0] sm:$0x7f]
  %v456 = vld [vmem:[%s0 + $0xde8] sm:$0x7f]
  %v457 = vld [vmem:[%s0 + $0xdf0] sm:$0x7f]
  %v458 = vld [vmem:[%s0 + $0xdf8] sm:$0x7f]
  %v459 = vld [vmem:[%s0 + $0xe00] sm:$0x7f]
  %v460 = vld [vmem:[%s0 + $0xe08] sm:$0x7f]
  %v461 = vld [vmem:[%s0 + $0xe10] sm:$0x7f]
  %v462 = vld [vmem:[%s0 + $0xe18] sm:$0x7f]
  %v463 = vld [vmem:[%s0 + $0xe20] sm:$0x7f]
  %v464 = vld [vmem:[%s0 + $0xe28] sm:$0x7f]
  %v465 = vld [vmem:[%s0 + $0xe30] sm:$0x7f]
  %v466 = vld [vmem:[%s0 + $0xe38] sm:$0x7f]
  %v467 = vld [vmem:[%s0 + $0xe40] sm:$0x7f]
  %v468 = vld [vmem:[%s0 + $0xe48] sm:$0x7f]
  %v469 = vld [vmem:[%s0 + $0xe50] sm:$0x7f]
  %v470 = vld [vmem:[%s0 + $0xe58] sm:$0x7f]
  %v471 = vld [vmem:[%s0 + $0xe60] sm:$0x7f]
  %v472 = vld [vmem:[%s0 + $0xe68] sm:$0x7f]
  %v473 = vld [vmem:[%s0 + $0xe70] sm:$0x7f]
  %v474 = vld [vmem:[%s0 + $0xe78] sm:$0x7f]
  %v475 = vld [vmem:[%s0 + $0xe80] sm:$0x7f]
  %v476 = vld [vmem:[%s0 + $0xe88] sm:$0x7f]
  %v477 = vld [vmem:[%s0 + $0xe90] sm:$0x7f]
  %v478 = vld [vmem:[%s0 + $0xe98] sm:$0x7f]
  %v479 = vld [vmem:[%s0 + $0xea0] sm:$0x7f]
  %v480 = vld [vmem:[%s0 + $0xea8] sm:$0x7f]
  %v481 = vld [vmem:[%s0 + $0xeb0] sm:$0x7f]
  %v482 = vld [vmem:[%s0 + $0xeb8] sm:$0x7f]
  %v483 = vld [vmem:[%s0 + $0xec0] sm:$0x7f]
  %v484 = vld [vmem:[%s0 + $0xec8] sm:$0x7f]
  %v485 = vld [vmem:[%s0 + $0xed0] sm:$0x7f]
  %v486 = vld [vmem:[%s0 + $0xed8] sm:$0x7f]
  %v487 = vld [vmem:[%s0 + $0xee0] sm:$0x7f]
  %v488 = vld [vmem:[%s0 + $0xee8] sm:$0x7f]
  %v489 = vld [vmem:[%s0 + $0xef0] sm:$0x7f]
  %v490 = vld [vmem:[%s0 + $0xef8] sm:$0x7f]
  %v491 = vld [vmem:[%s0 + $0xf00] sm:$0x7f]
  %v492 = vld [vmem:[%s0 + $0xf08] sm:$0x7f]
  %v493 = vld [vmem:[%s0 + $0xf10] sm:$0x7f]
  %v494 = vld [vmem:[%s0 + $0xf18] sm:$0x7f]
  %v495 = vld [vmem:[%s0 + $0xf20] sm:$0x7f]
  %v496 = vld [vmem:[%s0 + $0xf28] sm:$0x7f]
  %v497 = vld [vmem:[%s0 + $0xf30] sm:$0x7f]
  %v498 = vld [vmem:[%s0 + $0xf38] sm:$0x7f]
  %v499 = vld [vmem:[%s0 + $0xf40] sm:$0x7f]
  %v500 = vld [vmem:[%s0 + $0xf48] sm:$0x7f]
  %v501 = vld [vmem:[%s0 + $0xf50] sm:$0x7f]
  %v502 = vld [vmem:[%s0 + $0xf58] sm:$0x7f]
  %v503 = vld [vmem:[%s0 + $0xf60] sm:$0x7f]
  %v504 = vld [vmem:[%s0 + $0xf68] sm:$0x7f]
  %v505 = vld [vmem:[%s0 + $0xf70] sm:$0x7f]
  %v506 = vld [vmem:[%s0 + $0xf78] sm:$0x7f]
  %v507 = vld [vmem:[%s0 + $0xf80] sm:$0x7f]
  %v508 = vld [vmem:[%s0 + $0xf88] sm:$0x7f]
  %v509 = vld [vmem:[%s0 + $0xf90] sm:$0x7f]
  %v510 = vld [vmem:[%s0 + $0xf98] sm:$0x7f]
  %v511 = vld [vmem:[%s0 + $0xfa0] sm:$0x7f]
  %v512 = vld [vmem:[%s0 + $0xfa8] sm:$0x7f]
  %v513 = vld [vmem:[%s0 + $0xfb0] sm:$0x7f]
  %v514 = vld [vmem:[%s0 + $0xfb8] sm:$0x7f]
  %v515 = vld [vmem:[%s0 + $0xfc0] sm:$0x7f]
  %v516 = vld [vmem:[%s0 + $0xfc8] sm:$0x7f]
  %v517 = vld [vmem:[%s0 + $0xfd0] sm:$0x7f]
  %v518 = vld [vmem:[%s0 + $0xfd8] sm:$0x7f]
  %v519 = vld [vmem:[%s0 + $0xfe0] sm:$0x7f]
  %v520 = vld [vmem:[%s0 + $0xfe8] sm:$0x7f]
  %v521 = vld [vmem:[%s0 + $0xff0] sm:$0x7f]
  %v522 = vld [vmem:[%s0 + $0xff8] sm:$0x7f]
  %v523 = vld [vmem:[%s1] sm:$0x7f]
  %v524 = vld [vmem:[%s1 + $0x8] sm:$0x7f]
  %v525 = vld [vmem:[%s1 + $0x10] sm:$0x7f]
  %v526 = vld [vmem:[%s1 + $0x18] sm:$0x7f]
  %v527 = vld [vmem:[%s1 + $0x20] sm:$0x7f]
  %v528 = vld [vmem:[%s1 + $0x28] sm:$0x7f]
  %v529 = vld [vmem:[%s1 + $0x30] sm:$0x7f]
  %v530 = vld [vmem:[%s1 + $0x38] sm:$0x7f]
  %v531 = vld [vmem:[%s1 + $0x40] sm:$0x7f]
  %v532 = vld [vmem:[%s1 + $0x48] sm:$0x7f]
  %v533 = vld [vmem:[%s1 + $0x50] sm:$0x7f]
  %v534 = vld [vmem:[%s1 + $0x58] sm:$0x7f]
  %v535 = vld [vmem:[%s1 + $0x60] sm:$0x7f]
  %v536 = vld [vmem:[%s1 + $0x68] sm:$0x7f]
  %v537 = vld [vmem:[%s1 + $0x70] sm:$0x7f]
  %v538 = vld [vmem:[%s1 + $0x78] sm:$0x7f]
  %v539 = vld [vmem:[%s1 + $0x80] sm:$0x7f]
  %v540 = vld [vmem:[%s1 + $0x88] sm:$0x7f]
  %v541 = vld [vmem:[%s1 + $0x90] sm:$0x7f]
  %v542 = vld [vmem:[%s1 + $0x98] sm:$0x7f]
  %v543 = vld [vmem:[%s1 + $0xa0] sm:$0x7f]
  %v544 = vld [vmem:[%s1 + $0xa8] sm:$0x7f]
  %v545 = vld [vmem:[%s1 + $0xb0] sm:$0x7f]
  %v546 = vld [vmem:[%s1 + $0xb8] sm:$0x7f]
  %v547 = vld [vmem:[%s1 + $0xc0] sm:$0x7f]
  %v548 = vld [vmem:[%s1 + $0xc8] sm:$0x7f]
  %v549 = vld [vmem:[%s1 + $0xd0] sm:$0x7f]
  %v550 = vld [vmem:[%s1 + $0xd8] sm:$0x7f]
  %v551 = vld [vmem:[%s1 + $0xe0] sm:$0x7f]
  %v552 = vld [vmem:[%s1 + $0xe8] sm:$0x7f]
  %v553 = vld [vmem:[%s1 + $0xf0] sm:$0x7f]
  %v554 = vld [vmem:[%s1 + $0xf8] sm:$0x7f]
  %v555 = vld [vmem:[%s1 + $0x100] sm:$0x7f]
  %v556 = vld [vmem:[%s1 + $0x108] sm:$0x7f]
  %v557 = vld [vmem:[%s1 + $0x110] sm:$0x7f]
  %v558 = vld [vmem:[%s1 + $0x118] sm:$0x7f]
  %v559 = vld [vmem:[%s1 + $0x120] sm:$0x7f]
  %v560 = vld [vmem:[%s1 + $0x128] sm:$0x7f]
  %v561 = vld [vmem:[%s1 + $0x130] sm:$0x7f]
  %v562 = vld [vmem:[%s1 + $0x138] sm:$0x7f]
  %v563 = vld [vmem:[%s1 + $0x140] sm:$0x7f]
  %v564 = vld [vmem:[%s1 + $0x148] sm:$0x7f]
  %v565 = vld [vmem:[%s1 + $0x150] sm:$0x7f]
  %v566 = vld [vmem:[%s1 + $0x158] sm:$0x7f]
  %v567 = vld [vmem:[%s1 + $0x160] sm:$0x7f]
  %v568 = vld [vmem:[%s1 + $0x168] sm:$0x7f]
  %v569 = vld [vmem:[%s1 + $0x170] sm:$0x7f]
  %v570 = vld [vmem:[%s1 + $0x178] sm:$0x7f]
  %v571 = vld [vmem:[%s1 + $0x180] sm:$0x7f]
  %v572 = vld [vmem:[%s1 + $0x188] sm:$0x7f]
  %v573 = vld [vmem:[%s1 + $0x190] sm:$0x7f]
  %v574 = vld [vmem:[%s1 + $0x198] sm:$0x7f]
  %v575 = vld [vmem:[%s1 + $0x1a0] sm:$0x7f]
  %v576 = vld [vmem:[%s1 + $0x1a8] sm:$0x7f]
  %v577 = vld [vmem:[%s1 + $0x1b0] sm:$0x7f]
  %v578 = vld [vmem:[%s1 + $0x1b8] sm:$0x7f]
  %v579 = vld [vmem:[%s1 + $0x1c0] sm:$0x7f]
  %v580 = vld [vmem:[%s1 + $0x1c8] sm:$0x7f]
  %v581 = vld [vmem:[%s1 + $0x1d0] sm:$0x7f]
  %v582 = vld [vmem:[%s1 + $0x1d8] sm:$0x7f]
  %v583 = vld [vmem:[%s1 + $0x1e0] sm:$0x7f]
  %v584 = vld [vmem:[%s1 + $0x1e8] sm:$0x7f]
  %v585 = vld [vmem:[%s1 + $0x1f0] sm:$0x7f]
  %v586 = vld [vmem:[%s1 + $0x1f8] sm:$0x7f]
  %v587 = vld [vmem:[%s1 + $0x200] sm:$0x7f]
  %v588 = vld [vmem:[%s1 + $0x208] sm:$0x7f]
  %v589 = vld [vmem:[%s1 + $0x210] sm:$0x7f]
  %v590 = vld [vmem:[%s1 + $0x218] sm:$0x7f]
  %v591 = vld [vmem:[%s1 + $0x220] sm:$0x7f]
  %v592 = vld [vmem:[%s1 + $0x228] sm:$0x7f]
  %v593 = vld [vmem:[%s1 + $0x230] sm:$0x7f]
  %v594 = vld [vmem:[%s1 + $0x238] sm:$0x7f]
  %v595 = vld [vmem:[%s1 + $0x240] sm:$0x7f]
  %v596 = vld [vmem:[%s1 + $0x248] sm:$0x7f]
  %v597 = vld [vmem:[%s1 + $0x250] sm:$0x7f]
  %v598 = vld [vmem:[%s1 + $0x258] sm:$0x7f]
  %v599 = vld [vmem:[%s1 + $0x260] sm:$0x7f]
  %v600 = vld [vmem:[%s1 + $0x268] sm:$0x7f]
  %v601 = vld [vmem:[%s1 + $0x270] sm:$0x7f]
  %v602 = vld [vmem:[%s1 + $0x278] sm:$0x7f]
  %v603 = vld [vmem:[%s1 + $0x280] sm:$0x7f]
  %v604 = vld [vmem:[%s1 + $0x288] sm:$0x7f]
  %v605 = vld [vmem:[%s1 + $0x290] sm:$0x7f]
  %v606 = vld [vmem:[%s1 + $0x298] sm:$0x7f]
  %v607 = vld [vmem:[%s1 + $0x2a0] sm:$0x7f]
  %v608 = vld [vmem:[%s1 + $0x2a8] sm:$0x7f]
  %v609 = vld [vmem:[%s1 + $0x2b0] sm:$0x7f]
  %v610 = vld [vmem:[%s1 + $0x2b8] sm:$0x7f]
  %v611 = vld [vmem:[%s1 + $0x2c0] sm:$0x7f]
  %v612 = vld [vmem:[%s1 + $0x2c8] sm:$0x7f]
  %v613 = vld [vmem:[%s1 + $0x2d0] sm:$0x7f]
  %v614 = vld [vmem:[%s1 + $0x2d8] sm:$0x7f]
  %v615 = vld [vmem:[%s1 + $0x2e0] sm:$0x7f]
  %v616 = vld [vmem:[%s1 + $0x2e8] sm:$0x7f]
  %v617 = vld [vmem:[%s1 + $0x2f0] sm:$0x7f]
  %v618 = vld [vmem:[%s1 + $0x2f8] sm:$0x7f]
  %v619 = vld [vmem:[%s1 + $0x300] sm:$0x7f]
  %v620 = vld [vmem:[%s1 + $0x308] sm:$0x7f]
  %v621 = vld [vmem:[%s1 + $0x310] sm:$0x7f]
  %v622 = vld [vmem:[%s1 + $0x318] sm:$0x7f]
  %v623 = vld [vmem:[%s1 + $0x320] sm:$0x7f]
  %v624 = vld [vmem:[%s1 + $0x328] sm:$0x7f]
  %v625 = vld [vmem:[%s1 + $0x330] sm:$0x7f]
  %v626 = vld [vmem:[%s1 + $0x338] sm:$0x7f]
  %v627 = vld [vmem:[%s1 + $0x340] sm:$0x7f]
  %v628 = vld [vmem:[%s1 + $0x348] sm:$0x7f]
  %v629 = vld [vmem:[%s1 + $0x350] sm:$0x7f]
  %v630 = vld [vmem:[%s1 + $0x358] sm:$0x7f]
  %v631 = vld [vmem:[%s1 + $0x360] sm:$0x7f]
  %v632 = vld [vmem:[%s1 + $0x368] sm:$0x7f]
  %v633 = vld [vmem:[%s1 + $0x370] sm:$0x7f]
  %v634 = vld [vmem:[%s1 + $0x378] sm:$0x7f]
  %v635 = vld [vmem:[%s1 + $0x380] sm:$0x7f]
  %v636 = vld [vmem:[%s1 + $0x388] sm:$0x7f]
  %v637 = vld [vmem:[%s1 + $0x390] sm:$0x7f]
  %v638 = vld [vmem:[%s1 + $0x398] sm:$0x7f]
  %v639 = vld [vmem:[%s1 + $0x3a0] sm:$0x7f]
  %v640 = vld [vmem:[%s1 + $0x3a8] sm:$0x7f]
  %v641 = vld [vmem:[%s1 + $0x3b0] sm:$0x7f]
  %v642 = vld [vmem:[%s1 + $0x3b8] sm:$0x7f]
  %v643 = vld [vmem:[%s1 + $0x3c0] sm:$0x7f]
  %v644 = vld [vmem:[%s1 + $0x3c8] sm:$0x7f]
  %v645 = vld [vmem:[%s1 + $0x3d0] sm:$0x7f]
  %v646 = vld [vmem:[%s1 + $0x3d8] sm:$0x7f]
  %v647 = vld [vmem:[%s1 + $0x3e0] sm:$0x7f]
  %v648 = vld [vmem:[%s1 + $0x3e8] sm:$0x7f]
  %v649 = vld [vmem:[%s1 + $0x3f0] sm:$0x7f]
  %v650 = vld [vmem:[%s1 + $0x3f8] sm:$0x7f]
  %v651 = vld [vmem:[%s1 + $0x400] sm:$0x7f]
  %v652 = vld [vmem:[%s1 + $0x408] sm:$0x7f]
  %v653 = vld [vmem:[%s1 + $0x410] sm:$0x7f]
  %v654 = vld [vmem:[%s1 + $0x418] sm:$0x7f]
  %v655 = vld [vmem:[%s1 + $0x420] sm:$0x7f]
  %v656 = vld [vmem:[%s1 + $0x428] sm:$0x7f]
  %v657 = vld [vmem:[%s1 + $0x430] sm:$0x7f]
  %v658 = vld [vmem:[%s1 + $0x438] sm:$0x7f]
  %v659 = vld [vmem:[%s1 + $0x440] sm:$0x7f]
  %v660 = vld [vmem:[%s1 + $0x448] sm:$0x7f]
  %v661 = vld [vmem:[%s1 + $0x450] sm:$0x7f]
  %v662 = vld [vmem:[%s1 + $0x458] sm:$0x7f]
  %v663 = vld [vmem:[%s1 + $0x460] sm:$0x7f]
  %v664 = vld [vmem:[%s1 + $0x468] sm:$0x7f]
  %v665 = vld [vmem:[%s1 + $0x470] sm:$0x7f]
  %v666 = vld [vmem:[%s1 + $0x478] sm:$0x7f]
  %v667 = vld [vmem:[%s1 + $0x480] sm:$0x7f]
  %v668 = vld [vmem:[%s1 + $0x488] sm:$0x7f]
  %v669 = vld [vmem:[%s1 + $0x490] sm:$0x7f]
  %v670 = vld [vmem:[%s1 + $0x498] sm:$0x7f]
  %v671 = vld [vmem:[%s1 + $0x4a0] sm:$0x7f]
  %v672 = vld [vmem:[%s1 + $0x4a8] sm:$0x7f]
  %v673 = vld [vmem:[%s1 + $0x4b0] sm:$0x7f]
  %v674 = vld [vmem:[%s1 + $0x4b8] sm:$0x7f]
  %v675 = vld [vmem:[%s1 + $0x4c0] sm:$0x7f]
  %v676 = vld [vmem:[%s1 + $0x4c8] sm:$0x7f]
  %v677 = vld [vmem:[%s1 + $0x4d0] sm:$0x7f]
  %v678 = vld [vmem:[%s1 + $0x4d8] sm:$0x7f]
  %v679 = vld [vmem:[%s1 + $0x4e0] sm:$0x7f]
  %v680 = vld [vmem:[%s1 + $0x4e8] sm:$0x7f]
  %v681 = vld [vmem:[%s1 + $0x4f0] sm:$0x7f]
  %v682 = vld [vmem:[%s1 + $0x4f8] sm:$0x7f]
  %v683 = vld [vmem:[%s1 + $0x500] sm:$0x7f]
  %v684 = vld [vmem:[%s1 + $0x508] sm:$0x7f]
  %v685 = vld [vmem:[%s1 + $0x510] sm:$0x7f]
  %v686 = vld [vmem:[%s1 + $0x518] sm:$0x7f]
  %v687 = vld [vmem:[%s1 + $0x520] sm:$0x7f]
  %v688 = vld [vmem:[%s1 + $0x528] sm:$0x7f]
  %v689 = vld [vmem:[%s1 + $0x530] sm:$0x7f]
  %v690 = vld [vmem:[%s1 + $0x538] sm:$0x7f]
  %v691 = vld [vmem:[%s1 + $0x540] sm:$0x7f]
  %v692 = vld [vmem:[%s1 + $0x548] sm:$0x7f]
  %v693 = vld [vmem:[%s1 + $0x550] sm:$0x7f]
  %v694 = vld [vmem:[%s1 + $0x558] sm:$0x7f]
  %v695 = vld [vmem:[%s1 + $0x560] sm:$0x7f]
  %v696 = vld [vmem:[%s1 + $0x568] sm:$0x7f]
  %v697 = vld [vmem:[%s1 + $0x570] sm:$0x7f]
  %v698 = vld [vmem:[%s1 + $0x578] sm:$0x7f]
  %v699 = vld [vmem:[%s1 + $0x580] sm:$0x7f]
  %v700 = vld [vmem:[%s1 + $0x588] sm:$0x7f]
  %v701 = vld [vmem:[%s1 + $0x590] sm:$0x7f]
  %v702 = vld [vmem:[%s1 + $0x598] sm:$0x7f]
  %v703 = vld [vmem:[%s1 + $0x5a0] sm:$0x7f]
  %v704 = vld [vmem:[%s1 + $0x5a8] sm:$0x7f]
  %v705 = vld [vmem:[%s1 + $0x5b0] sm:$0x7f]
  %v706 = vld [vmem:[%s1 + $0x5b8] sm:$0x7f]
  %v707 = vld [vmem:[%s1 + $0x5c0] sm:$0x7f]
  %v708 = vld [vmem:[%s1 + $0x5c8] sm:$0x7f]
  %v709 = vld [vmem:[%s1 + $0x5d0] sm:$0x7f]
  %v710 = vld [vmem:[%s1 + $0x5d8] sm:$0x7f]
  %v711 = vld [vmem:[%s1 + $0x5e0] sm:$0x7f]
  %v712 = vld [vmem:[%s1 + $0x5e8] sm:$0x7f]
  %v713 = vld [vmem:[%s1 + $0x5f0] sm:$0x7f]
  %v714 = vld [vmem:[%s1 + $0x5f8] sm:$0x7f]
  %v715 = vld [vmem:[%s1 + $0x600] sm:$0x7f]
  %v716 = vld [vmem:[%s1 + $0x608] sm:$0x7f]
  %v717 = vld [vmem:[%s1 + $0x610] sm:$0x7f]
  %v718 = vld [vmem:[%s1 + $0x618] sm:$0x7f]
  %v719 = vld [vmem:[%s1 + $0x620] sm:$0x7f]
  %v720 = vld [vmem:[%s1 + $0x628] sm:$0x7f]
  %v721 = vld [vmem:[%s1 + $0x630] sm:$0x7f]
  %v722 = vld [vmem:[%s1 + $0x638] sm:$0x7f]
  %v723 = vld [vmem:[%s1 + $0x640] sm:$0x7f]
  %v724 = vld [vmem:[%s1 + $0x648] sm:$0x7f]
  %v725 = vld [vmem:[%s1 + $0x650] sm:$0x7f]
  %v726 = vld [vmem:[%s1 + $0x658] sm:$0x7f]
  %v727 = vld [vmem:[%s1 + $0x660] sm:$0x7f]
  %v728 = vld [vmem:[%s1 + $0x668] sm:$0x7f]
  %v729 = vld [vmem:[%s1 + $0x670] sm:$0x7f]
  %v730 = vld [vmem:[%s1 + $0x678] sm:$0x7f]
  %v731 = vld [vmem:[%s1 + $0x680] sm:$0x7f]
  %v732 = vld [vmem:[%s1 + $0x688] sm:$0x7f]
  %v733 = vld [vmem:[%s1 + $0x690] sm:$0x7f]
  %v734 = vld [vmem:[%s1 + $0x698] sm:$0x7f]
  %v735 = vld [vmem:[%s1 + $0x6a0] sm:$0x7f]
  %v736 = vld [vmem:[%s1 + $0x6a8] sm:$0x7f]
  %v737 = vld [vmem:[%s1 + $0x6b0] sm:$0x7f]
  %v738 = vld [vmem:[%s1 + $0x6b8] sm:$0x7f]
  %v739 = vld [vmem:[%s1 + $0x6c0] sm:$0x7f]
  %v740 = vld [vmem:[%s1 + $0x6c8] sm:$0x7f]
  %v741 = vld [vmem:[%s1 + $0x6d0] sm:$0x7f]
  %v742 = vld [vmem:[%s1 + $0x6d8] sm:$0x7f]
  %v743 = vld [vmem:[%s1 + $0x6e0] sm:$0x7f]
  %v744 = vld [vmem:[%s1 + $0x6e8] sm:$0x7f]
  %v745 = vld [vmem:[%s1 + $0x6f0] sm:$0x7f]
  %v746 = vld [vmem:[%s1 + $0x6f8] sm:$0x7f]
  %v747 = vld [vmem:[%s1 + $0x700] sm:$0x7f]
  %v748 = vld [vmem:[%s1 + $0x708] sm:$0x7f]
  %v749 = vld [vmem:[%s1 + $0x710] sm:$0x7f]
  %v750 = vld [vmem:[%s1 + $0x718] sm:$0x7f]
  %v751 = vld [vmem:[%s1 + $0x720] sm:$0x7f]
  %v752 = vld [vmem:[%s1 + $0x728] sm:$0x7f]
  %v753 = vld [vmem:[%s1 + $0x730] sm:$0x7f]
  %v754 = vld [vmem:[%s1 + $0x738] sm:$0x7f]
  %v755 = vld [vmem:[%s1 + $0x740] sm:$0x7f]
  %v756 = vld [vmem:[%s1 + $0x748] sm:$0x7f]
  %v757 = vld [vmem:[%s1 + $0x750] sm:$0x7f]
  %v758 = vld [vmem:[%s1 + $0x758] sm:$0x7f]
  %v759 = vld [vmem:[%s1 + $0x760] sm:$0x7f]
  %v760 = vld [vmem:[%s1 + $0x768] sm:$0x7f]
  %v761 = vld [vmem:[%s1 + $0x770] sm:$0x7f]
  %v762 = vld [vmem:[%s1 + $0x778] sm:$0x7f]
  %v763 = vld [vmem:[%s1 + $0x780] sm:$0x7f]
  %v764 = vld [vmem:[%s1 + $0x788] sm:$0x7f]
  %v765 = vld [vmem:[%s1 + $0x790] sm:$0x7f]
  %v766 = vld [vmem:[%s1 + $0x798] sm:$0x7f]
  %v767 = vld [vmem:[%s1 + $0x7a0] sm:$0x7f]
  %v768 = vld [vmem:[%s1 + $0x7a8] sm:$0x7f]
  %v769 = vld [vmem:[%s1 + $0x7b0] sm:$0x7f]
  %v770 = vld [vmem:[%s1 + $0x7b8] sm:$0x7f]
  %v771 = vld [vmem:[%s1 + $0x7c0] sm:$0x7f]
  %v772 = vld [vmem:[%s1 + $0x7c8] sm:$0x7f]
  %v773 = vld [vmem:[%s1 + $0x7d0] sm:$0x7f]
  %v774 = vld [vmem:[%s1 + $0x7d8] sm:$0x7f]
  %v775 = vld [vmem:[%s1 + $0x7e0] sm:$0x7f]
  %v776 = vld [vmem:[%s1 + $0x7e8] sm:$0x7f]
  %v777 = vld [vmem:[%s1 + $0x7f0] sm:$0x7f]
  %v778 = vld [vmem:[%s1 + $0x7f8] sm:$0x7f]
  %v779 = vld [vmem:[%s1 + $0x800] sm:$0x7f]
  %v780 = vld [vmem:[%s1 + $0x808] sm:$0x7f]
  %v781 = vld [vmem:[%s1 + $0x810] sm:$0x7f]
  %v782 = vld [vmem:[%s1 + $0x818] sm:$0x7f]
  %v783 = vld [vmem:[%s1 + $0x820] sm:$0x7f]
  %v784 = vld [vmem:[%s1 + $0x828] sm:$0x7f]
  %v785 = vld [vmem:[%s1 + $0x830] sm:$0x7f]
  %v786 = vld [vmem:[%s1 + $0x838] sm:$0x7f]
  %v787 = vld [vmem:[%s1 + $0x840] sm:$0x7f]
  %v788 = vld [vmem:[%s1 + $0x848] sm:$0x7f]
  %v789 = vld [vmem:[%s1 + $0x850] sm:$0x7f]
  %v790 = vld [vmem:[%s1 + $0x858] sm:$0x7f]
  %v791 = vld [vmem:[%s1 + $0x860] sm:$0x7f]
  %v792 = vld [vmem:[%s1 + $0x868] sm:$0x7f]
  %v793 = vld [vmem:[%s1 + $0x870] sm:$0x7f]
  %v794 = vld [vmem:[%s1 + $0x878] sm:$0x7f]
  %v795 = vld [vmem:[%s1 + $0x880] sm:$0x7f]
  %v796 = vld [vmem:[%s1 + $0x888] sm:$0x7f]
  %v797 = vld [vmem:[%s1 + $0x890] sm:$0x7f]
  %v798 = vld [vmem:[%s1 + $0x898] sm:$0x7f]
  %v799 = vld [vmem:[%s1 + $0x8a0] sm:$0x7f]
  %v800 = vld [vmem:[%s1 + $0x8a8] sm:$0x7f]
  %v801 = vld [vmem:[%s1 + $0x8b0] sm:$0x7f]
  %v802 = vld [vmem:[%s1 + $0x8b8] sm:$0x7f]
  %v803 = vld [vmem:[%s1 + $0x8c0] sm:$0x7f]
  %v804 = vld [vmem:[%s1 + $0x8c8] sm:$0x7f]
  %v805 = vld [vmem:[%s1 + $0x8d0] sm:$0x7f]
  %v806 = vld [vmem:[%s1 + $0x8d8] sm:$0x7f]
  %v807 = vld [vmem:[%s1 + $0x8e0] sm:$0x7f]
  %v808 = vld [vmem:[%s1 + $0x8e8] sm:$0x7f]
  %v809 = vld [vmem:[%s1 + $0x8f0] sm:$0x7f]
  %v810 = vld [vmem:[%s1 + $0x8f8] sm:$0x7f]
  %v811 = vld [vmem:[%s1 + $0x900] sm:$0x7f]
  %v812 = vld [vmem:[%s1 + $0x908] sm:$0x7f]
  %v813 = vld [vmem:[%s1 + $0x910] sm:$0x7f]
  %v814 = vld [vmem:[%s1 + $0x918] sm:$0x7f]
  %v815 = vld [vmem:[%s1 + $0x920] sm:$0x7f]
  %v816 = vld [vmem:[%s1 + $0x928] sm:$0x7f]
  %v817 = vld [vmem:[%s1 + $0x930] sm:$0x7f]
  %v818 = vld [vmem:[%s1 + $0x938] sm:$0x7f]
  %v819 = vld [vmem:[%s1 + $0x940] sm:$0x7f]
  %v820 = vld [vmem:[%s1 + $0x948] sm:$0x7f]
  %v821 = vld [vmem:[%s1 + $0x950] sm:$0x7f]
  %v822 = vld [vmem:[%s1 + $0x958] sm:$0x7f]
  %v823 = vld [vmem:[%s1 + $0x960] sm:$0x7f]
  %v824 = vld [vmem:[%s1 + $0x968] sm:$0x7f]
  %v825 = vld [vmem:[%s1 + $0x970] sm:$0x7f]
  %v826 = vld [vmem:[%s1 + $0x978] sm:$0x7f]
  %v827 = vld [vmem:[%s1 + $0x980] sm:$0x7f]
  %v828 = vld [vmem:[%s1 + $0x988] sm:$0x7f]
  %v829 = vld [vmem:[%s1 + $0x990] sm:$0x7f]
  %v830 = vld [vmem:[%s1 + $0x998] sm:$0x7f]
  %v831 = vld [vmem:[%s1 + $0x9a0] sm:$0x7f]
  %v832 = vld [vmem:[%s1 + $0x9a8] sm:$0x7f]
  %v833 = vld [vmem:[%s1 + $0x9b0] sm:$0x7f]
  %v834 = vld [vmem:[%s1 + $0x9b8] sm:$0x7f]
  %v835 = vld [vmem:[%s1 + $0x9c0] sm:$0x7f]
  %v836 = vld [vmem:[%s1 + $0x9c8] sm:$0x7f]
  %v837 = vld [vmem:[%s1 + $0x9d0] sm:$0x7f]
  %v838 = vld [vmem:[%s1 + $0x9d8] sm:$0x7f]
  %v839 = vld [vmem:[%s1 + $0x9e0] sm:$0x7f]
  %v840 = vld [vmem:[%s1 + $0x9e8] sm:$0x7f]
  %v841 = vld [vmem:[%s1 + $0x9f0] sm:$0x7f]
  %v842 = vld [vmem:[%s1 + $0x9f8] sm:$0x7f]
  %v843 = vld [vmem:[%s1 + $0xa00] sm:$0x7f]
  %v844 = vld [vmem:[%s1 + $0xa08] sm:$0x7f]
  %v845 = vld [vmem:[%s1 + $0xa10] sm:$0x7f]
  %v846 = vld [vmem:[%s1 + $0xa18] sm:$0x7f]
  %v847 = vld [vmem:[%s1 + $0xa20] sm:$0x7f]
  %v848 = vld [vmem:[%s1 + $0xa28] sm:$0x7f]
  %v849 = vld [vmem:[%s1 + $0xa30] sm:$0x7f]
  %v850 = vld [vmem:[%s1 + $0xa38] sm:$0x7f]
  %v851 = vld [vmem:[%s1 + $0xa40] sm:$0x7f]
  %v852 = vld [vmem:[%s1 + $0xa48] sm:$0x7f]
  %v853 = vld [vmem:[%s1 + $0xa50] sm:$0x7f]
  %v854 = vld [vmem:[%s1 + $0xa58] sm:$0x7f]
  %v855 = vld [vmem:[%s1 + $0xa60] sm:$0x7f]
  %v856 = vld [vmem:[%s1 + $0xa68] sm:$0x7f]
  %v857 = vld [vmem:[%s1 + $0xa70] sm:$0x7f]
  %v858 = vld [vmem:[%s1 + $0xa78] sm:$0x7f]
  %v859 = vld [vmem:[%s1 + $0xa80] sm:$0x7f]
  %v860 = vld [vmem:[%s1 + $0xa88] sm:$0x7f]
  %v861 = vld [vmem:[%s1 + $0xa90] sm:$0x7f]
  %v862 = vld [vmem:[%s1 + $0xa98] sm:$0x7f]
  %v863 = vld [vmem:[%s1 + $0xaa0] sm:$0x7f]
  %v864 = vld [vmem:[%s1 + $0xaa8] sm:$0x7f]
  %v865 = vld [vmem:[%s1 + $0xab0] sm:$0x7f]
  %v866 = vld [vmem:[%s1 + $0xab8] sm:$0x7f]
  %v867 = vld [vmem:[%s1 + $0xac0] sm:$0x7f]
  %v868 = vld [vmem:[%s1 + $0xac8] sm:$0x7f]
  %v869 = vld [vmem:[%s1 + $0xad0] sm:$0x7f]
  %v870 = vld [vmem:[%s1 + $0xad8] sm:$0x7f]
  %v871 = vld [vmem:[%s1 + $0xae0] sm:$0x7f]
  %v872 = vld [vmem:[%s1 + $0xae8] sm:$0x7f]
  %v873 = vld [vmem:[%s1 + $0xaf0] sm:$0x7f]
  %v874 = vld [vmem:[%s1 + $0xaf8] sm:$0x7f]
  %v875 = vld [vmem:[%s1 + $0xb00] sm:$0x7f]
  %v876 = vld [vmem:[%s1 + $0xb08] sm:$0x7f]
  %v877 = vld [vmem:[%s1 + $0xb10] sm:$0x7f]
  %v878 = vld [vmem:[%s1 + $0xb18] sm:$0x7f]
  %v879 = vld [vmem:[%s1 + $0xb20] sm:$0x7f]
  %v880 = vld [vmem:[%s1 + $0xb28] sm:$0x7f]
  %v881 = vld [vmem:[%s1 + $0xb30] sm:$0x7f]
  %v882 = vld [vmem:[%s1 + $0xb38] sm:$0x7f]
  %v883 = vld [vmem:[%s1 + $0xb40] sm:$0x7f]
  %v884 = vld [vmem:[%s1 + $0xb48] sm:$0x7f]
  %v885 = vld [vmem:[%s1 + $0xb50] sm:$0x7f]
  %v886 = vld [vmem:[%s1 + $0xb58] sm:$0x7f]
  %v887 = vld [vmem:[%s1 + $0xb60] sm:$0x7f]
  %v888 = vld [vmem:[%s1 + $0xb68] sm:$0x7f]
  %v889 = vld [vmem:[%s1 + $0xb70] sm:$0x7f]
  %v890 = vld [vmem:[%s1 + $0xb78] sm:$0x7f]
  %v891 = vld [vmem:[%s1 + $0xb80] sm:$0x7f]
  %v892 = vld [vmem:[%s1 + $0xb88] sm:$0x7f]
  %v893 = vld [vmem:[%s1 + $0xb90] sm:$0x7f]
  %v894 = vld [vmem:[%s1 + $0xb98] sm:$0x7f]
  %v895 = vld [vmem:[%s1 + $0xba0] sm:$0x7f]
  %v896 = vld [vmem:[%s1 + $0xba8] sm:$0x7f]
  %v897 = vld [vmem:[%s1 + $0xbb0] sm:$0x7f]
  %v898 = vld [vmem:[%s1 + $0xbb8] sm:$0x7f]
  %v899 = vld [vmem:[%s1 + $0xbc0] sm:$0x7f]
  %v900 = vld [vmem:[%s1 + $0xbc8] sm:$0x7f]
  %v901 = vld [vmem:[%s1 + $0xbd0] sm:$0x7f]
  %v902 = vld [vmem:[%s1 + $0xbd8] sm:$0x7f]
  %v903 = vld [vmem:[%s1 + $0xbe0] sm:$0x7f]
  %v904 = vld [vmem:[%s1 + $0xbe8] sm:$0x7f]
  %v905 = vld [vmem:[%s1 + $0xbf0] sm:$0x7f]
  %v906 = vld [vmem:[%s1 + $0xbf8] sm:$0x7f]
  %v907 = vld [vmem:[%s1 + $0xc00] sm:$0x7f]
  %v908 = vld [vmem:[%s1 + $0xc08] sm:$0x7f]
  %v909 = vld [vmem:[%s1 + $0xc10] sm:$0x7f]
  %v910 = vld [vmem:[%s1 + $0xc18] sm:$0x7f]
  %v911 = vld [vmem:[%s1 + $0xc20] sm:$0x7f]
  %v912 = vld [vmem:[%s1 + $0xc28] sm:$0x7f]
  %v913 = vld [vmem:[%s1 + $0xc30] sm:$0x7f]
  %v914 = vld [vmem:[%s1 + $0xc38] sm:$0x7f]
  %v915 = vld [vmem:[%s1 + $0xc40] sm:$0x7f]
  %v916 = vld [vmem:[%s1 + $0xc48] sm:$0x7f]
  %v917 = vld [vmem:[%s1 + $0xc50] sm:$0x7f]
  %v918 = vld [vmem:[%s1 + $0xc58] sm:$0x7f]
  %v919 = vld [vmem:[%s1 + $0xc60] sm:$0x7f]
  %v920 = vld [vmem:[%s1 + $0xc68] sm:$0x7f]
  %v921 = vld [vmem:[%s1 + $0xc70] sm:$0x7f]
  %v922 = vld [vmem:[%s1 + $0xc78] sm:$0x7f]
  %v923 = vld [vmem:[%s1 + $0xc80] sm:$0x7f]
  %v924 = vld [vmem:[%s1 + $0xc88] sm:$0x7f]
  %v925 = vld [vmem:[%s1 + $0xc90] sm:$0x7f]
  %v926 = vld [vmem:[%s1 + $0xc98] sm:$0x7f]
  %v927 = vld [vmem:[%s1 + $0xca0] sm:$0x7f]
  %v928 = vld [vmem:[%s1 + $0xca8] sm:$0x7f]
  %v929 = vld [vmem:[%s1 + $0xcb0] sm:$0x7f]
  %v930 = vld [vmem:[%s1 + $0xcb8] sm:$0x7f]
  %v931 = vld [vmem:[%s1 + $0xcc0] sm:$0x7f]
  %v932 = vld [vmem:[%s1 + $0xcc8] sm:$0x7f]
  %v933 = vld [vmem:[%s1 + $0xcd0] sm:$0x7f]
  %v934 = vld [vmem:[%s1 + $0xcd8] sm:$0x7f]
  %v935 = vld [vmem:[%s1 + $0xce0] sm:$0x7f]
  %v936 = vld [vmem:[%s1 + $0xce8] sm:$0x7f]
  %v937 = vld [vmem:[%s1 + $0xcf0] sm:$0x7f]
  %v938 = vld [vmem:[%s1 + $0xcf8] sm:$0x7f]
  %v939 = vld [vmem:[%s1 + $0xd00] sm:$0x7f]
  %v940 = vld [vmem:[%s1 + $0xd08] sm:$0x7f]
  %v941 = vld [vmem:[%s1 + $0xd10] sm:$0x7f]
  %v942 = vld [vmem:[%s1 + $0xd18] sm:$0x7f]
  %v943 = vld [vmem:[%s1 + $0xd20] sm:$0x7f]
  %v944 = vld [vmem:[%s1 + $0xd28] sm:$0x7f]
  %v945 = vld [vmem:[%s1 + $0xd30] sm:$0x7f]
  %v946 = vld [vmem:[%s1 + $0xd38] sm:$0x7f]
  %v947 = vld [vmem:[%s1 + $0xd40] sm:$0x7f]
  %v948 = vld [vmem:[%s1 + $0xd48] sm:$0x7f]
  %v949 = vld [vmem:[%s1 + $0xd50] sm:$0x7f]
  %v950 = vld [vmem:[%s1 + $0xd58] sm:$0x7f]
  %v951 = vld [vmem:[%s1 + $0xd60] sm:$0x7f]
  %v952 = vld [vmem:[%s1 + $0xd68] sm:$0x7f]
  %v953 = vld [vmem:[%s1 + $0xd70] sm:$0x7f]
  %v954 = vld [vmem:[%s1 + $0xd78] sm:$0x7f]
  %v955 = vld [vmem:[%s1 + $0xd80] sm:$0x7f]
  %v956 = vld [vmem:[%s1 + $0xd88] sm:$0x7f]
  %v957 = vld [vmem:[%s1 + $0xd90] sm:$0x7f]
  %v958 = vld [vmem:[%s1 + $0xd98] sm:$0x7f]
  %v959 = vld [vmem:[%s1 + $0xda0] sm:$0x7f]
  %v960 = vld [vmem:[%s1 + $0xda8] sm:$0x7f]
  %v961 = vld [vmem:[%s1 + $0xdb0] sm:$0x7f]
  %v962 = vld [vmem:[%s1 + $0xdb8] sm:$0x7f]
  %v963 = vld [vmem:[%s1 + $0xdc0] sm:$0x7f]
  %v964 = vld [vmem:[%s1 + $0xdc8] sm:$0x7f]
  %v965 = vld [vmem:[%s1 + $0xdd0] sm:$0x7f]
  %v966 = vld [vmem:[%s1 + $0xdd8] sm:$0x7f]
  %v967 = vld [vmem:[%s1 + $0xde0] sm:$0x7f]
  %v968 = vld [vmem:[%s1 + $0xde8] sm:$0x7f]
  %v969 = vld [vmem:[%s1 + $0xdf0] sm:$0x7f]
  %v970 = vld [vmem:[%s1 + $0xdf8] sm:$0x7f]
  %v971 = vld [vmem:[%s1 + $0xe00] sm:$0x7f]
  %v972 = vld [vmem:[%s1 + $0xe08] sm:$0x7f]
  %v973 = vld [vmem:[%s1 + $0xe10] sm:$0x7f]
  %v974 = vld [vmem:[%s1 + $0xe18] sm:$0x7f]
  %v975 = vld [vmem:[%s1 + $0xe20] sm:$0x7f]
  %v976 = vld [vmem:[%s1 + $0xe28] sm:$0x7f]
  %v977 = vld [vmem:[%s1 + $0xe30] sm:$0x7f]
  %v978 = vld [vmem:[%s1 + $0xe38] sm:$0x7f]
  %v979 = vld [vmem:[%s1 + $0xe40] sm:$0x7f]
  %v980 = vld [vmem:[%s1 + $0xe48] sm:$0x7f]
  %v981 = vld [vmem:[%s1 + $0xe50] sm:$0x7f]
  %v982 = vld [vmem:[%s1 + $0xe58] sm:$0x7f]
  %v983 = vld [vmem:[%s1 + $0xe60] sm:$0x7f]
  %v984 = vld [vmem:[%s1 + $0xe68] sm:$0x7f]
  %v985 = vld [vmem:[%s1 + $0xe70] sm:$0x7f]
  %v986 = vld [vmem:[%s1 + $0xe78] sm:$0x7f]
  %v987 = vld [vmem:[%s1 + $0xe80] sm:$0x7f]
  %v988 = vld [vmem:[%s1 + $0xe88] sm:$0x7f]
  %v989 = vld [vmem:[%s1 + $0xe90] sm:$0x7f]
  %v990 = vld [vmem:[%s1 + $0xe98] sm:$0x7f]
  %v991 = vld [vmem:[%s1 + $0xea0] sm:$0x7f]
  %v992 = vld [vmem:[%s1 + $0xea8] sm:$0x7f]
  %v993 = vld [vmem:[%s1 + $0xeb0] sm:$0x7f]
  %v994 = vld [vmem:[%s1 + $0xeb8] sm:$0x7f]
  %v995 = vld [vmem:[%s1 + $0xec0] sm:$0x7f]
  %v996 = vld [vmem:[%s1 + $0xec8] sm:$0x7f]
  %v997 = vld [vmem:[%s1 + $0xed0] sm:$0x7f]
  %v998 = vld [vmem:[%s1 + $0xed8] sm:$0x7f]
  %v999 = vld [vmem:[%s1 + $0xee0] sm:$0x7f]
  %v1000 = vld [vmem:[%s1 + $0xee8] sm:$0x7f]
  %v1001 = vld [vmem:[%s1 + $0xef0] sm:$0x7f]
  %v1002 = vld [vmem:[%s1 + $0xef8] sm:$0x7f]
  %v1003 = vld [vmem:[%s1 + $0xf00] sm:$0x7f]
  %v1004 = vld [vmem:[%s1 + $0xf08] sm:$0x7f]
  %v1005 = vld [vmem:[%s1 + $0xf10] sm:$0x7f]
  %v1006 = vld [vmem:[%s1 + $0xf18] sm:$0x7f]
  %v1007 = vld [vmem:[%s1 + $0xf20] sm:$0x7f]
  %v1008 = vld [vmem:[%s1 + $0xf28] sm:$0x7f]
  %v1009 = vld [vmem:[%s1 + $0xf30] sm:$0x7f]
  %v1010 = vld [vmem:[%s1 + $0xf38] sm:$0x7f]
  %v1011 = vld [vmem:[%s1 + $0xf40] sm:$0x7f]
  %v1012 = vld [vmem:[%s1 + $0xf48] sm:$0x7f]
  %v1013 = vld [vmem:[%s1 + $0xf50] sm:$0x7f]
  %v1014 = vld [vmem:[%s1 + $0xf58] sm:$0x7f]
  %v1015 = vld [vmem:[%s1 + $0xf60] sm:$0x7f]
  %v1016 = vld [vmem:[%s1 + $0xf68] sm:$0x7f]
  %v1017 = vld [vmem:[%s1 + $0xf70] sm:$0x7f]
  %v1018 = vld [vmem:[%s1 + $0xf78] sm:$0x7f]
  %v1019 = vld [vmem:[%s1 + $0xf80] sm:$0x7f]
  %v1020 = vld [vmem:[%s1 + $0xf88] sm:$0x7f]
  %v1021 = vld [vmem:[%s1 + $0xf90] sm:$0x7f]
  %v1022 = vld [vmem:[%s1 + $0xf98] sm:$0x7f]
  %v1023 = vld [vmem:[%s1 + $0xfa0] sm:$0x7f]
  %v1024 = vld [vmem:[%s1 + $0xfa8] sm:$0x7f]
  %v1025 = vld [vmem:[%s1 + $0xfb0] sm:$0x7f]
  %v1026 = vld [vmem:[%s1 + $0xfb8] sm:$0x7f]
  %v1027 = vld [vmem:[%s1 + $0xfc0] sm:$0x7f]
  %v1028 = vld [vmem:[%s1 + $0xfc8] sm:$0x7f]
  %v1029 = vld [vmem:[%s1 + $0xfd0] sm:$0x7f]
  %v1030 = vld [vmem:[%s1 + $0xfd8] sm:$0x7f]
  %v1031 = vld [vmem:[%s1 + $0xfe0] sm:$0x7f]
  %v1032 = vld [vmem:[%s1 + $0xfe8] sm:$0x7f]
  %v1033 = vld [vmem:[%s1 + $0xff0] sm:$0x7f]
  %v1034 = vld [vmem:[%s1 + $0xff8] sm:$0x7f]
  %v1035 = vadd.f32 %v11, %v523
  %v1036 = vadd.f32 %v12, %v524
  %v1037 = vadd.f32 %v13, %v525
  %v1038 = vadd.f32 %v14, %v526
  %v1039 = vadd.f32 %v15, %v527
  %v1040 = vadd.f32 %v16, %v528
  %v1041 = vadd.f32 %v17, %v529
  %v1042 = vadd.f32 %v18, %v530
  %v1043 = vadd.f32 %v19, %v531
  %v1044 = vadd.f32 %v20, %v532
  %v1045 = vadd.f32 %v21, %v533
  %v1046 = vadd.f32 %v22, %v534
  %v1047 = vadd.f32 %v23, %v535
  %v1048 = vadd.f32 %v24, %v536
  %v1049 = vadd.f32 %v25, %v537
  %v1050 = vadd.f32 %v26, %v538
  %v1051 = vadd.f32 %v27, %v539
  %v1052 = vadd.f32 %v28, %v540
  %v1053 = vadd.f32 %v29, %v541
  %v1054 = vadd.f32 %v30, %v542
  %v1055 = vadd.f32 %v31, %v543
  %v1056 = vadd.f32 %v32, %v544
  %v1057 = vadd.f32 %v33, %v545
  %v1058 = vadd.f32 %v34, %v546
  %v1059 = vadd.f32 %v35, %v547
  %v1060 = vadd.f32 %v36, %v548
  %v1061 = vadd.f32 %v37, %v549
  %v1062 = vadd.f32 %v38, %v550
  %v1063 = vadd.f32 %v39, %v551
  %v1064 = vadd.f32 %v40, %v552
  %v1065 = vadd.f32 %v41, %v553
  %v1066 = vadd.f32 %v42, %v554
  %v1067 = vadd.f32 %v43, %v555
  %v1068 = vadd.f32 %v44, %v556
  %v1069 = vadd.f32 %v45, %v557
  %v1070 = vadd.f32 %v46, %v558
  %v1071 = vadd.f32 %v47, %v559
  %v1072 = vadd.f32 %v48, %v560
  %v1073 = vadd.f32 %v49, %v561
  %v1074 = vadd.f32 %v50, %v562
  %v1075 = vadd.f32 %v51, %v563
  %v1076 = vadd.f32 %v52, %v564
  %v1077 = vadd.f32 %v53, %v565
  %v1078 = vadd.f32 %v54, %v566
  %v1079 = vadd.f32 %v55, %v567
  %v1080 = vadd.f32 %v56, %v568
  %v1081 = vadd.f32 %v57, %v569
  %v1082 = vadd.f32 %v58, %v570
  %v1083 = vadd.f32 %v59, %v571
  %v1084 = vadd.f32 %v60, %v572
  %v1085 = vadd.f32 %v61, %v573
  %v1086 = vadd.f32 %v62, %v574
  %v1087 = vadd.f32 %v63, %v575
  %v1088 = vadd.f32 %v64, %v576
  %v1089 = vadd.f32 %v65, %v577
  %v1090 = vadd.f32 %v66, %v578
  %v1091 = vadd.f32 %v67, %v579
  %v1092 = vadd.f32 %v68, %v580
  %v1093 = vadd.f32 %v69, %v581
  %v1094 = vadd.f32 %v70, %v582
  %v1095 = vadd.f32 %v71, %v583
  %v1096 = vadd.f32 %v72, %v584
  %v1097 = vadd.f32 %v73, %v585
  %v1098 = vadd.f32 %v74, %v586
  %v1099 = vadd.f32 %v75, %v587
  %v1100 = vadd.f32 %v76, %v588
  %v1101 = vadd.f32 %v77, %v589
  %v1102 = vadd.f32 %v78, %v590
  %v1103 = vadd.f32 %v79, %v591
  %v1104 = vadd.f32 %v80, %v592
  %v1105 = vadd.f32 %v81, %v593
  %v1106 = vadd.f32 %v82, %v594
  %v1107 = vadd.f32 %v83, %v595
  %v1108 = vadd.f32 %v84, %v596
  %v1109 = vadd.f32 %v85, %v597
  %v1110 = vadd.f32 %v86, %v598
  %v1111 = vadd.f32 %v87, %v599
  %v1112 = vadd.f32 %v88, %v600
  %v1113 = vadd.f32 %v89, %v601
  %v1114 = vadd.f32 %v90, %v602
  %v1115 = vadd.f32 %v91, %v603
  %v1116 = vadd.f32 %v92, %v604
  %v1117 = vadd.f32 %v93, %v605
  %v1118 = vadd.f32 %v94, %v606
  %v1119 = vadd.f32 %v95, %v607
  %v1120 = vadd.f32 %v96, %v608
  %v1121 = vadd.f32 %v97, %v609
  %v1122 = vadd.f32 %v98, %v610
  %v1123 = vadd.f32 %v99, %v611
  %v1124 = vadd.f32 %v100, %v612
  %v1125 = vadd.f32 %v101, %v613
  %v1126 = vadd.f32 %v102, %v614
  %v1127 = vadd.f32 %v103, %v615
  %v1128 = vadd.f32 %v104, %v616
  %v1129 = vadd.f32 %v105, %v617
  %v1130 = vadd.f32 %v106, %v618
  %v1131 = vadd.f32 %v107, %v619
  %v1132 = vadd.f32 %v108, %v620
  %v1133 = vadd.f32 %v109, %v621
  %v1134 = vadd.f32 %v110, %v622
  %v1135 = vadd.f32 %v111, %v623
  %v1136 = vadd.f32 %v112, %v624
  %v1137 = vadd.f32 %v113, %v625
  %v1138 = vadd.f32 %v114, %v626
  %v1139 = vadd.f32 %v115, %v627
  %v1140 = vadd.f32 %v116, %v628
  %v1141 = vadd.f32 %v117, %v629
  %v1142 = vadd.f32 %v118, %v630
  %v1143 = vadd.f32 %v119, %v631
  %v1144 = vadd.f32 %v120, %v632
  %v1145 = vadd.f32 %v121, %v633
  %v1146 = vadd.f32 %v122, %v634
  %v1147 = vadd.f32 %v123, %v635
  %v1148 = vadd.f32 %v124, %v636
  %v1149 = vadd.f32 %v125, %v637
  %v1150 = vadd.f32 %v126, %v638
  %v1151 = vadd.f32 %v127, %v639
  %v1152 = vadd.f32 %v128, %v640
  %v1153 = vadd.f32 %v129, %v641
  %v1154 = vadd.f32 %v130, %v642
  %v1155 = vadd.f32 %v131, %v643
  %v1156 = vadd.f32 %v132, %v644
  %v1157 = vadd.f32 %v133, %v645
  %v1158 = vadd.f32 %v134, %v646
  %v1159 = vadd.f32 %v135, %v647
  %v1160 = vadd.f32 %v136, %v648
  %v1161 = vadd.f32 %v137, %v649
  %v1162 = vadd.f32 %v138, %v650
  %v1163 = vadd.f32 %v139, %v651
  %v1164 = vadd.f32 %v140, %v652
  %v1165 = vadd.f32 %v141, %v653
  %v1166 = vadd.f32 %v142, %v654
  %v1167 = vadd.f32 %v143, %v655
  %v1168 = vadd.f32 %v144, %v656
  %v1169 = vadd.f32 %v145, %v657
  %v1170 = vadd.f32 %v146, %v658
  %v1171 = vadd.f32 %v147, %v659
  %v1172 = vadd.f32 %v148, %v660
  %v1173 = vadd.f32 %v149, %v661
  %v1174 = vadd.f32 %v150, %v662
  %v1175 = vadd.f32 %v151, %v663
  %v1176 = vadd.f32 %v152, %v664
  %v1177 = vadd.f32 %v153, %v665
  %v1178 = vadd.f32 %v154, %v666
  %v1179 = vadd.f32 %v155, %v667
  %v1180 = vadd.f32 %v156, %v668
  %v1181 = vadd.f32 %v157, %v669
  %v1182 = vadd.f32 %v158, %v670
  %v1183 = vadd.f32 %v159, %v671
  %v1184 = vadd.f32 %v160, %v672
  %v1185 = vadd.f32 %v161, %v673
  %v1186 = vadd.f32 %v162, %v674
  %v1187 = vadd.f32 %v163, %v675
  %v1188 = vadd.f32 %v164, %v676
  %v1189 = vadd.f32 %v165, %v677
  %v1190 = vadd.f32 %v166, %v678
  %v1191 = vadd.f32 %v167, %v679
  %v1192 = vadd.f32 %v168, %v680
  %v1193 = vadd.f32 %v169, %v681
  %v1194 = vadd.f32 %v170, %v682
  %v1195 = vadd.f32 %v171, %v683
  %v1196 = vadd.f32 %v172, %v684
  %v1197 = vadd.f32 %v173, %v685
  %v1198 = vadd.f32 %v174, %v686
  %v1199 = vadd.f32 %v175, %v687
  %v1200 = vadd.f32 %v176, %v688
  %v1201 = vadd.f32 %v177, %v689
  %v1202 = vadd.f32 %v178, %v690
  %v1203 = vadd.f32 %v179, %v691
  %v1204 = vadd.f32 %v180, %v692
  %v1205 = vadd.f32 %v181, %v693
  %v1206 = vadd.f32 %v182, %v694
  %v1207 = vadd.f32 %v183, %v695
  %v1208 = vadd.f32 %v184, %v696
  %v1209 = vadd.f32 %v185, %v697
  %v1210 = vadd.f32 %v186, %v698
  %v1211 = vadd.f32 %v187, %v699
  %v1212 = vadd.f32 %v188, %v700
  %v1213 = vadd.f32 %v189, %v701
  %v1214 = vadd.f32 %v190, %v702
  %v1215 = vadd.f32 %v191, %v703
  %v1216 = vadd.f32 %v192, %v704
  %v1217 = vadd.f32 %v193, %v705
  %v1218 = vadd.f32 %v194, %v706
  %v1219 = vadd.f32 %v195, %v707
  %v1220 = vadd.f32 %v196, %v708
  %v1221 = vadd.f32 %v197, %v709
  %v1222 = vadd.f32 %v198, %v710
  %v1223 = vadd.f32 %v199, %v711
  %v1224 = vadd.f32 %v200, %v712
  %v1225 = vadd.f32 %v201, %v713
  %v1226 = vadd.f32 %v202, %v714
  %v1227 = vadd.f32 %v203, %v715
  %v1228 = vadd.f32 %v204, %v716
  %v1229 = vadd.f32 %v205, %v717
  %v1230 = vadd.f32 %v206, %v718
  %v1231 = vadd.f32 %v207, %v719
  %v1232 = vadd.f32 %v208, %v720
  %v1233 = vadd.f32 %v209, %v721
  %v1234 = vadd.f32 %v210, %v722
  %v1235 = vadd.f32 %v211, %v723
  %v1236 = vadd.f32 %v212, %v724
  %v1237 = vadd.f32 %v213, %v725
  %v1238 = vadd.f32 %v214, %v726
  %v1239 = vadd.f32 %v215, %v727
  %v1240 = vadd.f32 %v216, %v728
  %v1241 = vadd.f32 %v217, %v729
  %v1242 = vadd.f32 %v218, %v730
  %v1243 = vadd.f32 %v219, %v731
  %v1244 = vadd.f32 %v220, %v732
  %v1245 = vadd.f32 %v221, %v733
  %v1246 = vadd.f32 %v222, %v734
  %v1247 = vadd.f32 %v223, %v735
  %v1248 = vadd.f32 %v224, %v736
  %v1249 = vadd.f32 %v225, %v737
  %v1250 = vadd.f32 %v226, %v738
  %v1251 = vadd.f32 %v227, %v739
  %v1252 = vadd.f32 %v228, %v740
  %v1253 = vadd.f32 %v229, %v741
  %v1254 = vadd.f32 %v230, %v742
  %v1255 = vadd.f32 %v231, %v743
  %v1256 = vadd.f32 %v232, %v744
  %v1257 = vadd.f32 %v233, %v745
  %v1258 = vadd.f32 %v234, %v746
  %v1259 = vadd.f32 %v235, %v747
  %v1260 = vadd.f32 %v236, %v748
  %v1261 = vadd.f32 %v237, %v749
  %v1262 = vadd.f32 %v238, %v750
  %v1263 = vadd.f32 %v239, %v751
  %v1264 = vadd.f32 %v240, %v752
  %v1265 = vadd.f32 %v241, %v753
  %v1266 = vadd.f32 %v242, %v754
  %v1267 = vadd.f32 %v243, %v755
  %v1268 = vadd.f32 %v244, %v756
  %v1269 = vadd.f32 %v245, %v757
  %v1270 = vadd.f32 %v246, %v758
  %v1271 = vadd.f32 %v247, %v759
  %v1272 = vadd.f32 %v248, %v760
  %v1273 = vadd.f32 %v249, %v761
  %v1274 = vadd.f32 %v250, %v762
  %v1275 = vadd.f32 %v251, %v763
  %v1276 = vadd.f32 %v252, %v764
  %v1277 = vadd.f32 %v253, %v765
  %v1278 = vadd.f32 %v254, %v766
  %v1279 = vadd.f32 %v255, %v767
  %v1280 = vadd.f32 %v256, %v768
  %v1281 = vadd.f32 %v257, %v769
  %v1282 = vadd.f32 %v258, %v770
  %v1283 = vadd.f32 %v259, %v771
  %v1284 = vadd.f32 %v260, %v772
  %v1285 = vadd.f32 %v261, %v773
  %v1286 = vadd.f32 %v262, %v774
  %v1287 = vadd.f32 %v263, %v775
  %v1288 = vadd.f32 %v264, %v776
  %v1289 = vadd.f32 %v265, %v777
  %v1290 = vadd.f32 %v266, %v778
  %v1291 = vadd.f32 %v267, %v779
  %v1292 = vadd.f32 %v268, %v780
  %v1293 = vadd.f32 %v269, %v781
  %v1294 = vadd.f32 %v270, %v782
  %v1295 = vadd.f32 %v271, %v783
  %v1296 = vadd.f32 %v272, %v784
  %v1297 = vadd.f32 %v273, %v785
  %v1298 = vadd.f32 %v274, %v786
  %v1299 = vadd.f32 %v275, %v787
  %v1300 = vadd.f32 %v276, %v788
  %v1301 = vadd.f32 %v277, %v789
  %v1302 = vadd.f32 %v278, %v790
  %v1303 = vadd.f32 %v279, %v791
  %v1304 = vadd.f32 %v280, %v792
  %v1305 = vadd.f32 %v281, %v793
  %v1306 = vadd.f32 %v282, %v794
  %v1307 = vadd.f32 %v283, %v795
  %v1308 = vadd.f32 %v284, %v796
  %v1309 = vadd.f32 %v285, %v797
  %v1310 = vadd.f32 %v286, %v798
  %v1311 = vadd.f32 %v287, %v799
  %v1312 = vadd.f32 %v288, %v800
  %v1313 = vadd.f32 %v289, %v801
  %v1314 = vadd.f32 %v290, %v802
  %v1315 = vadd.f32 %v291, %v803
  %v1316 = vadd.f32 %v292, %v804
  %v1317 = vadd.f32 %v293, %v805
  %v1318 = vadd.f32 %v294, %v806
  %v1319 = vadd.f32 %v295, %v807
  %v1320 = vadd.f32 %v296, %v808
  %v1321 = vadd.f32 %v297, %v809
  %v1322 = vadd.f32 %v298, %v810
  %v1323 = vadd.f32 %v299, %v811
  %v1324 = vadd.f32 %v300, %v812
  %v1325 = vadd.f32 %v301, %v813
  %v1326 = vadd.f32 %v302, %v814
  %v1327 = vadd.f32 %v303, %v815
  %v1328 = vadd.f32 %v304, %v816
  %v1329 = vadd.f32 %v305, %v817
  %v1330 = vadd.f32 %v306, %v818
  %v1331 = vadd.f32 %v307, %v819
  %v1332 = vadd.f32 %v308, %v820
  %v1333 = vadd.f32 %v309, %v821
  %v1334 = vadd.f32 %v310, %v822
  %v1335 = vadd.f32 %v311, %v823
  %v1336 = vadd.f32 %v312, %v824
  %v1337 = vadd.f32 %v313, %v825
  %v1338 = vadd.f32 %v314, %v826
  %v1339 = vadd.f32 %v315, %v827
  %v1340 = vadd.f32 %v316, %v828
  %v1341 = vadd.f32 %v317, %v829
  %v1342 = vadd.f32 %v318, %v830
  %v1343 = vadd.f32 %v319, %v831
  %v1344 = vadd.f32 %v320, %v832
  %v1345 = vadd.f32 %v321, %v833
  %v1346 = vadd.f32 %v322, %v834
  %v1347 = vadd.f32 %v323, %v835
  %v1348 = vadd.f32 %v324, %v836
  %v1349 = vadd.f32 %v325, %v837
  %v1350 = vadd.f32 %v326, %v838
  %v1351 = vadd.f32 %v327, %v839
  %v1352 = vadd.f32 %v328, %v840
  %v1353 = vadd.f32 %v329, %v841
  %v1354 = vadd.f32 %v330, %v842
  %v1355 = vadd.f32 %v331, %v843
  %v1356 = vadd.f32 %v332, %v844
  %v1357 = vadd.f32 %v333, %v845
  %v1358 = vadd.f32 %v334, %v846
  %v1359 = vadd.f32 %v335, %v847
  %v1360 = vadd.f32 %v336, %v848
  %v1361 = vadd.f32 %v337, %v849
  %v1362 = vadd.f32 %v338, %v850
  %v1363 = vadd.f32 %v339, %v851
  %v1364 = vadd.f32 %v340, %v852
  %v1365 = vadd.f32 %v341, %v853
  %v1366 = vadd.f32 %v342, %v854
  %v1367 = vadd.f32 %v343, %v855
  %v1368 = vadd.f32 %v344, %v856
  %v1369 = vadd.f32 %v345, %v857
  %v1370 = vadd.f32 %v346, %v858
  %v1371 = vadd.f32 %v347, %v859
  %v1372 = vadd.f32 %v348, %v860
  %v1373 = vadd.f32 %v349, %v861
  %v1374 = vadd.f32 %v350, %v862
  %v1375 = vadd.f32 %v351, %v863
  %v1376 = vadd.f32 %v352, %v864
  %v1377 = vadd.f32 %v353, %v865
  %v1378 = vadd.f32 %v354, %v866
  %v1379 = vadd.f32 %v355, %v867
  %v1380 = vadd.f32 %v356, %v868
  %v1381 = vadd.f32 %v357, %v869
  %v1382 = vadd.f32 %v358, %v870
  %v1383 = vadd.f32 %v359, %v871
  %v1384 = vadd.f32 %v360, %v872
  %v1385 = vadd.f32 %v361, %v873
  %v1386 = vadd.f32 %v362, %v874
  %v1387 = vadd.f32 %v363, %v875
  %v1388 = vadd.f32 %v364, %v876
  %v1389 = vadd.f32 %v365, %v877
  %v1390 = vadd.f32 %v366, %v878
  %v1391 = vadd.f32 %v367, %v879
  %v1392 = vadd.f32 %v368, %v880
  %v1393 = vadd.f32 %v369, %v881
  %v1394 = vadd.f32 %v370, %v882
  %v1395 = vadd.f32 %v371, %v883
  %v1396 = vadd.f32 %v372, %v884
  %v1397 = vadd.f32 %v373, %v885
  %v1398 = vadd.f32 %v374, %v886
  %v1399 = vadd.f32 %v375, %v887
  %v1400 = vadd.f32 %v376, %v888
  %v1401 = vadd.f32 %v377, %v889
  %v1402 = vadd.f32 %v378, %v890
  %v1403 = vadd.f32 %v379, %v891
  %v1404 = vadd.f32 %v380, %v892
  %v1405 = vadd.f32 %v381, %v893
  %v1406 = vadd.f32 %v382, %v894
  %v1407 = vadd.f32 %v383, %v895
  %v1408 = vadd.f32 %v384, %v896
  %v1409 = vadd.f32 %v385, %v897
  %v1410 = vadd.f32 %v386, %v898
  %v1411 = vadd.f32 %v387, %v899
  %v1412 = vadd.f32 %v388, %v900
  %v1413 = vadd.f32 %v389, %v901
  %v1414 = vadd.f32 %v390, %v902
  %v1415 = vadd.f32 %v391, %v903
  %v1416 = vadd.f32 %v392, %v904
  %v1417 = vadd.f32 %v393, %v905
  %v1418 = vadd.f32 %v394, %v906
  %v1419 = vadd.f32 %v395, %v907
  %v1420 = vadd.f32 %v396, %v908
  %v1421 = vadd.f32 %v397, %v909
  %v1422 = vadd.f32 %v398, %v910
  %v1423 = vadd.f32 %v399, %v911
  %v1424 = vadd.f32 %v400, %v912
  %v1425 = vadd.f32 %v401, %v913
  %v1426 = vadd.f32 %v402, %v914
  %v1427 = vadd.f32 %v403, %v915
  %v1428 = vadd.f32 %v404, %v916
  %v1429 = vadd.f32 %v405, %v917
  %v1430 = vadd.f32 %v406, %v918
  %v1431 = vadd.f32 %v407, %v919
  %v1432 = vadd.f32 %v408, %v920
  %v1433 = vadd.f32 %v409, %v921
  %v1434 = vadd.f32 %v410, %v922
  %v1435 = vadd.f32 %v411, %v923
  %v1436 = vadd.f32 %v412, %v924
  %v1437 = vadd.f32 %v413, %v925
  %v1438 = vadd.f32 %v414, %v926
  %v1439 = vadd.f32 %v415, %v927
  %v1440 = vadd.f32 %v416, %v928
  %v1441 = vadd.f32 %v417, %v929
  %v1442 = vadd.f32 %v418, %v930
  %v1443 = vadd.f32 %v419, %v931
  %v1444 = vadd.f32 %v420, %v932
  %v1445 = vadd.f32 %v421, %v933
  %v1446 = vadd.f32 %v422, %v934
  %v1447 = vadd.f32 %v423, %v935
  %v1448 = vadd.f32 %v424, %v936
  %v1449 = vadd.f32 %v425, %v937
  %v1450 = vadd.f32 %v426, %v938
  %v1451 = vadd.f32 %v427, %v939
  %v1452 = vadd.f32 %v428, %v940
  %v1453 = vadd.f32 %v429, %v941
  %v1454 = vadd.f32 %v430, %v942
  %v1455 = vadd.f32 %v431, %v943
  %v1456 = vadd.f32 %v432, %v944
  %v1457 = vadd.f32 %v433, %v945
  %v1458 = vadd.f32 %v434, %v946
  %v1459 = vadd.f32 %v435, %v947
  %v1460 = vadd.f32 %v436, %v948
  %v1461 = vadd.f32 %v437, %v949
  %v1462 = vadd.f32 %v438, %v950
  %v1463 = vadd.f32 %v439, %v951
  %v1464 = vadd.f32 %v440, %v952
  %v1465 = vadd.f32 %v441, %v953
  %v1466 = vadd.f32 %v442, %v954
  %v1467 = vadd.f32 %v443, %v955
  %v1468 = vadd.f32 %v444, %v956
  %v1469 = vadd.f32 %v445, %v957
  %v1470 = vadd.f32 %v446, %v958
  %v1471 = vadd.f32 %v447, %v959
  %v1472 = vadd.f32 %v448, %v960
  %v1473 = vadd.f32 %v449, %v961
  %v1474 = vadd.f32 %v450, %v962
  %v1475 = vadd.f32 %v451, %v963
  %v1476 = vadd.f32 %v452, %v964
  %v1477 = vadd.f32 %v453, %v965
  %v1478 = vadd.f32 %v454, %v966
  %v1479 = vadd.f32 %v455, %v967
  %v1480 = vadd.f32 %v456, %v968
  %v1481 = vadd.f32 %v457, %v969
  %v1482 = vadd.f32 %v458, %v970
  %v1483 = vadd.f32 %v459, %v971
  %v1484 = vadd.f32 %v460, %v972
  %v1485 = vadd.f32 %v461, %v973
  %v1486 = vadd.f32 %v462, %v974
  %v1487 = vadd.f32 %v463, %v975
  %v1488 = vadd.f32 %v464, %v976
  %v1489 = vadd.f32 %v465, %v977
  %v1490 = vadd.f32 %v466, %v978
  %v1491 = vadd.f32 %v467, %v979
  %v1492 = vadd.f32 %v468, %v980
  %v1493 = vadd.f32 %v469, %v981
  %v1494 = vadd.f32 %v470, %v982
  %v1495 = vadd.f32 %v471, %v983
  %v1496 = vadd.f32 %v472, %v984
  %v1497 = vadd.f32 %v473, %v985
  %v1498 = vadd.f32 %v474, %v986
  %v1499 = vadd.f32 %v475, %v987
  %v1500 = vadd.f32 %v476, %v988
  %v1501 = vadd.f32 %v477, %v989
  %v1502 = vadd.f32 %v478, %v990
  %v1503 = vadd.f32 %v479, %v991
  %v1504 = vadd.f32 %v480, %v992
  %v1505 = vadd.f32 %v481, %v993
  %v1506 = vadd.f32 %v482, %v994
  %v1507 = vadd.f32 %v483, %v995
  %v1508 = vadd.f32 %v484, %v996
  %v1509 = vadd.f32 %v485, %v997
  %v1510 = vadd.f32 %v486, %v998
  %v1511 = vadd.f32 %v487, %v999
  %v1512 = vadd.f32 %v488, %v1000
  %v1513 = vadd.f32 %v489, %v1001
  %v1514 = vadd.f32 %v490, %v1002
  %v1515 = vadd.f32 %v491, %v1003
  %v1516 = vadd.f32 %v492, %v1004
  %v1517 = vadd.f32 %v493, %v1005
  %v1518 = vadd.f32 %v494, %v1006
  %v1519 = vadd.f32 %v495, %v1007
  %v1520 = vadd.f32 %v496, %v1008
  %v1521 = vadd.f32 %v497, %v1009
  %v1522 = vadd.f32 %v498, %v1010
  %v1523 = vadd.f32 %v499, %v1011
  %v1524 = vadd.f32 %v500, %v1012
  %v1525 = vadd.f32 %v501, %v1013
  %v1526 = vadd.f32 %v502, %v1014
  %v1527 = vadd.f32 %v503, %v1015
  %v1528 = vadd.f32 %v504, %v1016
  %v1529 = vadd.f32 %v505, %v1017
  %v1530 = vadd.f32 %v506, %v1018
  %v1531 = vadd.f32 %v507, %v1019
  %v1532 = vadd.f32 %v508, %v1020
  %v1533 = vadd.f32 %v509, %v1021
  %v1534 = vadd.f32 %v510, %v1022
  %v1535 = vadd.f32 %v511, %v1023
  %v1536 = vadd.f32 %v512, %v1024
  %v1537 = vadd.f32 %v513, %v1025
  %v1538 = vadd.f32 %v514, %v1026
  %v1539 = vadd.f32 %v515, %v1027
  %v1540 = vadd.f32 %v516, %v1028
  %v1541 = vadd.f32 %v517, %v1029
  %v1542 = vadd.f32 %v518, %v1030
  %v1543 = vadd.f32 %v519, %v1031
  %v1544 = vadd.f32 %v520, %v1032
  %v1545 = vadd.f32 %v521, %v1033
  %v1546 = vadd.f32 %v522, %v1034
  %v1547 = vmax.f32 %v1035, 0.0
  %v1548 = vmax.f32 %v1036, 0.0
  %v1549 = vmax.f32 %v1037, 0.0
  %v1550 = vmax.f32 %v1038, 0.0
  %v1551 = vmax.f32 %v1039, 0.0
  %v1552 = vmax.f32 %v1040, 0.0
  %v1553 = vmax.f32 %v1041, 0.0
  %v1554 = vmax.f32 %v1042, 0.0
  %v1555 = vmax.f32 %v1043, 0.0
  %v1556 = vmax.f32 %v1044, 0.0
  %v1557 = vmax.f32 %v1045, 0.0
  %v1558 = vmax.f32 %v1046, 0.0
  %v1559 = vmax.f32 %v1047, 0.0
  %v1560 = vmax.f32 %v1048, 0.0
  %v1561 = vmax.f32 %v1049, 0.0
  %v1562 = vmax.f32 %v1050, 0.0
  %v1563 = vmax.f32 %v1051, 0.0
  %v1564 = vmax.f32 %v1052, 0.0
  %v1565 = vmax.f32 %v1053, 0.0
  %v1566 = vmax.f32 %v1054, 0.0
  %v1567 = vmax.f32 %v1055, 0.0
  %v1568 = vmax.f32 %v1056, 0.0
  %v1569 = vmax.f32 %v1057, 0.0
  %v1570 = vmax.f32 %v1058, 0.0
  %v1571 = vmax.f32 %v1059, 0.0
  %v1572 = vmax.f32 %v1060, 0.0
  %v1573 = vmax.f32 %v1061, 0.0
  %v1574 = vmax.f32 %v1062, 0.0
  %v1575 = vmax.f32 %v1063, 0.0
  %v1576 = vmax.f32 %v1064, 0.0
  %v1577 = vmax.f32 %v1065, 0.0
  %v1578 = vmax.f32 %v1066, 0.0
  %v1579 = vmax.f32 %v1067, 0.0
  %v1580 = vmax.f32 %v1068, 0.0
  %v1581 = vmax.f32 %v1069, 0.0
  %v1582 = vmax.f32 %v1070, 0.0
  %v1583 = vmax.f32 %v1071, 0.0
  %v1584 = vmax.f32 %v1072, 0.0
  %v1585 = vmax.f32 %v1073, 0.0
  %v1586 = vmax.f32 %v1074, 0.0
  %v1587 = vmax.f32 %v1075, 0.0
  %v1588 = vmax.f32 %v1076, 0.0
  %v1589 = vmax.f32 %v1077, 0.0
  %v1590 = vmax.f32 %v1078, 0.0
  %v1591 = vmax.f32 %v1079, 0.0
  %v1592 = vmax.f32 %v1080, 0.0
  %v1593 = vmax.f32 %v1081, 0.0
  %v1594 = vmax.f32 %v1082, 0.0
  %v1595 = vmax.f32 %v1083, 0.0
  %v1596 = vmax.f32 %v1084, 0.0
  %v1597 = vmax.f32 %v1085, 0.0
  %v1598 = vmax.f32 %v1086, 0.0
  %v1599 = vmax.f32 %v1087, 0.0
  %v1600 = vmax.f32 %v1088, 0.0
  %v1601 = vmax.f32 %v1089, 0.0
  %v1602 = vmax.f32 %v1090, 0.0
  %v1603 = vmax.f32 %v1091, 0.0
  %v1604 = vmax.f32 %v1092, 0.0
  %v1605 = vmax.f32 %v1093, 0.0
  %v1606 = vmax.f32 %v1094, 0.0
  %v1607 = vmax.f32 %v1095, 0.0
  %v1608 = vmax.f32 %v1096, 0.0
  %v1609 = vmax.f32 %v1097, 0.0
  %v1610 = vmax.f32 %v1098, 0.0
  %v1611 = vmax.f32 %v1099, 0.0
  %v1612 = vmax.f32 %v1100, 0.0
  %v1613 = vmax.f32 %v1101, 0.0
  %v1614 = vmax.f32 %v1102, 0.0
  %v1615 = vmax.f32 %v1103, 0.0
  %v1616 = vmax.f32 %v1104, 0.0
  %v1617 = vmax.f32 %v1105, 0.0
  %v1618 = vmax.f32 %v1106, 0.0
  %v1619 = vmax.f32 %v1107, 0.0
  %v1620 = vmax.f32 %v1108, 0.0
  %v1621 = vmax.f32 %v1109, 0.0
  %v1622 = vmax.f32 %v1110, 0.0
  %v1623 = vmax.f32 %v1111, 0.0
  %v1624 = vmax.f32 %v1112, 0.0
  %v1625 = vmax.f32 %v1113, 0.0
  %v1626 = vmax.f32 %v1114, 0.0
  %v1627 = vmax.f32 %v1115, 0.0
  %v1628 = vmax.f32 %v1116, 0.0
  %v1629 = vmax.f32 %v1117, 0.0
  %v1630 = vmax.f32 %v1118, 0.0
  %v1631 = vmax.f32 %v1119, 0.0
  %v1632 = vmax.f32 %v1120, 0.0
  %v1633 = vmax.f32 %v1121, 0.0
  %v1634 = vmax.f32 %v1122, 0.0
  %v1635 = vmax.f32 %v1123, 0.0
  %v1636 = vmax.f32 %v1124, 0.0
  %v1637 = vmax.f32 %v1125, 0.0
  %v1638 = vmax.f32 %v1126, 0.0
  %v1639 = vmax.f32 %v1127, 0.0
  %v1640 = vmax.f32 %v1128, 0.0
  %v1641 = vmax.f32 %v1129, 0.0
  %v1642 = vmax.f32 %v1130, 0.0
  %v1643 = vmax.f32 %v1131, 0.0
  %v1644 = vmax.f32 %v1132, 0.0
  %v1645 = vmax.f32 %v1133, 0.0
  %v1646 = vmax.f32 %v1134, 0.0
  %v1647 = vmax.f32 %v1135, 0.0
  %v1648 = vmax.f32 %v1136, 0.0
  %v1649 = vmax.f32 %v1137, 0.0
  %v1650 = vmax.f32 %v1138, 0.0
  %v1651 = vmax.f32 %v1139, 0.0
  %v1652 = vmax.f32 %v1140, 0.0
  %v1653 = vmax.f32 %v1141, 0.0
  %v1654 = vmax.f32 %v1142, 0.0
  %v1655 = vmax.f32 %v1143, 0.0
  %v1656 = vmax.f32 %v1144, 0.0
  %v1657 = vmax.f32 %v1145, 0.0
  %v1658 = vmax.f32 %v1146, 0.0
  %v1659 = vmax.f32 %v1147, 0.0
  %v1660 = vmax.f32 %v1148, 0.0
  %v1661 = vmax.f32 %v1149, 0.0
  %v1662 = vmax.f32 %v1150, 0.0
  %v1663 = vmax.f32 %v1151, 0.0
  %v1664 = vmax.f32 %v1152, 0.0
  %v1665 = vmax.f32 %v1153, 0.0
  %v1666 = vmax.f32 %v1154, 0.0
  %v1667 = vmax.f32 %v1155, 0.0
  %v1668 = vmax.f32 %v1156, 0.0
  %v1669 = vmax.f32 %v1157, 0.0
  %v1670 = vmax.f32 %v1158, 0.0
  %v1671 = vmax.f32 %v1159, 0.0
  %v1672 = vmax.f32 %v1160, 0.0
  %v1673 = vmax.f32 %v1161, 0.0
  %v1674 = vmax.f32 %v1162, 0.0
  %v1675 = vmax.f32 %v1163, 0.0
  %v1676 = vmax.f32 %v1164, 0.0
  %v1677 = vmax.f32 %v1165, 0.0
  %v1678 = vmax.f32 %v1166, 0.0
  %v1679 = vmax.f32 %v1167, 0.0
  %v1680 = vmax.f32 %v1168, 0.0
  %v1681 = vmax.f32 %v1169, 0.0
  %v1682 = vmax.f32 %v1170, 0.0
  %v1683 = vmax.f32 %v1171, 0.0
  %v1684 = vmax.f32 %v1172, 0.0
  %v1685 = vmax.f32 %v1173, 0.0
  %v1686 = vmax.f32 %v1174, 0.0
  %v1687 = vmax.f32 %v1175, 0.0
  %v1688 = vmax.f32 %v1176, 0.0
  %v1689 = vmax.f32 %v1177, 0.0
  %v1690 = vmax.f32 %v1178, 0.0
  %v1691 = vmax.f32 %v1179, 0.0
  %v1692 = vmax.f32 %v1180, 0.0
  %v1693 = vmax.f32 %v1181, 0.0
  %v1694 = vmax.f32 %v1182, 0.0
  %v1695 = vmax.f32 %v1183, 0.0
  %v1696 = vmax.f32 %v1184, 0.0
  %v1697 = vmax.f32 %v1185, 0.0
  %v1698 = vmax.f32 %v1186, 0.0
  %v1699 = vmax.f32 %v1187, 0.0
  %v1700 = vmax.f32 %v1188, 0.0
  %v1701 = vmax.f32 %v1189, 0.0
  %v1702 = vmax.f32 %v1190, 0.0
  %v1703 = vmax.f32 %v1191, 0.0
  %v1704 = vmax.f32 %v1192, 0.0
  %v1705 = vmax.f32 %v1193, 0.0
  %v1706 = vmax.f32 %v1194, 0.0
  %v1707 = vmax.f32 %v1195, 0.0
  %v1708 = vmax.f32 %v1196, 0.0
  %v1709 = vmax.f32 %v1197, 0.0
  %v1710 = vmax.f32 %v1198, 0.0
  %v1711 = vmax.f32 %v1199, 0.0
  %v1712 = vmax.f32 %v1200, 0.0
  %v1713 = vmax.f32 %v1201, 0.0
  %v1714 = vmax.f32 %v1202, 0.0
  %v1715 = vmax.f32 %v1203, 0.0
  %v1716 = vmax.f32 %v1204, 0.0
  %v1717 = vmax.f32 %v1205, 0.0
  %v1718 = vmax.f32 %v1206, 0.0
  %v1719 = vmax.f32 %v1207, 0.0
  %v1720 = vmax.f32 %v1208, 0.0
  %v1721 = vmax.f32 %v1209, 0.0
  %v1722 = vmax.f32 %v1210, 0.0
  %v1723 = vmax.f32 %v1211, 0.0
  %v1724 = vmax.f32 %v1212, 0.0
  %v1725 = vmax.f32 %v1213, 0.0
  %v1726 = vmax.f32 %v1214, 0.0
  %v1727 = vmax.f32 %v1215, 0.0
  %v1728 = vmax.f32 %v1216, 0.0
  %v1729 = vmax.f32 %v1217, 0.0
  %v1730 = vmax.f32 %v1218, 0.0
  %v1731 = vmax.f32 %v1219, 0.0
  %v1732 = vmax.f32 %v1220, 0.0
  %v1733 = vmax.f32 %v1221, 0.0
  %v1734 = vmax.f32 %v1222, 0.0
  %v1735 = vmax.f32 %v1223, 0.0
  %v1736 = vmax.f32 %v1224, 0.0
  %v1737 = vmax.f32 %v1225, 0.0
  %v1738 = vmax.f32 %v1226, 0.0
  %v1739 = vmax.f32 %v1227, 0.0
  %v1740 = vmax.f32 %v1228, 0.0
  %v1741 = vmax.f32 %v1229, 0.0
  %v1742 = vmax.f32 %v1230, 0.0
  %v1743 = vmax.f32 %v1231, 0.0
  %v1744 = vmax.f32 %v1232, 0.0
  %v1745 = vmax.f32 %v1233, 0.0
  %v1746 = vmax.f32 %v1234, 0.0
  %v1747 = vmax.f32 %v1235, 0.0
  %v1748 = vmax.f32 %v1236, 0.0
  %v1749 = vmax.f32 %v1237, 0.0
  %v1750 = vmax.f32 %v1238, 0.0
  %v1751 = vmax.f32 %v1239, 0.0
  %v1752 = vmax.f32 %v1240, 0.0
  %v1753 = vmax.f32 %v1241, 0.0
  %v1754 = vmax.f32 %v1242, 0.0
  %v1755 = vmax.f32 %v1243, 0.0
  %v1756 = vmax.f32 %v1244, 0.0
  %v1757 = vmax.f32 %v1245, 0.0
  %v1758 = vmax.f32 %v1246, 0.0
  %v1759 = vmax.f32 %v1247, 0.0
  %v1760 = vmax.f32 %v1248, 0.0
  %v1761 = vmax.f32 %v1249, 0.0
  %v1762 = vmax.f32 %v1250, 0.0
  %v1763 = vmax.f32 %v1251, 0.0
  %v1764 = vmax.f32 %v1252, 0.0
  %v1765 = vmax.f32 %v1253, 0.0
  %v1766 = vmax.f32 %v1254, 0.0
  %v1767 = vmax.f32 %v1255, 0.0
  %v1768 = vmax.f32 %v1256, 0.0
  %v1769 = vmax.f32 %v1257, 0.0
  %v1770 = vmax.f32 %v1258, 0.0
  %v1771 = vmax.f32 %v1259, 0.0
  %v1772 = vmax.f32 %v1260, 0.0
  %v1773 = vmax.f32 %v1261, 0.0
  %v1774 = vmax.f32 %v1262, 0.0
  %v1775 = vmax.f32 %v1263, 0.0
  %v1776 = vmax.f32 %v1264, 0.0
  %v1777 = vmax.f32 %v1265, 0.0
  %v1778 = vmax.f32 %v1266, 0.0
  %v1779 = vmax.f32 %v1267, 0.0
  %v1780 = vmax.f32 %v1268, 0.0
  %v1781 = vmax.f32 %v1269, 0.0
  %v1782 = vmax.f32 %v1270, 0.0
  %v1783 = vmax.f32 %v1271, 0.0
  %v1784 = vmax.f32 %v1272, 0.0
  %v1785 = vmax.f32 %v1273, 0.0
  %v1786 = vmax.f32 %v1274, 0.0
  %v1787 = vmax.f32 %v1275, 0.0
  %v1788 = vmax.f32 %v1276, 0.0
  %v1789 = vmax.f32 %v1277, 0.0
  %v1790 = vmax.f32 %v1278, 0.0
  %v1791 = vmax.f32 %v1279, 0.0
  %v1792 = vmax.f32 %v1280, 0.0
  %v1793 = vmax.f32 %v1281, 0.0
  %v1794 = vmax.f32 %v1282, 0.0
  %v1795 = vmax.f32 %v1283, 0.0
  %v1796 = vmax.f32 %v1284, 0.0
  %v1797 = vmax.f32 %v1285, 0.0
  %v1798 = vmax.f32 %v1286, 0.0
  %v1799 = vmax.f32 %v1287, 0.0
  %v1800 = vmax.f32 %v1288, 0.0
  %v1801 = vmax.f32 %v1289, 0.0
  %v1802 = vmax.f32 %v1290, 0.0
  %v1803 = vmax.f32 %v1291, 0.0
  %v1804 = vmax.f32 %v1292, 0.0
  %v1805 = vmax.f32 %v1293, 0.0
  %v1806 = vmax.f32 %v1294, 0.0
  %v1807 = vmax.f32 %v1295, 0.0
  %v1808 = vmax.f32 %v1296, 0.0
  %v1809 = vmax.f32 %v1297, 0.0
  %v1810 = vmax.f32 %v1298, 0.0
  %v1811 = vmax.f32 %v1299, 0.0
  %v1812 = vmax.f32 %v1300, 0.0
  %v1813 = vmax.f32 %v1301, 0.0
  %v1814 = vmax.f32 %v1302, 0.0
  %v1815 = vmax.f32 %v1303, 0.0
  %v1816 = vmax.f32 %v1304, 0.0
  %v1817 = vmax.f32 %v1305, 0.0
  %v1818 = vmax.f32 %v1306, 0.0
  %v1819 = vmax.f32 %v1307, 0.0
  %v1820 = vmax.f32 %v1308, 0.0
  %v1821 = vmax.f32 %v1309, 0.0
  %v1822 = vmax.f32 %v1310, 0.0
  %v1823 = vmax.f32 %v1311, 0.0
  %v1824 = vmax.f32 %v1312, 0.0
  %v1825 = vmax.f32 %v1313, 0.0
  %v1826 = vmax.f32 %v1314, 0.0
  %v1827 = vmax.f32 %v1315, 0.0
  %v1828 = vmax.f32 %v1316, 0.0
  %v1829 = vmax.f32 %v1317, 0.0
  %v1830 = vmax.f32 %v1318, 0.0
  %v1831 = vmax.f32 %v1319, 0.0
  %v1832 = vmax.f32 %v1320, 0.0
  %v1833 = vmax.f32 %v1321, 0.0
  %v1834 = vmax.f32 %v1322, 0.0
  %v1835 = vmax.f32 %v1323, 0.0
  %v1836 = vmax.f32 %v1324, 0.0
  %v1837 = vmax.f32 %v1325, 0.0
  %v1838 = vmax.f32 %v1326, 0.0
  %v1839 = vmax.f32 %v1327, 0.0
  %v1840 = vmax.f32 %v1328, 0.0
  %v1841 = vmax.f32 %v1329, 0.0
  %v1842 = vmax.f32 %v1330, 0.0
  %v1843 = vmax.f32 %v1331, 0.0
  %v1844 = vmax.f32 %v1332, 0.0
  %v1845 = vmax.f32 %v1333, 0.0
  %v1846 = vmax.f32 %v1334, 0.0
  %v1847 = vmax.f32 %v1335, 0.0
  %v1848 = vmax.f32 %v1336, 0.0
  %v1849 = vmax.f32 %v1337, 0.0
  %v1850 = vmax.f32 %v1338, 0.0
  %v1851 = vmax.f32 %v1339, 0.0
  %v1852 = vmax.f32 %v1340, 0.0
  %v1853 = vmax.f32 %v1341, 0.0
  %v1854 = vmax.f32 %v1342, 0.0
  %v1855 = vmax.f32 %v1343, 0.0
  %v1856 = vmax.f32 %v1344, 0.0
  %v1857 = vmax.f32 %v1345, 0.0
  %v1858 = vmax.f32 %v1346, 0.0
  %v1859 = vmax.f32 %v1347, 0.0
  %v1860 = vmax.f32 %v1348, 0.0
  %v1861 = vmax.f32 %v1349, 0.0
  %v1862 = vmax.f32 %v1350, 0.0
  %v1863 = vmax.f32 %v1351, 0.0
  %v1864 = vmax.f32 %v1352, 0.0
  %v1865 = vmax.f32 %v1353, 0.0
  %v1866 = vmax.f32 %v1354, 0.0
  %v1867 = vmax.f32 %v1355, 0.0
  %v1868 = vmax.f32 %v1356, 0.0
  %v1869 = vmax.f32 %v1357, 0.0
  %v1870 = vmax.f32 %v1358, 0.0
  %v1871 = vmax.f32 %v1359, 0.0
  %v1872 = vmax.f32 %v1360, 0.0
  %v1873 = vmax.f32 %v1361, 0.0
  %v1874 = vmax.f32 %v1362, 0.0
  %v1875 = vmax.f32 %v1363, 0.0
  %v1876 = vmax.f32 %v1364, 0.0
  %v1877 = vmax.f32 %v1365, 0.0
  %v1878 = vmax.f32 %v1366, 0.0
  %v1879 = vmax.f32 %v1367, 0.0
  %v1880 = vmax.f32 %v1368, 0.0
  %v1881 = vmax.f32 %v1369, 0.0
  %v1882 = vmax.f32 %v1370, 0.0
  %v1883 = vmax.f32 %v1371, 0.0
  %v1884 = vmax.f32 %v1372, 0.0
  %v1885 = vmax.f32 %v1373, 0.0
  %v1886 = vmax.f32 %v1374, 0.0
  %v1887 = vmax.f32 %v1375, 0.0
  %v1888 = vmax.f32 %v1376, 0.0
  %v1889 = vmax.f32 %v1377, 0.0
  %v1890 = vmax.f32 %v1378, 0.0
  %v1891 = vmax.f32 %v1379, 0.0
  %v1892 = vmax.f32 %v1380, 0.0
  %v1893 = vmax.f32 %v1381, 0.0
  %v1894 = vmax.f32 %v1382, 0.0
  %v1895 = vmax.f32 %v1383, 0.0
  %v1896 = vmax.f32 %v1384, 0.0
  %v1897 = vmax.f32 %v1385, 0.0
  %v1898 = vmax.f32 %v1386, 0.0
  %v1899 = vmax.f32 %v1387, 0.0
  %v1900 = vmax.f32 %v1388, 0.0
  %v1901 = vmax.f32 %v1389, 0.0
  %v1902 = vmax.f32 %v1390, 0.0
  %v1903 = vmax.f32 %v1391, 0.0
  %v1904 = vmax.f32 %v1392, 0.0
  %v1905 = vmax.f32 %v1393, 0.0
  %v1906 = vmax.f32 %v1394, 0.0
  %v1907 = vmax.f32 %v1395, 0.0
  %v1908 = vmax.f32 %v1396, 0.0
  %v1909 = vmax.f32 %v1397, 0.0
  %v1910 = vmax.f32 %v1398, 0.0
  %v1911 = vmax.f32 %v1399, 0.0
  %v1912 = vmax.f32 %v1400, 0.0
  %v1913 = vmax.f32 %v1401, 0.0
  %v1914 = vmax.f32 %v1402, 0.0
  %v1915 = vmax.f32 %v1403, 0.0
  %v1916 = vmax.f32 %v1404, 0.0
  %v1917 = vmax.f32 %v1405, 0.0
  %v1918 = vmax.f32 %v1406, 0.0
  %v1919 = vmax.f32 %v1407, 0.0
  %v1920 = vmax.f32 %v1408, 0.0
  %v1921 = vmax.f32 %v1409, 0.0
  %v1922 = vmax.f32 %v1410, 0.0
  %v1923 = vmax.f32 %v1411, 0.0
  %v1924 = vmax.f32 %v1412, 0.0
  %v1925 = vmax.f32 %v1413, 0.0
  %v1926 = vmax.f32 %v1414, 0.0
  %v1927 = vmax.f32 %v1415, 0.0
  %v1928 = vmax.f32 %v1416, 0.0
  %v1929 = vmax.f32 %v1417, 0.0
  %v1930 = vmax.f32 %v1418, 0.0
  %v1931 = vmax.f32 %v1419, 0.0
  %v1932 = vmax.f32 %v1420, 0.0
  %v1933 = vmax.f32 %v1421, 0.0
  %v1934 = vmax.f32 %v1422, 0.0
  %v1935 = vmax.f32 %v1423, 0.0
  %v1936 = vmax.f32 %v1424, 0.0
  %v1937 = vmax.f32 %v1425, 0.0
  %v1938 = vmax.f32 %v1426, 0.0
  %v1939 = vmax.f32 %v1427, 0.0
  %v1940 = vmax.f32 %v1428, 0.0
  %v1941 = vmax.f32 %v1429, 0.0
  %v1942 = vmax.f32 %v1430, 0.0
  %v1943 = vmax.f32 %v1431, 0.0
  %v1944 = vmax.f32 %v1432, 0.0
  %v1945 = vmax.f32 %v1433, 0.0
  %v1946 = vmax.f32 %v1434, 0.0
  %v1947 = vmax.f32 %v1435, 0.0
  %v1948 = vmax.f32 %v1436, 0.0
  %v1949 = vmax.f32 %v1437, 0.0
  %v1950 = vmax.f32 %v1438, 0.0
  %v1951 = vmax.f32 %v1439, 0.0
  %v1952 = vmax.f32 %v1440, 0.0
  %v1953 = vmax.f32 %v1441, 0.0
  %v1954 = vmax.f32 %v1442, 0.0
  %v1955 = vmax.f32 %v1443, 0.0
  %v1956 = vmax.f32 %v1444, 0.0
  %v1957 = vmax.f32 %v1445, 0.0
  %v1958 = vmax.f32 %v1446, 0.0
  %v1959 = vmax.f32 %v1447, 0.0
  %v1960 = vmax.f32 %v1448, 0.0
  %v1961 = vmax.f32 %v1449, 0.0
  %v1962 = vmax.f32 %v1450, 0.0
  %v1963 = vmax.f32 %v1451, 0.0
  %v1964 = vmax.f32 %v1452, 0.0
  %v1965 = vmax.f32 %v1453, 0.0
  %v1966 = vmax.f32 %v1454, 0.0
  %v1967 = vmax.f32 %v1455, 0.0
  %v1968 = vmax.f32 %v1456, 0.0
  %v1969 = vmax.f32 %v1457, 0.0
  %v1970 = vmax.f32 %v1458, 0.0
  %v1971 = vmax.f32 %v1459, 0.0
  %v1972 = vmax.f32 %v1460, 0.0
  %v1973 = vmax.f32 %v1461, 0.0
  %v1974 = vmax.f32 %v1462, 0.0
  %v1975 = vmax.f32 %v1463, 0.0
  %v1976 = vmax.f32 %v1464, 0.0
  %v1977 = vmax.f32 %v1465, 0.0
  %v1978 = vmax.f32 %v1466, 0.0
  %v1979 = vmax.f32 %v1467, 0.0
  %v1980 = vmax.f32 %v1468, 0.0
  %v1981 = vmax.f32 %v1469, 0.0
  %v1982 = vmax.f32 %v1470, 0.0
  %v1983 = vmax.f32 %v1471, 0.0
  %v1984 = vmax.f32 %v1472, 0.0
  %v1985 = vmax.f32 %v1473, 0.0
  %v1986 = vmax.f32 %v1474, 0.0
  %v1987 = vmax.f32 %v1475, 0.0
  %v1988 = vmax.f32 %v1476, 0.0
  %v1989 = vmax.f32 %v1477, 0.0
  %v1990 = vmax.f32 %v1478, 0.0
  %v1991 = vmax.f32 %v1479, 0.0
  %v1992 = vmax.f32 %v1480, 0.0
  %v1993 = vmax.f32 %v1481, 0.0
  %v1994 = vmax.f32 %v1482, 0.0
  %v1995 = vmax.f32 %v1483, 0.0
  %v1996 = vmax.f32 %v1484, 0.0
  %v1997 = vmax.f32 %v1485, 0.0
  %v1998 = vmax.f32 %v1486, 0.0
  %v1999 = vmax.f32 %v1487, 0.0
  %v2000 = vmax.f32 %v1488, 0.0
  %v2001 = vmax.f32 %v1489, 0.0
  %v2002 = vmax.f32 %v1490, 0.0
  %v2003 = vmax.f32 %v1491, 0.0
  %v2004 = vmax.f32 %v1492, 0.0
  %v2005 = vmax.f32 %v1493, 0.0
  %v2006 = vmax.f32 %v1494, 0.0
  %v2007 = vmax.f32 %v1495, 0.0
  %v2008 = vmax.f32 %v1496, 0.0
  %v2009 = vmax.f32 %v1497, 0.0
  %v2010 = vmax.f32 %v1498, 0.0
  %v2011 = vmax.f32 %v1499, 0.0
  %v2012 = vmax.f32 %v1500, 0.0
  %v2013 = vmax.f32 %v1501, 0.0
  %v2014 = vmax.f32 %v1502, 0.0
  %v2015 = vmax.f32 %v1503, 0.0
  %v2016 = vmax.f32 %v1504, 0.0
  %v2017 = vmax.f32 %v1505, 0.0
  %v2018 = vmax.f32 %v1506, 0.0
  %v2019 = vmax.f32 %v1507, 0.0
  %v2020 = vmax.f32 %v1508, 0.0
  %v2021 = vmax.f32 %v1509, 0.0
  %v2022 = vmax.f32 %v1510, 0.0
  %v2023 = vmax.f32 %v1511, 0.0
  %v2024 = vmax.f32 %v1512, 0.0
  %v2025 = vmax.f32 %v1513, 0.0
  %v2026 = vmax.f32 %v1514, 0.0
  %v2027 = vmax.f32 %v1515, 0.0
  %v2028 = vmax.f32 %v1516, 0.0
  %v2029 = vmax.f32 %v1517, 0.0
  %v2030 = vmax.f32 %v1518, 0.0
  %v2031 = vmax.f32 %v1519, 0.0
  %v2032 = vmax.f32 %v1520, 0.0
  %v2033 = vmax.f32 %v1521, 0.0
  %v2034 = vmax.f32 %v1522, 0.0
  %v2035 = vmax.f32 %v1523, 0.0
  %v2036 = vmax.f32 %v1524, 0.0
  %v2037 = vmax.f32 %v1525, 0.0
  %v2038 = vmax.f32 %v1526, 0.0
  %v2039 = vmax.f32 %v1527, 0.0
  %v2040 = vmax.f32 %v1528, 0.0
  %v2041 = vmax.f32 %v1529, 0.0
  %v2042 = vmax.f32 %v1530, 0.0
  %v2043 = vmax.f32 %v1531, 0.0
  %v2044 = vmax.f32 %v1532, 0.0
  %v2045 = vmax.f32 %v1533, 0.0
  %v2046 = vmax.f32 %v1534, 0.0
  %v2047 = vmax.f32 %v1535, 0.0
  %v2048 = vmax.f32 %v1536, 0.0
  %v2049 = vmax.f32 %v1537, 0.0
  %v2050 = vmax.f32 %v1538, 0.0
  %v2051 = vmax.f32 %v1539, 0.0
  %v2052 = vmax.f32 %v1540, 0.0
  %v2053 = vmax.f32 %v1541, 0.0
  %v2054 = vmax.f32 %v1542, 0.0
  %v2055 = vmax.f32 %v1543, 0.0
  %v2056 = vmax.f32 %v1544, 0.0
  %v2057 = vmax.f32 %v1545, 0.0
  %v2058 = vmax.f32 %v1546, 0.0
  %vm2059 = vcmask 55296
  %2060 = vst.msk [vmem:[%s2] sm:$0x7f] %vm2059, %v1547
  %2061 = vst.msk [vmem:[%s2 + $0x8] sm:$0x7f] %vm2059, %v1548
  %2062 = vst.msk [vmem:[%s2 + $0x10] sm:$0x7f] %vm2059, %v1549
  %2063 = vst.msk [vmem:[%s2 + $0x18] sm:$0x7f] %vm2059, %v1550
  %2064 = vst.msk [vmem:[%s2 + $0x20] sm:$0x7f] %vm2059, %v1551
  %2065 = vst.msk [vmem:[%s2 + $0x28] sm:$0x7f] %vm2059, %v1552
  %2066 = vst.msk [vmem:[%s2 + $0x30] sm:$0x7f] %vm2059, %v1553
  %2067 = vst.msk [vmem:[%s2 + $0x38] sm:$0x7f] %vm2059, %v1554
  %2068 = vst.msk [vmem:[%s2 + $0x40] sm:$0x7f] %vm2059, %v1555
  %2069 = vst.msk [vmem:[%s2 + $0x48] sm:$0x7f] %vm2059, %v1556
  %2070 = vst.msk [vmem:[%s2 + $0x50] sm:$0x7f] %vm2059, %v1557
  %2071 = vst.msk [vmem:[%s2 + $0x58] sm:$0x7f] %vm2059, %v1558
  %2072 = vst.msk [vmem:[%s2 + $0x60] sm:$0x7f] %vm2059, %v1559
  %2073 = vst.msk [vmem:[%s2 + $0x68] sm:$0x7f] %vm2059, %v1560
  %2074 = vst.msk [vmem:[%s2 + $0x70] sm:$0x7f] %vm2059, %v1561
  %2075 = vst.msk [vmem:[%s2 + $0x78] sm:$0x7f] %vm2059, %v1562
  %2076 = vst.msk [vmem:[%s2 + $0x80] sm:$0x7f] %vm2059, %v1563
  %2077 = vst.msk [vmem:[%s2 + $0x88] sm:$0x7f] %vm2059, %v1564
  %2078 = vst.msk [vmem:[%s2 + $0x90] sm:$0x7f] %vm2059, %v1565
  %2079 = vst.msk [vmem:[%s2 + $0x98] sm:$0x7f] %vm2059, %v1566
  %2080 = vst.msk [vmem:[%s2 + $0xa0] sm:$0x7f] %vm2059, %v1567
  %2081 = vst.msk [vmem:[%s2 + $0xa8] sm:$0x7f] %vm2059, %v1568
  %2082 = vst.msk [vmem:[%s2 + $0xb0] sm:$0x7f] %vm2059, %v1569
  %2083 = vst.msk [vmem:[%s2 + $0xb8] sm:$0x7f] %vm2059, %v1570
  %2084 = vst.msk [vmem:[%s2 + $0xc0] sm:$0x7f] %vm2059, %v1571
  %2085 = vst.msk [vmem:[%s2 + $0xc8] sm:$0x7f] %vm2059, %v1572
  %2086 = vst.msk [vmem:[%s2 + $0xd0] sm:$0x7f] %vm2059, %v1573
  %2087 = vst.msk [vmem:[%s2 + $0xd8] sm:$0x7f] %vm2059, %v1574
  %2088 = vst.msk [vmem:[%s2 + $0xe0] sm:$0x7f] %vm2059, %v1575
  %2089 = vst.msk [vmem:[%s2 + $0xe8] sm:$0x7f] %vm2059, %v1576
  %2090 = vst.msk [vmem:[%s2 + $0xf0] sm:$0x7f] %vm2059, %v1577
  %2091 = vst.msk [vmem:[%s2 + $0xf8] sm:$0x7f] %vm2059, %v1578
  %2092 = vst.msk [vmem:[%s2 + $0x100] sm:$0x7f] %vm2059, %v1579
  %2093 = vst.msk [vmem:[%s2 + $0x108] sm:$0x7f] %vm2059, %v1580
  %2094 = vst.msk [vmem:[%s2 + $0x110] sm:$0x7f] %vm2059, %v1581
  %2095 = vst.msk [vmem:[%s2 + $0x118] sm:$0x7f] %vm2059, %v1582
  %2096 = vst.msk [vmem:[%s2 + $0x120] sm:$0x7f] %vm2059, %v1583
  %2097 = vst.msk [vmem:[%s2 + $0x128] sm:$0x7f] %vm2059, %v1584
  %2098 = vst.msk [vmem:[%s2 + $0x130] sm:$0x7f] %vm2059, %v1585
  %2099 = vst.msk [vmem:[%s2 + $0x138] sm:$0x7f] %vm2059, %v1586
  %2100 = vst.msk [vmem:[%s2 + $0x140] sm:$0x7f] %vm2059, %v1587
  %2101 = vst.msk [vmem:[%s2 + $0x148] sm:$0x7f] %vm2059, %v1588
  %2102 = vst.msk [vmem:[%s2 + $0x150] sm:$0x7f] %vm2059, %v1589
  %2103 = vst.msk [vmem:[%s2 + $0x158] sm:$0x7f] %vm2059, %v1590
  %2104 = vst.msk [vmem:[%s2 + $0x160] sm:$0x7f] %vm2059, %v1591
  %2105 = vst.msk [vmem:[%s2 + $0x168] sm:$0x7f] %vm2059, %v1592
  %2106 = vst.msk [vmem:[%s2 + $0x170] sm:$0x7f] %vm2059, %v1593
  %2107 = vst.msk [vmem:[%s2 + $0x178] sm:$0x7f] %vm2059, %v1594
  %2108 = vst.msk [vmem:[%s2 + $0x180] sm:$0x7f] %vm2059, %v1595
  %2109 = vst.msk [vmem:[%s2 + $0x188] sm:$0x7f] %vm2059, %v1596
  %2110 = vst.msk [vmem:[%s2 + $0x190] sm:$0x7f] %vm2059, %v1597
  %2111 = vst.msk [vmem:[%s2 + $0x198] sm:$0x7f] %vm2059, %v1598
  %2112 = vst.msk [vmem:[%s2 + $0x1a0] sm:$0x7f] %vm2059, %v1599
  %2113 = vst.msk [vmem:[%s2 + $0x1a8] sm:$0x7f] %vm2059, %v1600
  %2114 = vst.msk [vmem:[%s2 + $0x1b0] sm:$0x7f] %vm2059, %v1601
  %2115 = vst.msk [vmem:[%s2 + $0x1b8] sm:$0x7f] %vm2059, %v1602
  %2116 = vst.msk [vmem:[%s2 + $0x1c0] sm:$0x7f] %vm2059, %v1603
  %2117 = vst.msk [vmem:[%s2 + $0x1c8] sm:$0x7f] %vm2059, %v1604
  %2118 = vst.msk [vmem:[%s2 + $0x1d0] sm:$0x7f] %vm2059, %v1605
  %2119 = vst.msk [vmem:[%s2 + $0x1d8] sm:$0x7f] %vm2059, %v1606
  %2120 = vst.msk [vmem:[%s2 + $0x1e0] sm:$0x7f] %vm2059, %v1607
  %2121 = vst.msk [vmem:[%s2 + $0x1e8] sm:$0x7f] %vm2059, %v1608
  %2122 = vst.msk [vmem:[%s2 + $0x1f0] sm:$0x7f] %vm2059, %v1609
  %2123 = vst.msk [vmem:[%s2 + $0x1f8] sm:$0x7f] %vm2059, %v1610
  %2124 = vst.msk [vmem:[%s2 + $0x200] sm:$0x7f] %vm2059, %v1611
  %2125 = vst.msk [vmem:[%s2 + $0x208] sm:$0x7f] %vm2059, %v1612
  %2126 = vst.msk [vmem:[%s2 + $0x210] sm:$0x7f] %vm2059, %v1613
  %2127 = vst.msk [vmem:[%s2 + $0x218] sm:$0x7f] %vm2059, %v1614
  %2128 = vst.msk [vmem:[%s2 + $0x220] sm:$0x7f] %vm2059, %v1615
  %2129 = vst.msk [vmem:[%s2 + $0x228] sm:$0x7f] %vm2059, %v1616
  %2130 = vst.msk [vmem:[%s2 + $0x230] sm:$0x7f] %vm2059, %v1617
  %2131 = vst.msk [vmem:[%s2 + $0x238] sm:$0x7f] %vm2059, %v1618
  %2132 = vst.msk [vmem:[%s2 + $0x240] sm:$0x7f] %vm2059, %v1619
  %2133 = vst.msk [vmem:[%s2 + $0x248] sm:$0x7f] %vm2059, %v1620
  %2134 = vst.msk [vmem:[%s2 + $0x250] sm:$0x7f] %vm2059, %v1621
  %2135 = vst.msk [vmem:[%s2 + $0x258] sm:$0x7f] %vm2059, %v1622
  %2136 = vst.msk [vmem:[%s2 + $0x260] sm:$0x7f] %vm2059, %v1623
  %2137 = vst.msk [vmem:[%s2 + $0x268] sm:$0x7f] %vm2059, %v1624
  %2138 = vst.msk [vmem:[%s2 + $0x270] sm:$0x7f] %vm2059, %v1625
  %2139 = vst.msk [vmem:[%s2 + $0x278] sm:$0x7f] %vm2059, %v1626
  %2140 = vst.msk [vmem:[%s2 + $0x280] sm:$0x7f] %vm2059, %v1627
  %2141 = vst.msk [vmem:[%s2 + $0x288] sm:$0x7f] %vm2059, %v1628
  %2142 = vst.msk [vmem:[%s2 + $0x290] sm:$0x7f] %vm2059, %v1629
  %2143 = vst.msk [vmem:[%s2 + $0x298] sm:$0x7f] %vm2059, %v1630
  %2144 = vst.msk [vmem:[%s2 + $0x2a0] sm:$0x7f] %vm2059, %v1631
  %2145 = vst.msk [vmem:[%s2 + $0x2a8] sm:$0x7f] %vm2059, %v1632
  %2146 = vst.msk [vmem:[%s2 + $0x2b0] sm:$0x7f] %vm2059, %v1633
  %2147 = vst.msk [vmem:[%s2 + $0x2b8] sm:$0x7f] %vm2059, %v1634
  %2148 = vst.msk [vmem:[%s2 + $0x2c0] sm:$0x7f] %vm2059, %v1635
  %2149 = vst.msk [vmem:[%s2 + $0x2c8] sm:$0x7f] %vm2059, %v1636
  %2150 = vst.msk [vmem:[%s2 + $0x2d0] sm:$0x7f] %vm2059, %v1637
  %2151 = vst.msk [vmem:[%s2 + $0x2d8] sm:$0x7f] %vm2059, %v1638
  %2152 = vst.msk [vmem:[%s2 + $0x2e0] sm:$0x7f] %vm2059, %v1639
  %2153 = vst.msk [vmem:[%s2 + $0x2e8] sm:$0x7f] %vm2059, %v1640
  %2154 = vst.msk [vmem:[%s2 + $0x2f0] sm:$0x7f] %vm2059, %v1641
  %2155 = vst.msk [vmem:[%s2 + $0x2f8] sm:$0x7f] %vm2059, %v1642
  %2156 = vst.msk [vmem:[%s2 + $0x300] sm:$0x7f] %vm2059, %v1643
  %2157 = vst.msk [vmem:[%s2 + $0x308] sm:$0x7f] %vm2059, %v1644
  %2158 = vst.msk [vmem:[%s2 + $0x310] sm:$0x7f] %vm2059, %v1645
  %2159 = vst.msk [vmem:[%s2 + $0x318] sm:$0x7f] %vm2059, %v1646
  %2160 = vst.msk [vmem:[%s2 + $0x320] sm:$0x7f] %vm2059, %v1647
  %2161 = vst.msk [vmem:[%s2 + $0x328] sm:$0x7f] %vm2059, %v1648
  %2162 = vst.msk [vmem:[%s2 + $0x330] sm:$0x7f] %vm2059, %v1649
  %2163 = vst.msk [vmem:[%s2 + $0x338] sm:$0x7f] %vm2059, %v1650
  %2164 = vst.msk [vmem:[%s2 + $0x340] sm:$0x7f] %vm2059, %v1651
  %2165 = vst.msk [vmem:[%s2 + $0x348] sm:$0x7f] %vm2059, %v1652
  %2166 = vst.msk [vmem:[%s2 + $0x350] sm:$0x7f] %vm2059, %v1653
  %2167 = vst.msk [vmem:[%s2 + $0x358] sm:$0x7f] %vm2059, %v1654
  %2168 = vst.msk [vmem:[%s2 + $0x360] sm:$0x7f] %vm2059, %v1655
  %2169 = vst.msk [vmem:[%s2 + $0x368] sm:$0x7f] %vm2059, %v1656
  %2170 = vst.msk [vmem:[%s2 + $0x370] sm:$0x7f] %vm2059, %v1657
  %2171 = vst.msk [vmem:[%s2 + $0x378] sm:$0x7f] %vm2059, %v1658
  %2172 = vst.msk [vmem:[%s2 + $0x380] sm:$0x7f] %vm2059, %v1659
  %2173 = vst.msk [vmem:[%s2 + $0x388] sm:$0x7f] %vm2059, %v1660
  %2174 = vst.msk [vmem:[%s2 + $0x390] sm:$0x7f] %vm2059, %v1661
  %2175 = vst.msk [vmem:[%s2 + $0x398] sm:$0x7f] %vm2059, %v1662
  %2176 = vst.msk [vmem:[%s2 + $0x3a0] sm:$0x7f] %vm2059, %v1663
  %2177 = vst.msk [vmem:[%s2 + $0x3a8] sm:$0x7f] %vm2059, %v1664
  %2178 = vst.msk [vmem:[%s2 + $0x3b0] sm:$0x7f] %vm2059, %v1665
  %2179 = vst.msk [vmem:[%s2 + $0x3b8] sm:$0x7f] %vm2059, %v1666
  %2180 = vst.msk [vmem:[%s2 + $0x3c0] sm:$0x7f] %vm2059, %v1667
  %2181 = vst.msk [vmem:[%s2 + $0x3c8] sm:$0x7f] %vm2059, %v1668
  %2182 = vst.msk [vmem:[%s2 + $0x3d0] sm:$0x7f] %vm2059, %v1669
  %2183 = vst.msk [vmem:[%s2 + $0x3d8] sm:$0x7f] %vm2059, %v1670
  %2184 = vst.msk [vmem:[%s2 + $0x3e0] sm:$0x7f] %vm2059, %v1671
  %2185 = vst.msk [vmem:[%s2 + $0x3e8] sm:$0x7f] %vm2059, %v1672
  %2186 = vst.msk [vmem:[%s2 + $0x3f0] sm:$0x7f] %vm2059, %v1673
  %2187 = vst.msk [vmem:[%s2 + $0x3f8] sm:$0x7f] %vm2059, %v1674
  %2188 = vst.msk [vmem:[%s2 + $0x400] sm:$0x7f] %vm2059, %v1675
  %2189 = vst.msk [vmem:[%s2 + $0x408] sm:$0x7f] %vm2059, %v1676
  %2190 = vst.msk [vmem:[%s2 + $0x410] sm:$0x7f] %vm2059, %v1677
  %2191 = vst.msk [vmem:[%s2 + $0x418] sm:$0x7f] %vm2059, %v1678
  %2192 = vst.msk [vmem:[%s2 + $0x420] sm:$0x7f] %vm2059, %v1679
  %2193 = vst.msk [vmem:[%s2 + $0x428] sm:$0x7f] %vm2059, %v1680
  %2194 = vst.msk [vmem:[%s2 + $0x430] sm:$0x7f] %vm2059, %v1681
  %2195 = vst.msk [vmem:[%s2 + $0x438] sm:$0x7f] %vm2059, %v1682
  %2196 = vst.msk [vmem:[%s2 + $0x440] sm:$0x7f] %vm2059, %v1683
  %2197 = vst.msk [vmem:[%s2 + $0x448] sm:$0x7f] %vm2059, %v1684
  %2198 = vst.msk [vmem:[%s2 + $0x450] sm:$0x7f] %vm2059, %v1685
  %2199 = vst.msk [vmem:[%s2 + $0x458] sm:$0x7f] %vm2059, %v1686
  %2200 = vst.msk [vmem:[%s2 + $0x460] sm:$0x7f] %vm2059, %v1687
  %2201 = vst.msk [vmem:[%s2 + $0x468] sm:$0x7f] %vm2059, %v1688
  %2202 = vst.msk [vmem:[%s2 + $0x470] sm:$0x7f] %vm2059, %v1689
  %2203 = vst.msk [vmem:[%s2 + $0x478] sm:$0x7f] %vm2059, %v1690
  %2204 = vst.msk [vmem:[%s2 + $0x480] sm:$0x7f] %vm2059, %v1691
  %2205 = vst.msk [vmem:[%s2 + $0x488] sm:$0x7f] %vm2059, %v1692
  %2206 = vst.msk [vmem:[%s2 + $0x490] sm:$0x7f] %vm2059, %v1693
  %2207 = vst.msk [vmem:[%s2 + $0x498] sm:$0x7f] %vm2059, %v1694
  %2208 = vst.msk [vmem:[%s2 + $0x4a0] sm:$0x7f] %vm2059, %v1695
  %2209 = vst.msk [vmem:[%s2 + $0x4a8] sm:$0x7f] %vm2059, %v1696
  %2210 = vst.msk [vmem:[%s2 + $0x4b0] sm:$0x7f] %vm2059, %v1697
  %2211 = vst.msk [vmem:[%s2 + $0x4b8] sm:$0x7f] %vm2059, %v1698
  %2212 = vst.msk [vmem:[%s2 + $0x4c0] sm:$0x7f] %vm2059, %v1699
  %2213 = vst.msk [vmem:[%s2 + $0x4c8] sm:$0x7f] %vm2059, %v1700
  %2214 = vst.msk [vmem:[%s2 + $0x4d0] sm:$0x7f] %vm2059, %v1701
  %2215 = vst.msk [vmem:[%s2 + $0x4d8] sm:$0x7f] %vm2059, %v1702
  %2216 = vst.msk [vmem:[%s2 + $0x4e0] sm:$0x7f] %vm2059, %v1703
  %2217 = vst.msk [vmem:[%s2 + $0x4e8] sm:$0x7f] %vm2059, %v1704
  %2218 = vst.msk [vmem:[%s2 + $0x4f0] sm:$0x7f] %vm2059, %v1705
  %2219 = vst.msk [vmem:[%s2 + $0x4f8] sm:$0x7f] %vm2059, %v1706
  %2220 = vst.msk [vmem:[%s2 + $0x500] sm:$0x7f] %vm2059, %v1707
  %2221 = vst.msk [vmem:[%s2 + $0x508] sm:$0x7f] %vm2059, %v1708
  %2222 = vst.msk [vmem:[%s2 + $0x510] sm:$0x7f] %vm2059, %v1709
  %2223 = vst.msk [vmem:[%s2 + $0x518] sm:$0x7f] %vm2059, %v1710
  %2224 = vst.msk [vmem:[%s2 + $0x520] sm:$0x7f] %vm2059, %v1711
  %2225 = vst.msk [vmem:[%s2 + $0x528] sm:$0x7f] %vm2059, %v1712
  %2226 = vst.msk [vmem:[%s2 + $0x530] sm:$0x7f] %vm2059, %v1713
  %2227 = vst.msk [vmem:[%s2 + $0x538] sm:$0x7f] %vm2059, %v1714
  %2228 = vst.msk [vmem:[%s2 + $0x540] sm:$0x7f] %vm2059, %v1715
  %2229 = vst.msk [vmem:[%s2 + $0x548] sm:$0x7f] %vm2059, %v1716
  %2230 = vst.msk [vmem:[%s2 + $0x550] sm:$0x7f] %vm2059, %v1717
  %2231 = vst.msk [vmem:[%s2 + $0x558] sm:$0x7f] %vm2059, %v1718
  %2232 = vst.msk [vmem:[%s2 + $0x560] sm:$0x7f] %vm2059, %v1719
  %2233 = vst.msk [vmem:[%s2 + $0x568] sm:$0x7f] %vm2059, %v1720
  %2234 = vst.msk [vmem:[%s2 + $0x570] sm:$0x7f] %vm2059, %v1721
  %2235 = vst.msk [vmem:[%s2 + $0x578] sm:$0x7f] %vm2059, %v1722
  %2236 = vst.msk [vmem:[%s2 + $0x580] sm:$0x7f] %vm2059, %v1723
  %2237 = vst.msk [vmem:[%s2 + $0x588] sm:$0x7f] %vm2059, %v1724
  %2238 = vst.msk [vmem:[%s2 + $0x590] sm:$0x7f] %vm2059, %v1725
  %2239 = vst.msk [vmem:[%s2 + $0x598] sm:$0x7f] %vm2059, %v1726
  %2240 = vst.msk [vmem:[%s2 + $0x5a0] sm:$0x7f] %vm2059, %v1727
  %2241 = vst.msk [vmem:[%s2 + $0x5a8] sm:$0x7f] %vm2059, %v1728
  %2242 = vst.msk [vmem:[%s2 + $0x5b0] sm:$0x7f] %vm2059, %v1729
  %2243 = vst.msk [vmem:[%s2 + $0x5b8] sm:$0x7f] %vm2059, %v1730
  %2244 = vst.msk [vmem:[%s2 + $0x5c0] sm:$0x7f] %vm2059, %v1731
  %2245 = vst.msk [vmem:[%s2 + $0x5c8] sm:$0x7f] %vm2059, %v1732
  %2246 = vst.msk [vmem:[%s2 + $0x5d0] sm:$0x7f] %vm2059, %v1733
  %2247 = vst.msk [vmem:[%s2 + $0x5d8] sm:$0x7f] %vm2059, %v1734
  %2248 = vst.msk [vmem:[%s2 + $0x5e0] sm:$0x7f] %vm2059, %v1735
  %2249 = vst.msk [vmem:[%s2 + $0x5e8] sm:$0x7f] %vm2059, %v1736
  %2250 = vst.msk [vmem:[%s2 + $0x5f0] sm:$0x7f] %vm2059, %v1737
  %2251 = vst.msk [vmem:[%s2 + $0x5f8] sm:$0x7f] %vm2059, %v1738
  %2252 = vst.msk [vmem:[%s2 + $0x600] sm:$0x7f] %vm2059, %v1739
  %2253 = vst.msk [vmem:[%s2 + $0x608] sm:$0x7f] %vm2059, %v1740
  %2254 = vst.msk [vmem:[%s2 + $0x610] sm:$0x7f] %vm2059, %v1741
  %2255 = vst.msk [vmem:[%s2 + $0x618] sm:$0x7f] %vm2059, %v1742
  %2256 = vst.msk [vmem:[%s2 + $0x620] sm:$0x7f] %vm2059, %v1743
  %2257 = vst.msk [vmem:[%s2 + $0x628] sm:$0x7f] %vm2059, %v1744
  %2258 = vst.msk [vmem:[%s2 + $0x630] sm:$0x7f] %vm2059, %v1745
  %2259 = vst.msk [vmem:[%s2 + $0x638] sm:$0x7f] %vm2059, %v1746
  %2260 = vst.msk [vmem:[%s2 + $0x640] sm:$0x7f] %vm2059, %v1747
  %2261 = vst.msk [vmem:[%s2 + $0x648] sm:$0x7f] %vm2059, %v1748
  %2262 = vst.msk [vmem:[%s2 + $0x650] sm:$0x7f] %vm2059, %v1749
  %2263 = vst.msk [vmem:[%s2 + $0x658] sm:$0x7f] %vm2059, %v1750
  %2264 = vst.msk [vmem:[%s2 + $0x660] sm:$0x7f] %vm2059, %v1751
  %2265 = vst.msk [vmem:[%s2 + $0x668] sm:$0x7f] %vm2059, %v1752
  %2266 = vst.msk [vmem:[%s2 + $0x670] sm:$0x7f] %vm2059, %v1753
  %2267 = vst.msk [vmem:[%s2 + $0x678] sm:$0x7f] %vm2059, %v1754
  %2268 = vst.msk [vmem:[%s2 + $0x680] sm:$0x7f] %vm2059, %v1755
  %2269 = vst.msk [vmem:[%s2 + $0x688] sm:$0x7f] %vm2059, %v1756
  %2270 = vst.msk [vmem:[%s2 + $0x690] sm:$0x7f] %vm2059, %v1757
  %2271 = vst.msk [vmem:[%s2 + $0x698] sm:$0x7f] %vm2059, %v1758
  %2272 = vst.msk [vmem:[%s2 + $0x6a0] sm:$0x7f] %vm2059, %v1759
  %2273 = vst.msk [vmem:[%s2 + $0x6a8] sm:$0x7f] %vm2059, %v1760
  %2274 = vst.msk [vmem:[%s2 + $0x6b0] sm:$0x7f] %vm2059, %v1761
  %2275 = vst.msk [vmem:[%s2 + $0x6b8] sm:$0x7f] %vm2059, %v1762
  %2276 = vst.msk [vmem:[%s2 + $0x6c0] sm:$0x7f] %vm2059, %v1763
  %2277 = vst.msk [vmem:[%s2 + $0x6c8] sm:$0x7f] %vm2059, %v1764
  %2278 = vst.msk [vmem:[%s2 + $0x6d0] sm:$0x7f] %vm2059, %v1765
  %2279 = vst.msk [vmem:[%s2 + $0x6d8] sm:$0x7f] %vm2059, %v1766
  %2280 = vst.msk [vmem:[%s2 + $0x6e0] sm:$0x7f] %vm2059, %v1767
  %2281 = vst.msk [vmem:[%s2 + $0x6e8] sm:$0x7f] %vm2059, %v1768
  %2282 = vst.msk [vmem:[%s2 + $0x6f0] sm:$0x7f] %vm2059, %v1769
  %2283 = vst.msk [vmem:[%s2 + $0x6f8] sm:$0x7f] %vm2059, %v1770
  %2284 = vst.msk [vmem:[%s2 + $0x700] sm:$0x7f] %vm2059, %v1771
  %2285 = vst.msk [vmem:[%s2 + $0x708] sm:$0x7f] %vm2059, %v1772
  %2286 = vst.msk [vmem:[%s2 + $0x710] sm:$0x7f] %vm2059, %v1773
  %2287 = vst.msk [vmem:[%s2 + $0x718] sm:$0x7f] %vm2059, %v1774
  %2288 = vst.msk [vmem:[%s2 + $0x720] sm:$0x7f] %vm2059, %v1775
  %2289 = vst.msk [vmem:[%s2 + $0x728] sm:$0x7f] %vm2059, %v1776
  %2290 = vst.msk [vmem:[%s2 + $0x730] sm:$0x7f] %vm2059, %v1777
  %2291 = vst.msk [vmem:[%s2 + $0x738] sm:$0x7f] %vm2059, %v1778
  %2292 = vst.msk [vmem:[%s2 + $0x740] sm:$0x7f] %vm2059, %v1779
  %2293 = vst.msk [vmem:[%s2 + $0x748] sm:$0x7f] %vm2059, %v1780
  %2294 = vst.msk [vmem:[%s2 + $0x750] sm:$0x7f] %vm2059, %v1781
  %2295 = vst.msk [vmem:[%s2 + $0x758] sm:$0x7f] %vm2059, %v1782
  %2296 = vst.msk [vmem:[%s2 + $0x760] sm:$0x7f] %vm2059, %v1783
  %2297 = vst.msk [vmem:[%s2 + $0x768] sm:$0x7f] %vm2059, %v1784
  %2298 = vst.msk [vmem:[%s2 + $0x770] sm:$0x7f] %vm2059, %v1785
  %2299 = vst.msk [vmem:[%s2 + $0x778] sm:$0x7f] %vm2059, %v1786
  %2300 = vst.msk [vmem:[%s2 + $0x780] sm:$0x7f] %vm2059, %v1787
  %2301 = vst.msk [vmem:[%s2 + $0x788] sm:$0x7f] %vm2059, %v1788
  %2302 = vst.msk [vmem:[%s2 + $0x790] sm:$0x7f] %vm2059, %v1789
  %2303 = vst.msk [vmem:[%s2 + $0x798] sm:$0x7f] %vm2059, %v1790
  %2304 = vst.msk [vmem:[%s2 + $0x7a0] sm:$0x7f] %vm2059, %v1791
  %2305 = vst.msk [vmem:[%s2 + $0x7a8] sm:$0x7f] %vm2059, %v1792
  %2306 = vst.msk [vmem:[%s2 + $0x7b0] sm:$0x7f] %vm2059, %v1793
  %2307 = vst.msk [vmem:[%s2 + $0x7b8] sm:$0x7f] %vm2059, %v1794
  %2308 = vst.msk [vmem:[%s2 + $0x7c0] sm:$0x7f] %vm2059, %v1795
  %2309 = vst.msk [vmem:[%s2 + $0x7c8] sm:$0x7f] %vm2059, %v1796
  %2310 = vst.msk [vmem:[%s2 + $0x7d0] sm:$0x7f] %vm2059, %v1797
  %2311 = vst.msk [vmem:[%s2 + $0x7d8] sm:$0x7f] %vm2059, %v1798
  %2312 = vst.msk [vmem:[%s2 + $0x7e0] sm:$0x7f] %vm2059, %v1799
  %2313 = vst.msk [vmem:[%s2 + $0x7e8] sm:$0x7f] %vm2059, %v1800
  %2314 = vst.msk [vmem:[%s2 + $0x7f0] sm:$0x7f] %vm2059, %v1801
  %2315 = vst.msk [vmem:[%s2 + $0x7f8] sm:$0x7f] %vm2059, %v1802
  %2316 = vst.msk [vmem:[%s2 + $0x800] sm:$0x7f] %vm2059, %v1803
  %2317 = vst.msk [vmem:[%s2 + $0x808] sm:$0x7f] %vm2059, %v1804
  %2318 = vst.msk [vmem:[%s2 + $0x810] sm:$0x7f] %vm2059, %v1805
  %2319 = vst.msk [vmem:[%s2 + $0x818] sm:$0x7f] %vm2059, %v1806
  %2320 = vst.msk [vmem:[%s2 + $0x820] sm:$0x7f] %vm2059, %v1807
  %2321 = vst.msk [vmem:[%s2 + $0x828] sm:$0x7f] %vm2059, %v1808
  %2322 = vst.msk [vmem:[%s2 + $0x830] sm:$0x7f] %vm2059, %v1809
  %2323 = vst.msk [vmem:[%s2 + $0x838] sm:$0x7f] %vm2059, %v1810
  %2324 = vst.msk [vmem:[%s2 + $0x840] sm:$0x7f] %vm2059, %v1811
  %2325 = vst.msk [vmem:[%s2 + $0x848] sm:$0x7f] %vm2059, %v1812
  %2326 = vst.msk [vmem:[%s2 + $0x850] sm:$0x7f] %vm2059, %v1813
  %2327 = vst.msk [vmem:[%s2 + $0x858] sm:$0x7f] %vm2059, %v1814
  %2328 = vst.msk [vmem:[%s2 + $0x860] sm:$0x7f] %vm2059, %v1815
  %2329 = vst.msk [vmem:[%s2 + $0x868] sm:$0x7f] %vm2059, %v1816
  %2330 = vst.msk [vmem:[%s2 + $0x870] sm:$0x7f] %vm2059, %v1817
  %2331 = vst.msk [vmem:[%s2 + $0x878] sm:$0x7f] %vm2059, %v1818
  %2332 = vst.msk [vmem:[%s2 + $0x880] sm:$0x7f] %vm2059, %v1819
  %2333 = vst.msk [vmem:[%s2 + $0x888] sm:$0x7f] %vm2059, %v1820
  %2334 = vst.msk [vmem:[%s2 + $0x890] sm:$0x7f] %vm2059, %v1821
  %2335 = vst.msk [vmem:[%s2 + $0x898] sm:$0x7f] %vm2059, %v1822
  %2336 = vst.msk [vmem:[%s2 + $0x8a0] sm:$0x7f] %vm2059, %v1823
  %2337 = vst.msk [vmem:[%s2 + $0x8a8] sm:$0x7f] %vm2059, %v1824
  %2338 = vst.msk [vmem:[%s2 + $0x8b0] sm:$0x7f] %vm2059, %v1825
  %2339 = vst.msk [vmem:[%s2 + $0x8b8] sm:$0x7f] %vm2059, %v1826
  %2340 = vst.msk [vmem:[%s2 + $0x8c0] sm:$0x7f] %vm2059, %v1827
  %2341 = vst.msk [vmem:[%s2 + $0x8c8] sm:$0x7f] %vm2059, %v1828
  %2342 = vst.msk [vmem:[%s2 + $0x8d0] sm:$0x7f] %vm2059, %v1829
  %2343 = vst.msk [vmem:[%s2 + $0x8d8] sm:$0x7f] %vm2059, %v1830
  %2344 = vst.msk [vmem:[%s2 + $0x8e0] sm:$0x7f] %vm2059, %v1831
  %2345 = vst.msk [vmem:[%s2 + $0x8e8] sm:$0x7f] %vm2059, %v1832
  %2346 = vst.msk [vmem:[%s2 + $0x8f0] sm:$0x7f] %vm2059, %v1833
  %2347 = vst.msk [vmem:[%s2 + $0x8f8] sm:$0x7f] %vm2059, %v1834
  %2348 = vst.msk [vmem:[%s2 + $0x900] sm:$0x7f] %vm2059, %v1835
  %2349 = vst.msk [vmem:[%s2 + $0x908] sm:$0x7f] %vm2059, %v1836
  %2350 = vst.msk [vmem:[%s2 + $0x910] sm:$0x7f] %vm2059, %v1837
  %2351 = vst.msk [vmem:[%s2 + $0x918] sm:$0x7f] %vm2059, %v1838
  %2352 = vst.msk [vmem:[%s2 + $0x920] sm:$0x7f] %vm2059, %v1839
  %2353 = vst.msk [vmem:[%s2 + $0x928] sm:$0x7f] %vm2059, %v1840
  %2354 = vst.msk [vmem:[%s2 + $0x930] sm:$0x7f] %vm2059, %v1841
  %2355 = vst.msk [vmem:[%s2 + $0x938] sm:$0x7f] %vm2059, %v1842
  %2356 = vst.msk [vmem:[%s2 + $0x940] sm:$0x7f] %vm2059, %v1843
  %2357 = vst.msk [vmem:[%s2 + $0x948] sm:$0x7f] %vm2059, %v1844
  %2358 = vst.msk [vmem:[%s2 + $0x950] sm:$0x7f] %vm2059, %v1845
  %2359 = vst.msk [vmem:[%s2 + $0x958] sm:$0x7f] %vm2059, %v1846
  %2360 = vst.msk [vmem:[%s2 + $0x960] sm:$0x7f] %vm2059, %v1847
  %2361 = vst.msk [vmem:[%s2 + $0x968] sm:$0x7f] %vm2059, %v1848
  %2362 = vst.msk [vmem:[%s2 + $0x970] sm:$0x7f] %vm2059, %v1849
  %2363 = vst.msk [vmem:[%s2 + $0x978] sm:$0x7f] %vm2059, %v1850
  %2364 = vst.msk [vmem:[%s2 + $0x980] sm:$0x7f] %vm2059, %v1851
  %2365 = vst.msk [vmem:[%s2 + $0x988] sm:$0x7f] %vm2059, %v1852
  %2366 = vst.msk [vmem:[%s2 + $0x990] sm:$0x7f] %vm2059, %v1853
  %2367 = vst.msk [vmem:[%s2 + $0x998] sm:$0x7f] %vm2059, %v1854
  %2368 = vst.msk [vmem:[%s2 + $0x9a0] sm:$0x7f] %vm2059, %v1855
  %2369 = vst.msk [vmem:[%s2 + $0x9a8] sm:$0x7f] %vm2059, %v1856
  %2370 = vst.msk [vmem:[%s2 + $0x9b0] sm:$0x7f] %vm2059, %v1857
  %2371 = vst.msk [vmem:[%s2 + $0x9b8] sm:$0x7f] %vm2059, %v1858
  %2372 = vst.msk [vmem:[%s2 + $0x9c0] sm:$0x7f] %vm2059, %v1859
  %2373 = vst.msk [vmem:[%s2 + $0x9c8] sm:$0x7f] %vm2059, %v1860
  %2374 = vst.msk [vmem:[%s2 + $0x9d0] sm:$0x7f] %vm2059, %v1861
  %2375 = vst.msk [vmem:[%s2 + $0x9d8] sm:$0x7f] %vm2059, %v1862
  %2376 = vst.msk [vmem:[%s2 + $0x9e0] sm:$0x7f] %vm2059, %v1863
  %2377 = vst.msk [vmem:[%s2 + $0x9e8] sm:$0x7f] %vm2059, %v1864
  %2378 = vst.msk [vmem:[%s2 + $0x9f0] sm:$0x7f] %vm2059, %v1865
  %2379 = vst.msk [vmem:[%s2 + $0x9f8] sm:$0x7f] %vm2059, %v1866
  %2380 = vst.msk [vmem:[%s2 + $0xa00] sm:$0x7f] %vm2059, %v1867
  %2381 = vst.msk [vmem:[%s2 + $0xa08] sm:$0x7f] %vm2059, %v1868
  %2382 = vst.msk [vmem:[%s2 + $0xa10] sm:$0x7f] %vm2059, %v1869
  %2383 = vst.msk [vmem:[%s2 + $0xa18] sm:$0x7f] %vm2059, %v1870
  %2384 = vst.msk [vmem:[%s2 + $0xa20] sm:$0x7f] %vm2059, %v1871
  %2385 = vst.msk [vmem:[%s2 + $0xa28] sm:$0x7f] %vm2059, %v1872
  %2386 = vst.msk [vmem:[%s2 + $0xa30] sm:$0x7f] %vm2059, %v1873
  %2387 = vst.msk [vmem:[%s2 + $0xa38] sm:$0x7f] %vm2059, %v1874
  %2388 = vst.msk [vmem:[%s2 + $0xa40] sm:$0x7f] %vm2059, %v1875
  %2389 = vst.msk [vmem:[%s2 + $0xa48] sm:$0x7f] %vm2059, %v1876
  %2390 = vst.msk [vmem:[%s2 + $0xa50] sm:$0x7f] %vm2059, %v1877
  %2391 = vst.msk [vmem:[%s2 + $0xa58] sm:$0x7f] %vm2059, %v1878
  %2392 = vst.msk [vmem:[%s2 + $0xa60] sm:$0x7f] %vm2059, %v1879
  %2393 = vst.msk [vmem:[%s2 + $0xa68] sm:$0x7f] %vm2059, %v1880
  %2394 = vst.msk [vmem:[%s2 + $0xa70] sm:$0x7f] %vm2059, %v1881
  %2395 = vst.msk [vmem:[%s2 + $0xa78] sm:$0x7f] %vm2059, %v1882
  %2396 = vst.msk [vmem:[%s2 + $0xa80] sm:$0x7f] %vm2059, %v1883
  %2397 = vst.msk [vmem:[%s2 + $0xa88] sm:$0x7f] %vm2059, %v1884
  %2398 = vst.msk [vmem:[%s2 + $0xa90] sm:$0x7f] %vm2059, %v1885
  %2399 = vst.msk [vmem:[%s2 + $0xa98] sm:$0x7f] %vm2059, %v1886
  %2400 = vst.msk [vmem:[%s2 + $0xaa0] sm:$0x7f] %vm2059, %v1887
  %2401 = vst.msk [vmem:[%s2 + $0xaa8] sm:$0x7f] %vm2059, %v1888
  %2402 = vst.msk [vmem:[%s2 + $0xab0] sm:$0x7f] %vm2059, %v1889
  %2403 = vst.msk [vmem:[%s2 + $0xab8] sm:$0x7f] %vm2059, %v1890
  %2404 = vst.msk [vmem:[%s2 + $0xac0] sm:$0x7f] %vm2059, %v1891
  %2405 = vst.msk [vmem:[%s2 + $0xac8] sm:$0x7f] %vm2059, %v1892
  %2406 = vst.msk [vmem:[%s2 + $0xad0] sm:$0x7f] %vm2059, %v1893
  %2407 = vst.msk [vmem:[%s2 + $0xad8] sm:$0x7f] %vm2059, %v1894
  %2408 = vst.msk [vmem:[%s2 + $0xae0] sm:$0x7f] %vm2059, %v1895
  %2409 = vst.msk [vmem:[%s2 + $0xae8] sm:$0x7f] %vm2059, %v1896
  %2410 = vst.msk [vmem:[%s2 + $0xaf0] sm:$0x7f] %vm2059, %v1897
  %2411 = vst.msk [vmem:[%s2 + $0xaf8] sm:$0x7f] %vm2059, %v1898
  %2412 = vst.msk [vmem:[%s2 + $0xb00] sm:$0x7f] %vm2059, %v1899
  %2413 = vst.msk [vmem:[%s2 + $0xb08] sm:$0x7f] %vm2059, %v1900
  %2414 = vst.msk [vmem:[%s2 + $0xb10] sm:$0x7f] %vm2059, %v1901
  %2415 = vst.msk [vmem:[%s2 + $0xb18] sm:$0x7f] %vm2059, %v1902
  %2416 = vst.msk [vmem:[%s2 + $0xb20] sm:$0x7f] %vm2059, %v1903
  %2417 = vst.msk [vmem:[%s2 + $0xb28] sm:$0x7f] %vm2059, %v1904
  %2418 = vst.msk [vmem:[%s2 + $0xb30] sm:$0x7f] %vm2059, %v1905
  %2419 = vst.msk [vmem:[%s2 + $0xb38] sm:$0x7f] %vm2059, %v1906
  %2420 = vst.msk [vmem:[%s2 + $0xb40] sm:$0x7f] %vm2059, %v1907
  %2421 = vst.msk [vmem:[%s2 + $0xb48] sm:$0x7f] %vm2059, %v1908
  %2422 = vst.msk [vmem:[%s2 + $0xb50] sm:$0x7f] %vm2059, %v1909
  %2423 = vst.msk [vmem:[%s2 + $0xb58] sm:$0x7f] %vm2059, %v1910
  %2424 = vst.msk [vmem:[%s2 + $0xb60] sm:$0x7f] %vm2059, %v1911
  %2425 = vst.msk [vmem:[%s2 + $0xb68] sm:$0x7f] %vm2059, %v1912
  %2426 = vst.msk [vmem:[%s2 + $0xb70] sm:$0x7f] %vm2059, %v1913
  %2427 = vst.msk [vmem:[%s2 + $0xb78] sm:$0x7f] %vm2059, %v1914
  %2428 = vst.msk [vmem:[%s2 + $0xb80] sm:$0x7f] %vm2059, %v1915
  %2429 = vst.msk [vmem:[%s2 + $0xb88] sm:$0x7f] %vm2059, %v1916
  %2430 = vst.msk [vmem:[%s2 + $0xb90] sm:$0x7f] %vm2059, %v1917
  %2431 = vst.msk [vmem:[%s2 + $0xb98] sm:$0x7f] %vm2059, %v1918
  %2432 = vst.msk [vmem:[%s2 + $0xba0] sm:$0x7f] %vm2059, %v1919
  %2433 = vst.msk [vmem:[%s2 + $0xba8] sm:$0x7f] %vm2059, %v1920
  %2434 = vst.msk [vmem:[%s2 + $0xbb0] sm:$0x7f] %vm2059, %v1921
  %2435 = vst.msk [vmem:[%s2 + $0xbb8] sm:$0x7f] %vm2059, %v1922
  %2436 = vst.msk [vmem:[%s2 + $0xbc0] sm:$0x7f] %vm2059, %v1923
  %2437 = vst.msk [vmem:[%s2 + $0xbc8] sm:$0x7f] %vm2059, %v1924
  %2438 = vst.msk [vmem:[%s2 + $0xbd0] sm:$0x7f] %vm2059, %v1925
  %2439 = vst.msk [vmem:[%s2 + $0xbd8] sm:$0x7f] %vm2059, %v1926
  %2440 = vst.msk [vmem:[%s2 + $0xbe0] sm:$0x7f] %vm2059, %v1927
  %2441 = vst.msk [vmem:[%s2 + $0xbe8] sm:$0x7f] %vm2059, %v1928
  %2442 = vst.msk [vmem:[%s2 + $0xbf0] sm:$0x7f] %vm2059, %v1929
  %2443 = vst.msk [vmem:[%s2 + $0xbf8] sm:$0x7f] %vm2059, %v1930
  %2444 = vst.msk [vmem:[%s2 + $0xc00] sm:$0x7f] %vm2059, %v1931
  %2445 = vst.msk [vmem:[%s2 + $0xc08] sm:$0x7f] %vm2059, %v1932
  %2446 = vst.msk [vmem:[%s2 + $0xc10] sm:$0x7f] %vm2059, %v1933
  %2447 = vst.msk [vmem:[%s2 + $0xc18] sm:$0x7f] %vm2059, %v1934
  %2448 = vst.msk [vmem:[%s2 + $0xc20] sm:$0x7f] %vm2059, %v1935
  %2449 = vst.msk [vmem:[%s2 + $0xc28] sm:$0x7f] %vm2059, %v1936
  %2450 = vst.msk [vmem:[%s2 + $0xc30] sm:$0x7f] %vm2059, %v1937
  %2451 = vst.msk [vmem:[%s2 + $0xc38] sm:$0x7f] %vm2059, %v1938
  %2452 = vst.msk [vmem:[%s2 + $0xc40] sm:$0x7f] %vm2059, %v1939
  %2453 = vst.msk [vmem:[%s2 + $0xc48] sm:$0x7f] %vm2059, %v1940
  %2454 = vst.msk [vmem:[%s2 + $0xc50] sm:$0x7f] %vm2059, %v1941
  %2455 = vst.msk [vmem:[%s2 + $0xc58] sm:$0x7f] %vm2059, %v1942
  %2456 = vst.msk [vmem:[%s2 + $0xc60] sm:$0x7f] %vm2059, %v1943
  %2457 = vst.msk [vmem:[%s2 + $0xc68] sm:$0x7f] %vm2059, %v1944
  %2458 = vst.msk [vmem:[%s2 + $0xc70] sm:$0x7f] %vm2059, %v1945
  %2459 = vst.msk [vmem:[%s2 + $0xc78] sm:$0x7f] %vm2059, %v1946
  %2460 = vst.msk [vmem:[%s2 + $0xc80] sm:$0x7f] %vm2059, %v1947
  %2461 = vst.msk [vmem:[%s2 + $0xc88] sm:$0x7f] %vm2059, %v1948
  %2462 = vst.msk [vmem:[%s2 + $0xc90] sm:$0x7f] %vm2059, %v1949
  %2463 = vst.msk [vmem:[%s2 + $0xc98] sm:$0x7f] %vm2059, %v1950
  %2464 = vst.msk [vmem:[%s2 + $0xca0] sm:$0x7f] %vm2059, %v1951
  %2465 = vst.msk [vmem:[%s2 + $0xca8] sm:$0x7f] %vm2059, %v1952
  %2466 = vst.msk [vmem:[%s2 + $0xcb0] sm:$0x7f] %vm2059, %v1953
  %2467 = vst.msk [vmem:[%s2 + $0xcb8] sm:$0x7f] %vm2059, %v1954
  %2468 = vst.msk [vmem:[%s2 + $0xcc0] sm:$0x7f] %vm2059, %v1955
  %2469 = vst.msk [vmem:[%s2 + $0xcc8] sm:$0x7f] %vm2059, %v1956
  %2470 = vst.msk [vmem:[%s2 + $0xcd0] sm:$0x7f] %vm2059, %v1957
  %2471 = vst.msk [vmem:[%s2 + $0xcd8] sm:$0x7f] %vm2059, %v1958
  %2472 = vst.msk [vmem:[%s2 + $0xce0] sm:$0x7f] %vm2059, %v1959
  %2473 = vst.msk [vmem:[%s2 + $0xce8] sm:$0x7f] %vm2059, %v1960
  %2474 = vst.msk [vmem:[%s2 + $0xcf0] sm:$0x7f] %vm2059, %v1961
  %2475 = vst.msk [vmem:[%s2 + $0xcf8] sm:$0x7f] %vm2059, %v1962
  %2476 = vst.msk [vmem:[%s2 + $0xd00] sm:$0x7f] %vm2059, %v1963
  %2477 = vst.msk [vmem:[%s2 + $0xd08] sm:$0x7f] %vm2059, %v1964
  %2478 = vst.msk [vmem:[%s2 + $0xd10] sm:$0x7f] %vm2059, %v1965
  %2479 = vst.msk [vmem:[%s2 + $0xd18] sm:$0x7f] %vm2059, %v1966
  %2480 = vst.msk [vmem:[%s2 + $0xd20] sm:$0x7f] %vm2059, %v1967
  %2481 = vst.msk [vmem:[%s2 + $0xd28] sm:$0x7f] %vm2059, %v1968
  %2482 = vst.msk [vmem:[%s2 + $0xd30] sm:$0x7f] %vm2059, %v1969
  %2483 = vst.msk [vmem:[%s2 + $0xd38] sm:$0x7f] %vm2059, %v1970
  %2484 = vst.msk [vmem:[%s2 + $0xd40] sm:$0x7f] %vm2059, %v1971
  %2485 = vst.msk [vmem:[%s2 + $0xd48] sm:$0x7f] %vm2059, %v1972
  %2486 = vst.msk [vmem:[%s2 + $0xd50] sm:$0x7f] %vm2059, %v1973
  %2487 = vst.msk [vmem:[%s2 + $0xd58] sm:$0x7f] %vm2059, %v1974
  %2488 = vst.msk [vmem:[%s2 + $0xd60] sm:$0x7f] %vm2059, %v1975
  %2489 = vst.msk [vmem:[%s2 + $0xd68] sm:$0x7f] %vm2059, %v1976
  %2490 = vst.msk [vmem:[%s2 + $0xd70] sm:$0x7f] %vm2059, %v1977
  %2491 = vst.msk [vmem:[%s2 + $0xd78] sm:$0x7f] %vm2059, %v1978
  %2492 = vst.msk [vmem:[%s2 + $0xd80] sm:$0x7f] %vm2059, %v1979
  %2493 = vst.msk [vmem:[%s2 + $0xd88] sm:$0x7f] %vm2059, %v1980
  %2494 = vst.msk [vmem:[%s2 + $0xd90] sm:$0x7f] %vm2059, %v1981
  %2495 = vst.msk [vmem:[%s2 + $0xd98] sm:$0x7f] %vm2059, %v1982
  %2496 = vst.msk [vmem:[%s2 + $0xda0] sm:$0x7f] %vm2059, %v1983
  %2497 = vst.msk [vmem:[%s2 + $0xda8] sm:$0x7f] %vm2059, %v1984
  %2498 = vst.msk [vmem:[%s2 + $0xdb0] sm:$0x7f] %vm2059, %v1985
  %2499 = vst.msk [vmem:[%s2 + $0xdb8] sm:$0x7f] %vm2059, %v1986
  %2500 = vst.msk [vmem:[%s2 + $0xdc0] sm:$0x7f] %vm2059, %v1987
  %2501 = vst.msk [vmem:[%s2 + $0xdc8] sm:$0x7f] %vm2059, %v1988
  %2502 = vst.msk [vmem:[%s2 + $0xdd0] sm:$0x7f] %vm2059, %v1989
  %2503 = vst.msk [vmem:[%s2 + $0xdd8] sm:$0x7f] %vm2059, %v1990
  %2504 = vst.msk [vmem:[%s2 + $0xde0] sm:$0x7f] %vm2059, %v1991
  %2505 = vst.msk [vmem:[%s2 + $0xde8] sm:$0x7f] %vm2059, %v1992
  %2506 = vst.msk [vmem:[%s2 + $0xdf0] sm:$0x7f] %vm2059, %v1993
  %2507 = vst.msk [vmem:[%s2 + $0xdf8] sm:$0x7f] %vm2059, %v1994
  %2508 = vst.msk [vmem:[%s2 + $0xe00] sm:$0x7f] %vm2059, %v1995
  %2509 = vst.msk [vmem:[%s2 + $0xe08] sm:$0x7f] %vm2059, %v1996
  %2510 = vst.msk [vmem:[%s2 + $0xe10] sm:$0x7f] %vm2059, %v1997
  %2511 = vst.msk [vmem:[%s2 + $0xe18] sm:$0x7f] %vm2059, %v1998
  %2512 = vst.msk [vmem:[%s2 + $0xe20] sm:$0x7f] %vm2059, %v1999
  %2513 = vst.msk [vmem:[%s2 + $0xe28] sm:$0x7f] %vm2059, %v2000
  %2514 = vst.msk [vmem:[%s2 + $0xe30] sm:$0x7f] %vm2059, %v2001
  %2515 = vst.msk [vmem:[%s2 + $0xe38] sm:$0x7f] %vm2059, %v2002
  %2516 = vst.msk [vmem:[%s2 + $0xe40] sm:$0x7f] %vm2059, %v2003
  %2517 = vst.msk [vmem:[%s2 + $0xe48] sm:$0x7f] %vm2059, %v2004
  %2518 = vst.msk [vmem:[%s2 + $0xe50] sm:$0x7f] %vm2059, %v2005
  %2519 = vst.msk [vmem:[%s2 + $0xe58] sm:$0x7f] %vm2059, %v2006
  %2520 = vst.msk [vmem:[%s2 + $0xe60] sm:$0x7f] %vm2059, %v2007
  %2521 = vst.msk [vmem:[%s2 + $0xe68] sm:$0x7f] %vm2059, %v2008
  %2522 = vst.msk [vmem:[%s2 + $0xe70] sm:$0x7f] %vm2059, %v2009
  %2523 = vst.msk [vmem:[%s2 + $0xe78] sm:$0x7f] %vm2059, %v2010
  %2524 = vst.msk [vmem:[%s2 + $0xe80] sm:$0x7f] %vm2059, %v2011
  %2525 = vst.msk [vmem:[%s2 + $0xe88] sm:$0x7f] %vm2059, %v2012
  %2526 = vst.msk [vmem:[%s2 + $0xe90] sm:$0x7f] %vm2059, %v2013
  %2527 = vst.msk [vmem:[%s2 + $0xe98] sm:$0x7f] %vm2059, %v2014
  %2528 = vst.msk [vmem:[%s2 + $0xea0] sm:$0x7f] %vm2059, %v2015
  %2529 = vst.msk [vmem:[%s2 + $0xea8] sm:$0x7f] %vm2059, %v2016
  %2530 = vst.msk [vmem:[%s2 + $0xeb0] sm:$0x7f] %vm2059, %v2017
  %2531 = vst.msk [vmem:[%s2 + $0xeb8] sm:$0x7f] %vm2059, %v2018
  %2532 = vst.msk [vmem:[%s2 + $0xec0] sm:$0x7f] %vm2059, %v2019
  %2533 = vst.msk [vmem:[%s2 + $0xec8] sm:$0x7f] %vm2059, %v2020
  %2534 = vst.msk [vmem:[%s2 + $0xed0] sm:$0x7f] %vm2059, %v2021
  %2535 = vst.msk [vmem:[%s2 + $0xed8] sm:$0x7f] %vm2059, %v2022
  %2536 = vst.msk [vmem:[%s2 + $0xee0] sm:$0x7f] %vm2059, %v2023
  %2537 = vst.msk [vmem:[%s2 + $0xee8] sm:$0x7f] %vm2059, %v2024
  %2538 = vst.msk [vmem:[%s2 + $0xef0] sm:$0x7f] %vm2059, %v2025
  %2539 = vst.msk [vmem:[%s2 + $0xef8] sm:$0x7f] %vm2059, %v2026
  %2540 = vst.msk [vmem:[%s2 + $0xf00] sm:$0x7f] %vm2059, %v2027
  %2541 = vst.msk [vmem:[%s2 + $0xf08] sm:$0x7f] %vm2059, %v2028
  %2542 = vst.msk [vmem:[%s2 + $0xf10] sm:$0x7f] %vm2059, %v2029
  %2543 = vst.msk [vmem:[%s2 + $0xf18] sm:$0x7f] %vm2059, %v2030
  %2544 = vst.msk [vmem:[%s2 + $0xf20] sm:$0x7f] %vm2059, %v2031
  %2545 = vst.msk [vmem:[%s2 + $0xf28] sm:$0x7f] %vm2059, %v2032
  %2546 = vst.msk [vmem:[%s2 + $0xf30] sm:$0x7f] %vm2059, %v2033
  %2547 = vst.msk [vmem:[%s2 + $0xf38] sm:$0x7f] %vm2059, %v2034
  %2548 = vst.msk [vmem:[%s2 + $0xf40] sm:$0x7f] %vm2059, %v2035
  %2549 = vst.msk [vmem:[%s2 + $0xf48] sm:$0x7f] %vm2059, %v2036
  %2550 = vst.msk [vmem:[%s2 + $0xf50] sm:$0x7f] %vm2059, %v2037
  %2551 = vst.msk [vmem:[%s2 + $0xf58] sm:$0x7f] %vm2059, %v2038
  %2552 = vst.msk [vmem:[%s2 + $0xf60] sm:$0x7f] %vm2059, %v2039
  %2553 = vst.msk [vmem:[%s2 + $0xf68] sm:$0x7f] %vm2059, %v2040
  %2554 = vst.msk [vmem:[%s2 + $0xf70] sm:$0x7f] %vm2059, %v2041
  %2555 = vst.msk [vmem:[%s2 + $0xf78] sm:$0x7f] %vm2059, %v2042
  %2556 = vst.msk [vmem:[%s2 + $0xf80] sm:$0x7f] %vm2059, %v2043
  %2557 = vst.msk [vmem:[%s2 + $0xf88] sm:$0x7f] %vm2059, %v2044
  %2558 = vst.msk [vmem:[%s2 + $0xf90] sm:$0x7f] %vm2059, %v2045
  %2559 = vst.msk [vmem:[%s2 + $0xf98] sm:$0x7f] %vm2059, %v2046
  %2560 = vst.msk [vmem:[%s2 + $0xfa0] sm:$0x7f] %vm2059, %v2047
  %2561 = vst.msk [vmem:[%s2 + $0xfa8] sm:$0x7f] %vm2059, %v2048
  %2562 = vst.msk [vmem:[%s2 + $0xfb0] sm:$0x7f] %vm2059, %v2049
  %2563 = vst.msk [vmem:[%s2 + $0xfb8] sm:$0x7f] %vm2059, %v2050
  %2564 = vst.msk [vmem:[%s2 + $0xfc0] sm:$0x7f] %vm2059, %v2051
  %2565 = vst.msk [vmem:[%s2 + $0xfc8] sm:$0x7f] %vm2059, %v2052
  %2566 = vst.msk [vmem:[%s2 + $0xfd0] sm:$0x7f] %vm2059, %v2053
  %2567 = vst.msk [vmem:[%s2 + $0xfd8] sm:$0x7f] %vm2059, %v2054
  %2568 = vst.msk [vmem:[%s2 + $0xfe0] sm:$0x7f] %vm2059, %v2055
  %2569 = vst.msk [vmem:[%s2 + $0xfe8] sm:$0x7f] %vm2059, %v2056
  %2570 = vst.msk [vmem:[%s2 + $0xff0] sm:$0x7f] %vm2059, %v2057
  %2571 = vst.msk [vmem:[%s2 + $0xff8] sm:$0x7f] %vm2059, %v2058
  // Predicated region
  $region10: #{_add_relu_impl.1} parent=0 // pred_check
    _
  $region11: #{_add_relu_impl.1} parent=0 // pred_check_branch
    %2573 = sbr.rel (0) target = $region13
  $region12: #{_add_relu_impl.1} parent=0 // pred_region
    _
  $region13: #{_add_relu_impl.1} parent=0 // pred_fallthru
    _
  // Predicated region
  $region14: #{_add_relu_impl.1} parent=0 // pred_check
    _
  $region15: #{_add_relu_impl.1} parent=0 // pred_check_branch
    %2575 = sbr.rel (0) target = $region17
  $region16: #{_add_relu_impl.1} parent=0 // pred_region
    _
  $region17: #{_add_relu_impl.1} parent=0 // pred_fallthru
    _

</llo_original>
